<compile_context>
chip_gen: v7x
topology: tpu7x:2x2x1
jax: 0.10.0
libtpu: 0.0.40
codegen_flags: <defaults>
</compile_context>

<pallas_src>
import math

import jax
import jax.numpy as jnp
from jax import lax
from jax.experimental import pallas as pl
from jax.experimental.pallas import tpu as pltpu

# ---- EDM hyperparameters (module defaults) ----
SIGMA_DATA = 1.0
P_MEAN = -1.2
P_STD = 1.2

# ---- problem sizes (flat transition vector as event shape) ----
BATCH = 256        # small example batch
EVENT_DIM = 32     # event_shape = [32]
FOURIER = 16       # random sinusoidal frequencies (net.random_or_learned_sinusoidal_cond)
HIDDEN = 128       # MLP hidden width
TWO_F = 2 * FOURIER
assert TWO_F == EVENT_DIM   # lets the fourier constants share the (5, D) const pack

LANES = 128        # lane-dense width of the per-tile scalar output row


def _edm_forward_kernel(
    x_ref,       # (Tb, D)    raw inputs (f32)
    z_ref,       # (Tb, 1)    standard-normal draws for sigma (f32)
    noise_ref,   # (Tb, D)    standard-normal noise (f32)
    consts_ref,  # (5, D)     rows: mean, inv_std, freqs_dup, phase, b2 (f32)
    w1_ref,      # (D+2F, H)  fused first-layer weight (bf16)
    b1_ref,      # (1, H)     (f32)
    w2_ref,      # (H, D)     (bf16)
    loss_ref,    # (1, LANES) per-tile sum of weighted losses, broadcast over lanes (f32)
):
    f32 = jnp.float32
    bf16 = jnp.bfloat16
    D = EVENT_DIM

    mean = consts_ref[0:1, :]        # (1, D)
    inv_std = consts_ref[1:2, :]
    freqs_dup = consts_ref[2:3, :]   # [freqs, freqs]
    phase = consts_ref[3:4, :]       # [0...0, pi/2...pi/2]
    b2 = consts_ref[4:5, :]

    # --- normalizer.normalize(inputs): (x - mean) * (1/std) ---
    x = (x_ref[...] - mean) * inv_std                            # (Tb, D)

    # --- sigma = exp(P_mean + P_std * N(0,1)) ---
    log_sigma = P_MEAN + P_STD * z_ref[...]                      # (Tb, 1)
    sigma = jnp.exp(log_sigma)
    denom = sigma * sigma + SIGMA_DATA * SIGMA_DATA

    # --- EDM preconditioning coefficients ---
    c_in = lax.rsqrt(denom)
    c_skip = (SIGMA_DATA * SIGMA_DATA) / denom                   # exact
    c_out = sigma * SIGMA_DATA * c_in
    c_noise = 0.25 * log_sigma                                   # == 0.25*log(sigma)

    # --- noised_inputs = inputs + padded_sigmas * noise ---
    noised = x + sigma * noise_ref[...]                          # (Tb, D)

    # --- denoising net: two MXU dots on statically sliced fused w1 (no concat) ---
    h = (c_in * noised).astype(bf16)                             # (Tb, D)
    ang = (2.0 * math.pi) * c_noise * freqs_dup + phase          # (Tb, 2F)
    sincos = jnp.sin(ang).astype(bf16)                           # == [sin(ang0), cos(ang0)]

    pre = jnp.dot(h, w1_ref[0:D, :], preferred_element_type=f32)
    pre = pre + jnp.dot(sincos, w1_ref[D:D + TWO_F, :], preferred_element_type=f32)
    pre = pre + b1_ref[...]                                      # (Tb, H)
    act = (pre * jax.nn.sigmoid(pre)).astype(bf16)               # SiLU, bf16 for MXU
    net_out = jnp.dot(act, w2_ref[...], preferred_element_type=f32) + b2   # (Tb, D)

    # --- preconditioned output + weighted per-sample MSE, reduced to one scalar ---
    denoised = c_skip * noised + c_out * net_out
    diff = denoised - x
    per_sample = jnp.sum(diff * diff, axis=-1, keepdims=True) * (1.0 / D)  # (Tb, 1)
    # loss_weight(sigma) = (sigma^2 + sd^2)/(sigma*sd)^2 = 1/sd^2 + 1/sigma^2 (exact)
    weight = (1.0 / (SIGMA_DATA * SIGMA_DATA)) + jnp.exp(-2.0 * log_sigma)
    tile_sum = jnp.sum(per_sample * weight, axis=0, keepdims=True)         # (1, 1)
    loss_ref[...] = jnp.broadcast_to(tile_sum, (1, LANES))


@jax.jit
def elucidated_diffusion_forward(x, z_sigma, noise, params):
    """Scalar EDM training loss (same semantics as ElucidatedDiffusion.forward)."""
    B, D = x.shape
    # at most 2 grid steps: one tile per v7x TensorCore; tiny extra cost on v5e/v6e.
    num_tiles = 1 if B <= 128 else 2
    assert B % num_tiles == 0
    tile_b = B // num_tiles
    assert tile_b % 8 == 0, "batch tile must be a multiple of 8 sublanes"

    batch_spec = lambda shp: pl.BlockSpec(shp, lambda i: (i, 0))
    const_spec = lambda shp: pl.BlockSpec(shp, lambda i: (0, 0))   # resident across grid

    out = pl.pallas_call(
        _edm_forward_kernel,
        out_shape=jax.ShapeDtypeStruct((1, num_tiles * LANES), jnp.float32),
        grid_spec=pltpu.PrefetchScalarGridSpec(
            num_scalar_prefetch=0,
            grid=(num_tiles,),
            in_specs=[
                batch_spec((tile_b, D)),              # x
                batch_spec((tile_b, 1)),              # z_sigma
                batch_spec((tile_b, D)),              # noise
                const_spec((5, D)),                   # packed constant vectors
                const_spec((D + TWO_F, HIDDEN)),      # fused w1 (bf16)
                const_spec((1, HIDDEN)),              # b1
                const_spec((HIDDEN, D)),              # w2 (bf16)
            ],
            out_specs=pl.BlockSpec((1, LANES), lambda i: (0, i)),  # lane-dense scalar row
        ),
        compiler_params=pltpu.CompilerParams(
            dimension_semantics=("parallel",),        # shards the 2 tiles across v7x's TCs
        ),
    )(x, z_sigma, noise, params["consts"], params["w1"], params["b1"], params["w2"])

    per_tile = out.reshape(num_tiles, LANES)[:, 0]    # each lane holds the same tile sum
    return jnp.sum(per_tile) / B


def init_params(key):
    """Deterministic synthetic parameters for normalizer + denoising net."""
    # TODO(synk): the real `net` architecture isn't given; a 2-layer SiLU MLP with
    # random sinusoidal time conditioning stands in for it.
    k_f, k_w1x, k_w1s, k_w1c, k_w2 = jax.random.split(key, 5)
    f32 = jnp.float32
    mean = jnp.zeros((1, EVENT_DIM), f32)
    std = jnp.ones((1, EVENT_DIM), f32)
    freqs = jax.random.normal(k_f, (1, FOURIER), f32)
    w1x = jax.random.normal(k_w1x, (EVENT_DIM, HIDDEN), f32) * (1.0 / math.sqrt(EVENT_DIM))
    w1s = jax.random.normal(k_w1s, (FOURIER, HIDDEN), f32) * (1.0 / math.sqrt(FOURIER))
    w1c = jax.random.normal(k_w1c, (FOURIER, HIDDEN), f32) * (1.0 / math.sqrt(FOURIER))
    w2 = jax.random.normal(k_w2, (HIDDEN, EVENT_DIM), f32) * (1.0 / math.sqrt(HIDDEN))
    b1 = jnp.zeros((1, HIDDEN), f32)
    b2 = jnp.zeros((1, EVENT_DIM), f32)

    # kernel-side packing
    freqs_dup = jnp.concatenate([freqs, freqs], axis=-1)                       # (1, 2F)
    phase = jnp.concatenate(
        [jnp.zeros((1, FOURIER), f32), jnp.full((1, FOURIER), 0.5 * math.pi, f32)], axis=-1)
    consts = jnp.concatenate([mean, 1.0 / std, freqs_dup, phase, b2], axis=0)  # (5, D)
    w1 = jnp.concatenate([w1x, w1s, w1c], axis=0).astype(jnp.bfloat16)         # (D+2F, H)

    return {
        # packed kernel params
        "consts": consts,
        "w1": w1,
        "b1": b1,
        "w2": w2.astype(jnp.bfloat16),
        # f32 logical params for the reference
        "mean": mean, "std": std, "freqs": freqs,
        "w1x": w1x, "w1s": w1s, "w1c": w1c, "w2_f32": w2, "b2": b2,
    }


def _reference_loss(x, z_sigma, noise, params):
    """Pure-JAX f32 reference mirroring the PyTorch forward() math."""
    x = (x - params["mean"]) / params["std"]
    sigma = jnp.exp(P_MEAN + P_STD * z_sigma)
    noised = x + sigma * noise
    denom = sigma ** 2 + SIGMA_DATA ** 2
    c_in = denom ** -0.5
    c_skip = SIGMA_DATA ** 2 / denom
    c_out = sigma * SIGMA_DATA * denom ** -0.5
    c_noise = 0.25 * jnp.log(jnp.maximum(sigma, 1e-20))
    ang = (2.0 * math.pi) * c_noise * params["freqs"]
    feat = jnp.concatenate([c_in * noised, jnp.sin(ang), jnp.cos(ang)], axis=-1)
    w1 = jnp.concatenate([params["w1x"], params["w1s"], params["w1c"]], axis=0)
    pre = feat @ w1 + params["b1"]
    act = pre * jax.nn.sigmoid(pre)
    net_out = act @ params["w2_f32"] + params["b2"]
    denoised = c_skip * noised + c_out * net_out
    per_sample = jnp.mean((denoised - x) ** 2, axis=-1, keepdims=True)
    weight = denom / (sigma * SIGMA_DATA) ** 2
    return jnp.mean(per_sample * weight)


if __name__ == "__main__":
    root = jax.random.PRNGKey(0)
    k_params, k_x, k_sigma, k_noise = jax.random.split(root, 4)

    params = init_params(k_params)

    # example inputs: batch of flat transition vectors
    x = jax.random.normal(k_x, (BATCH, EVENT_DIM), jnp.float32)
    # standard-normal draws -> sigma = exp(P_mean + P_std * z) inside the kernel
    z_sigma = jax.random.normal(k_sigma, (BATCH, 1), jnp.float32)
    # noise ~ N(0, I) like torch.randn_like(inputs)
    noise = jax.random.normal(k_noise, (BATCH, EVENT_DIM), jnp.float32)

    loss = jax.block_until_ready(elucidated_diffusion_forward(x, z_sigma, noise, params))
    ref = jax.block_until_ready(_reference_loss(x, z_sigma, noise, params))

    assert jnp.isfinite(loss), f"non-finite loss: {loss}"
    assert jnp.allclose(loss, ref, rtol=5e-2, atol=1e-3), (loss, ref)
    print("KERNEL_OK")
</pallas_src>

<mosaic_0001>
module attributes {stable_mosaic.version = 11 : i64} {
  func.func @_edm_forward_kernel(%arg0: i32, %arg1: memref<128x32xf32, #tpu.memory_space<vmem>>, %arg2: memref<128x1xf32, #tpu.memory_space<vmem>>, %arg3: memref<128x32xf32, #tpu.memory_space<vmem>>, %arg4: memref<5x32xf32, #tpu.memory_space<vmem>>, %arg5: memref<64x128xbf16, #tpu.memory_space<vmem>>, %arg6: memref<1x128xf32, #tpu.memory_space<vmem>>, %arg7: memref<128x32xbf16, #tpu.memory_space<vmem>>, %arg8: memref<1x128xf32, #tpu.memory_space<vmem>>) attributes {dimension_semantics = [#tpu.dimension_semantics<parallel>], iteration_bounds = array<i64: 2>, scalar_prefetch = 0 : i64, scratch_operands = 0 : i64, tpu.core_type = #tpu.core_type<tc>, window_params = [{transform_indices = @transform_0, window_bounds = array<i64: 128, 32>}, {transform_indices = @transform_1, window_bounds = array<i64: 128, 1>}, {transform_indices = @transform_2, window_bounds = array<i64: 128, 32>}, {pipeline_mode = #tpu.pipeline_mode<synchronous>, transform_indices = @transform_3, window_bounds = array<i64: 5, 32>}, {pipeline_mode = #tpu.pipeline_mode<synchronous>, transform_indices = @transform_4, window_bounds = array<i64: 64, 128>}, {pipeline_mode = #tpu.pipeline_mode<synchronous>, transform_indices = @transform_5, window_bounds = array<i64: 1, 128>}, {pipeline_mode = #tpu.pipeline_mode<synchronous>, transform_indices = @transform_6, window_bounds = array<i64: 128, 32>}, {transform_indices = @transform_7, window_bounds = array<i64: 1, 128>}]} {
    %c0 = arith.constant 0 : index
    %c0_0 = arith.constant 0 : index
    %0 = vector.load %arg4[%c0, %c0_0] : memref<5x32xf32, #tpu.memory_space<vmem>>, vector<1x32xf32>
    %c1 = arith.constant 1 : index
    %c0_1 = arith.constant 0 : index
    %1 = vector.load %arg4[%c1, %c0_1] : memref<5x32xf32, #tpu.memory_space<vmem>>, vector<1x32xf32>
    %c2 = arith.constant 2 : index
    %c0_2 = arith.constant 0 : index
    %2 = vector.load %arg4[%c2, %c0_2] : memref<5x32xf32, #tpu.memory_space<vmem>>, vector<1x32xf32>
    %c3 = arith.constant 3 : index
    %c0_3 = arith.constant 0 : index
    %3 = vector.load %arg4[%c3, %c0_3] : memref<5x32xf32, #tpu.memory_space<vmem>>, vector<1x32xf32>
    %c4 = arith.constant 4 : index
    %c0_4 = arith.constant 0 : index
    %4 = vector.load %arg4[%c4, %c0_4] : memref<5x32xf32, #tpu.memory_space<vmem>>, vector<1x32xf32>
    %c0_5 = arith.constant 0 : index
    %c0_6 = arith.constant 0 : index
    %5 = vector.load %arg1[%c0_5, %c0_6] : memref<128x32xf32, #tpu.memory_space<vmem>>, vector<128x32xf32>
    %6 = vector.broadcast %0 : vector<1x32xf32> to vector<128x32xf32>
    %7 = arith.subf %5, %6 : vector<128x32xf32>
    %8 = vector.broadcast %1 : vector<1x32xf32> to vector<128x32xf32>
    %9 = arith.mulf %7, %8 : vector<128x32xf32>
    %c0_7 = arith.constant 0 : index
    %c0_8 = arith.constant 0 : index
    %10 = vector.load %arg2[%c0_7, %c0_8] : memref<128x1xf32, #tpu.memory_space<vmem>>, vector<128x1xf32>
    %cst = arith.constant 1.200000e+00 : f32
    %11 = vector.broadcast %cst : f32 to vector<128x1xf32>
    %12 = arith.mulf %11, %10 : vector<128x1xf32>
    %cst_9 = arith.constant -1.200000e+00 : f32
    %13 = vector.broadcast %cst_9 : f32 to vector<128x1xf32>
    %14 = arith.addf %13, %12 : vector<128x1xf32>
    %15 = math.exp %14 : vector<128x1xf32>
    %16 = arith.mulf %15, %15 : vector<128x1xf32>
    %cst_10 = arith.constant 1.000000e+00 : f32
    %17 = vector.broadcast %cst_10 : f32 to vector<128x1xf32>
    %18 = arith.addf %16, %17 : vector<128x1xf32>
    %19 = math.rsqrt %18 : vector<128x1xf32>
    %cst_11 = arith.constant 1.000000e+00 : f32
    %20 = vector.broadcast %cst_11 : f32 to vector<128x1xf32>
    %21 = arith.divf %20, %18 : vector<128x1xf32>
    %cst_12 = arith.constant 1.000000e+00 : f32
    %22 = vector.broadcast %cst_12 : f32 to vector<128x1xf32>
    %23 = arith.mulf %15, %22 : vector<128x1xf32>
    %24 = arith.mulf %23, %19 : vector<128x1xf32>
    %cst_13 = arith.constant 2.500000e-01 : f32
    %25 = vector.broadcast %cst_13 : f32 to vector<128x1xf32>
    %26 = arith.mulf %25, %14 : vector<128x1xf32>
    %c0_14 = arith.constant 0 : index
    %c0_15 = arith.constant 0 : index
    %27 = vector.load %arg3[%c0_14, %c0_15] : memref<128x32xf32, #tpu.memory_space<vmem>>, vector<128x32xf32>
    %28 = vector.broadcast %15 : vector<128x1xf32> to vector<128x32xf32>
    %29 = arith.mulf %28, %27 : vector<128x32xf32>
    %30 = arith.addf %9, %29 : vector<128x32xf32>
    %31 = vector.broadcast %19 : vector<128x1xf32> to vector<128x32xf32>
    %32 = arith.mulf %31, %30 : vector<128x32xf32>
    %33 = arith.truncf %32 : vector<128x32xf32> to vector<128x32xbf16>
    %cst_16 = arith.constant 6.28318548 : f32
    %34 = vector.broadcast %cst_16 : f32 to vector<128x1xf32>
    %35 = arith.mulf %34, %26 : vector<128x1xf32>
    %36 = vector.broadcast %35 : vector<128x1xf32> to vector<128x32xf32>
    %37 = vector.broadcast %2 : vector<1x32xf32> to vector<128x32xf32>
    %38 = arith.mulf %36, %37 : vector<128x32xf32>
    %39 = vector.broadcast %3 : vector<1x32xf32> to vector<128x32xf32>
    %40 = arith.addf %38, %39 : vector<128x32xf32>
    %41 = math.sin %40 : vector<128x32xf32>
    %42 = arith.truncf %41 : vector<128x32xf32> to vector<128x32xbf16>
    %c0_17 = arith.constant 0 : index
    %c0_18 = arith.constant 0 : index
    %43 = vector.load %arg5[%c0_17, %c0_18] : memref<64x128xbf16, #tpu.memory_space<vmem>>, vector<32x128xbf16>
    %cst_19 = arith.constant dense<0.000000e+00> : vector<128x128xf32>
    %44 = tpu.matmul %33, %43, %cst_19 {dimension_numbers = #tpu.dot_dimension_numbers<[1], [0], [0], [1], [0, 0, 1, 1], [], []>} : vector<128x32xbf16>, vector<32x128xbf16>, vector<128x128xf32> -> vector<128x128xf32>
    %c32 = arith.constant 32 : index
    %c0_20 = arith.constant 0 : index
    %45 = vector.load %arg5[%c32, %c0_20] : memref<64x128xbf16, #tpu.memory_space<vmem>>, vector<32x128xbf16>
    %cst_21 = arith.constant dense<0.000000e+00> : vector<128x128xf32>
    %46 = tpu.matmul %42, %45, %cst_21 {dimension_numbers = #tpu.dot_dimension_numbers<[1], [0], [0], [1], [0, 0, 1, 1], [], []>} : vector<128x32xbf16>, vector<32x128xbf16>, vector<128x128xf32> -> vector<128x128xf32>
    %47 = arith.addf %44, %46 : vector<128x128xf32>
    %c0_22 = arith.constant 0 : index
    %c0_23 = arith.constant 0 : index
    %48 = vector.load %arg6[%c0_22, %c0_23] : memref<1x128xf32, #tpu.memory_space<vmem>>, vector<1x128xf32>
    %49 = vector.broadcast %48 : vector<1x128xf32> to vector<128x128xf32>
    %50 = arith.addf %47, %49 : vector<128x128xf32>
    %51 = arith.negf %50 : vector<128x128xf32>
    %52 = math.exp %51 : vector<128x128xf32>
    %cst_24 = arith.constant 1.000000e+00 : f32
    %53 = vector.broadcast %cst_24 : f32 to vector<128x128xf32>
    %54 = arith.addf %53, %52 : vector<128x128xf32>
    %55 = arith.divf %53, %54 : vector<128x128xf32>
    %56 = arith.mulf %50, %55 : vector<128x128xf32>
    %57 = arith.truncf %56 : vector<128x128xf32> to vector<128x128xbf16>
    %c0_25 = arith.constant 0 : index
    %c0_26 = arith.constant 0 : index
    %58 = vector.load %arg7[%c0_25, %c0_26] : memref<128x32xbf16, #tpu.memory_space<vmem>>, vector<128x32xbf16>
    %cst_27 = arith.constant dense<0.000000e+00> : vector<128x32xf32>
    %59 = tpu.matmul %57, %58, %cst_27 {dimension_numbers = #tpu.dot_dimension_numbers<[1], [0], [0], [1], [0, 0, 1, 1], [], []>} : vector<128x128xbf16>, vector<128x32xbf16>, vector<128x32xf32> -> vector<128x32xf32>
    %60 = vector.broadcast %4 : vector<1x32xf32> to vector<128x32xf32>
    %61 = arith.addf %59, %60 : vector<128x32xf32>
    %62 = vector.broadcast %21 : vector<128x1xf32> to vector<128x32xf32>
    %63 = arith.mulf %62, %30 : vector<128x32xf32>
    %64 = vector.broadcast %24 : vector<128x1xf32> to vector<128x32xf32>
    %65 = arith.mulf %64, %61 : vector<128x32xf32>
    %66 = arith.addf %63, %65 : vector<128x32xf32>
    %67 = arith.subf %66, %9 : vector<128x32xf32>
    %68 = arith.mulf %67, %67 : vector<128x32xf32>
    %cst_28 = arith.constant dense<0.000000e+00> : vector<128xf32>
    %69 = vector.multi_reduction <add>, %68, %cst_28 [1] : vector<128x32xf32> to vector<128xf32>
    %70 = vector.shape_cast %69 : vector<128xf32> to vector<128x1xf32>
    %cst_29 = arith.constant 3.125000e-02 : f32
    %71 = vector.broadcast %cst_29 : f32 to vector<128x1xf32>
    %72 = arith.mulf %70, %71 : vector<128x1xf32>
    %cst_30 = arith.constant -2.000000e+00 : f32
    %73 = vector.broadcast %cst_30 : f32 to vector<128x1xf32>
    %74 = arith.mulf %73, %14 : vector<128x1xf32>
    %75 = math.exp %74 : vector<128x1xf32>
    %cst_31 = arith.constant 1.000000e+00 : f32
    %76 = vector.broadcast %cst_31 : f32 to vector<128x1xf32>
    %77 = arith.addf %76, %75 : vector<128x1xf32>
    %78 = arith.mulf %72, %77 : vector<128x1xf32>
    %cst_32 = arith.constant dense<0.000000e+00> : vector<1xf32>
    %79 = vector.multi_reduction <add>, %78, %cst_32 [0] : vector<128x1xf32> to vector<1xf32>
    %80 = vector.shape_cast %79 : vector<1xf32> to vector<1x1xf32>
    %81 = vector.shape_cast %80 : vector<1x1xf32> to vector<1x1xf32>
    %82 = vector.broadcast %81 : vector<1x1xf32> to vector<1x128xf32>
    %c0_33 = arith.constant 0 : index
    %c0_34 = arith.constant 0 : index
    %83 = vector.load %arg8[%c0_33, %c0_34] : memref<1x128xf32, #tpu.memory_space<vmem>>, vector<1x128xf32>
    tpu.vector_store %arg8[%c0_33, %c0_34], %82 {strides = array<i32>} : memref<1x128xf32, #tpu.memory_space<vmem>>, vector<1x128xf32>,
    return
  }
  func.func @transform_0(%arg0: i32) -> (i32, i32) {
    %c0_i32 = arith.constant 0 : i32
    %c0_i32_0 = arith.constant 0 : i32
    return %arg0, %c0_i32 : i32, i32
  }
  func.func @transform_1(%arg0: i32) -> (i32, i32) {
    %c0_i32 = arith.constant 0 : i32
    %c0_i32_0 = arith.constant 0 : i32
    return %arg0, %c0_i32 : i32, i32
  }
  func.func @transform_2(%arg0: i32) -> (i32, i32) {
    %c0_i32 = arith.constant 0 : i32
    %c0_i32_0 = arith.constant 0 : i32
    return %arg0, %c0_i32 : i32, i32
  }
  func.func @transform_3(%arg0: i32) -> (i32, i32) {
    %c0_i32 = arith.constant 0 : i32
    %c0_i32_0 = arith.constant 0 : i32
    %c0_i32_1 = arith.constant 0 : i32
    return %c0_i32, %c0_i32_0 : i32, i32
  }
  func.func @transform_4(%arg0: i32) -> (i32, i32) {
    %c0_i32 = arith.constant 0 : i32
    %c0_i32_0 = arith.constant 0 : i32
    %c0_i32_1 = arith.constant 0 : i32
    return %c0_i32, %c0_i32_0 : i32, i32
  }
  func.func @transform_5(%arg0: i32) -> (i32, i32) {
    %c0_i32 = arith.constant 0 : i32
    %c0_i32_0 = arith.constant 0 : i32
    %c0_i32_1 = arith.constant 0 : i32
    return %c0_i32, %c0_i32_0 : i32, i32
  }
  func.func @transform_6(%arg0: i32) -> (i32, i32) {
    %c0_i32 = arith.constant 0 : i32
    %c0_i32_0 = arith.constant 0 : i32
    %c0_i32_1 = arith.constant 0 : i32
    return %c0_i32, %c0_i32_0 : i32, i32
  }
  func.func @transform_7(%arg0: i32) -> (i32, i32) {
    %c0_i32 = arith.constant 0 : i32
    %c0_i32_0 = arith.constant 0 : i32
    return %c0_i32, %arg0 : i32, i32
  }
}

</mosaic_0001>

<llo_original>
// kernel: elucidated_diffusion_forward.1
$region0: #{elucidated_diffusion_forward.1}
  #allocation0 [shape = 'u32[]', space=smem, size = 0x4, offset = 0x4, fixed_abs, tag = 'smem constant byte address 0x4 - core index']
  #allocation1 [shape = 'u32[144,128]{1,0:T(1,128)}', space=vmem, size = 0x12000, scoped, tag = 'internal scratch']
  %s0 = inlined_call_operand.vmem [shape: f32[256,32], index: 0, kind: input, shape index: {}]
  %s1 = inlined_call_operand.vmem [shape: f32[256,1], index: 1, kind: input, shape index: {}]
  %s2 = inlined_call_operand.vmem [shape: f32[256,32], index: 2, kind: input, shape index: {}]
  %s3 = inlined_call_operand.vmem [shape: f32[5,32], index: 3, kind: input, shape index: {}]
  %s4 = inlined_call_operand.vmem [shape: bf16[64,128], index: 4, kind: input, shape index: {}]
  %s5 = inlined_call_operand.vmem [shape: f32[1,128], index: 5, kind: input, shape index: {}]
  %s6 = inlined_call_operand.vmem [shape: bf16[128,32], index: 6, kind: input, shape index: {}]
  %s7 = inlined_call_operand.vmem [shape: f32[1,256], index: 7, kind: output, shape index: {}]
  %s8 = sld [smem:[#allocation0]]
  $region61: #{elucidated_diffusion_forward.1} parent=0
    _
  %s10 = ssub.s32 1, %s8
  %s11 = scalar_select 0, %s10, %s8
  loop: start=0, step=1, limit=4
  $region2: #{elucidated_diffusion_forward.1} parent=0 // loop_pre_header
    _
  $region3: #{elucidated_diffusion_forward.1} parent=0 // loop_header
    %s13 = sphi 0, %s17
    %p14 = scmp.ge.s32.totalorder %s13, 4
    %s23 = sphi 0, %s25
    %s26 = sphi 0, %s23
    %s27 = sphi 0, %s26
    %s43 = sphi 0, %s27
    %s49 = sphi 0, %s51
    %s52 = sphi 0, %s49
    %s53 = sphi 0, %s52
    %s69 = sphi 0, %s53
    %s75 = sphi 0, %s77
    %s78 = sphi 0, %s75
    %s79 = sphi 0, %s78
    %s95 = sphi 0, %s79
    %s99 = sphi 0, %s99
    %s101 = sphi 0, %s99
    %s102 = sphi 0, %s101
    %s116 = sphi 0, %s102
    %s120 = sphi 0, %s120
    %s122 = sphi 0, %s120
    %s123 = sphi 0, %s122
    %s137 = sphi 0, %s123
    %s141 = sphi 0, %s141
    %s143 = sphi 0, %s141
    %s144 = sphi 0, %s143
    %s158 = sphi 0, %s144
    %s162 = sphi 0, %s162
    %s164 = sphi 0, %s162
    %s165 = sphi 0, %s164
    %s179 = sphi 0, %s165
    %s185 = sphi 0, %s187
    %s188 = sphi 0, %s185
    %s189 = sphi 0, %s188
    %s205 = sphi 0, %s189
  $region4: #{elucidated_diffusion_forward.1} parent=0 // loop_header_branch
    %16 = sbr.rel (%p14) target = $region8
  $region5: #{elucidated_diffusion_forward.1} parent=0 // loop_body
    %s18 = ssub.s32 %s13, 1
    %s19 = ssub.s32 %s13, 2
    %s20 = sadd.s32 %s13, 1
    %s21 = ssub.s32 %s13, %s20
    %p22 = scmp.eq.s32.totalorder %s21, 0
    %s24 = sadd.s32 %s23, 1
    %s25 = scalar_select %p22, %s23, %s24
    %p28 = pneg %p22
    %p29 = scmp.eq.s32.totalorder %s13, 1
    %p30 = por %p28, %p29
    %p31 = scmp.ne.s32.totalorder %s23, %s26
    %p32 = scmp.eq.s32.totalorder %s13, 0
    %p33 = por %p31, %p32
    %p34 = scmp.ne.s32.totalorder %s23, %s26
    %p35 = scmp.eq.s32.totalorder %s18, 1
    %p36 = por %p34, %p35
    %p37 = scmp.ne.s32.totalorder %s26, %s27
    %p38 = scmp.eq.s32.totalorder %s18, 0
    %p39 = por %p37, %p38
    %p40 = scmp.ne.s32.totalorder %s26, %s27
    %p41 = scmp.eq.s32.totalorder %s19, 1
    %p42 = por %p40, %p41
    %p44 = scmp.ne.s32.totalorder %s27, %s43
    %p45 = scmp.eq.s32.totalorder %s19, 0
    %p46 = por %p44, %p45
    %s47 = ssub.s32 %s13, %s20
    %p48 = scmp.eq.s32.totalorder %s47, 0
    %s50 = sadd.s32 %s49, 1
    %s51 = scalar_select %p48, %s49, %s50
    %p54 = pneg %p48
    %p55 = scmp.eq.s32.totalorder %s13, 1
    %p56 = por %p54, %p55
    %p57 = scmp.ne.s32.totalorder %s49, %s52
    %p58 = scmp.eq.s32.totalorder %s13, 0
    %p59 = por %p57, %p58
    %p60 = scmp.ne.s32.totalorder %s49, %s52
    %p61 = scmp.eq.s32.totalorder %s18, 1
    %p62 = por %p60, %p61
    %p63 = scmp.ne.s32.totalorder %s52, %s53
    %p64 = scmp.eq.s32.totalorder %s18, 0
    %p65 = por %p63, %p64
    %p66 = scmp.ne.s32.totalorder %s52, %s53
    %p67 = scmp.eq.s32.totalorder %s19, 1
    %p68 = por %p66, %p67
    %p70 = scmp.ne.s32.totalorder %s53, %s69
    %p71 = scmp.eq.s32.totalorder %s19, 0
    %p72 = por %p70, %p71
    %s73 = ssub.s32 %s13, %s20
    %p74 = scmp.eq.s32.totalorder %s73, 0
    %s76 = sadd.s32 %s75, 1
    %s77 = scalar_select %p74, %s75, %s76
    %p80 = pneg %p74
    %p81 = scmp.eq.s32.totalorder %s13, 1
    %p82 = por %p80, %p81
    %p83 = scmp.ne.s32.totalorder %s75, %s78
    %p84 = scmp.eq.s32.totalorder %s13, 0
    %p85 = por %p83, %p84
    %p86 = scmp.ne.s32.totalorder %s75, %s78
    %p87 = scmp.eq.s32.totalorder %s18, 1
    %p88 = por %p86, %p87
    %p89 = scmp.ne.s32.totalorder %s78, %s79
    %p90 = scmp.eq.s32.totalorder %s18, 0
    %p91 = por %p89, %p90
    %p92 = scmp.ne.s32.totalorder %s78, %s79
    %p93 = scmp.eq.s32.totalorder %s19, 1
    %p94 = por %p92, %p93
    %p96 = scmp.ne.s32.totalorder %s79, %s95
    %p97 = scmp.eq.s32.totalorder %s19, 0
    %p98 = por %p96, %p97
    %s100 = sadd.s32 %s99, 1
    %p103 = scmp.eq.s32.totalorder %s13, 1
    %p104 = scmp.ne.s32.totalorder %s99, %s101
    %p105 = scmp.eq.s32.totalorder %s13, 0
    %p106 = por %p104, %p105
    %p107 = scmp.ne.s32.totalorder %s99, %s101
    %p108 = scmp.eq.s32.totalorder %s18, 1
    %p109 = por %p107, %p108
    %p110 = scmp.ne.s32.totalorder %s101, %s102
    %p111 = scmp.eq.s32.totalorder %s18, 0
    %p112 = por %p110, %p111
    %p113 = scmp.ne.s32.totalorder %s101, %s102
    %p114 = scmp.eq.s32.totalorder %s19, 1
    %p115 = por %p113, %p114
    %p117 = scmp.ne.s32.totalorder %s102, %s116
    %p118 = scmp.eq.s32.totalorder %s19, 0
    %p119 = por %p117, %p118
    %s121 = sadd.s32 %s120, 1
    %p124 = scmp.eq.s32.totalorder %s13, 1
    %p125 = scmp.ne.s32.totalorder %s120, %s122
    %p126 = scmp.eq.s32.totalorder %s13, 0
    %p127 = por %p125, %p126
    %p128 = scmp.ne.s32.totalorder %s120, %s122
    %p129 = scmp.eq.s32.totalorder %s18, 1
    %p130 = por %p128, %p129
    %p131 = scmp.ne.s32.totalorder %s122, %s123
    %p132 = scmp.eq.s32.totalorder %s18, 0
    %p133 = por %p131, %p132
    %p134 = scmp.ne.s32.totalorder %s122, %s123
    %p135 = scmp.eq.s32.totalorder %s19, 1
    %p136 = por %p134, %p135
    %p138 = scmp.ne.s32.totalorder %s123, %s137
    %p139 = scmp.eq.s32.totalorder %s19, 0
    %p140 = por %p138, %p139
    %s142 = sadd.s32 %s141, 1
    %p145 = scmp.eq.s32.totalorder %s13, 1
    %p146 = scmp.ne.s32.totalorder %s141, %s143
    %p147 = scmp.eq.s32.totalorder %s13, 0
    %p148 = por %p146, %p147
    %p149 = scmp.ne.s32.totalorder %s141, %s143
    %p150 = scmp.eq.s32.totalorder %s18, 1
    %p151 = por %p149, %p150
    %p152 = scmp.ne.s32.totalorder %s143, %s144
    %p153 = scmp.eq.s32.totalorder %s18, 0
    %p154 = por %p152, %p153
    %p155 = scmp.ne.s32.totalorder %s143, %s144
    %p156 = scmp.eq.s32.totalorder %s19, 1
    %p157 = por %p155, %p156
    %p159 = scmp.ne.s32.totalorder %s144, %s158
    %p160 = scmp.eq.s32.totalorder %s19, 0
    %p161 = por %p159, %p160
    %s163 = sadd.s32 %s162, 1
    %p166 = scmp.eq.s32.totalorder %s13, 1
    %p167 = scmp.ne.s32.totalorder %s162, %s164
    %p168 = scmp.eq.s32.totalorder %s13, 0
    %p169 = por %p167, %p168
    %p170 = scmp.ne.s32.totalorder %s162, %s164
    %p171 = scmp.eq.s32.totalorder %s18, 1
    %p172 = por %p170, %p171
    %p173 = scmp.ne.s32.totalorder %s164, %s165
    %p174 = scmp.eq.s32.totalorder %s18, 0
    %p175 = por %p173, %p174
    %p176 = scmp.ne.s32.totalorder %s164, %s165
    %p177 = scmp.eq.s32.totalorder %s19, 1
    %p178 = por %p176, %p177
    %p180 = scmp.ne.s32.totalorder %s165, %s179
    %p181 = scmp.eq.s32.totalorder %s19, 0
    %p182 = por %p180, %p181
    %s183 = ssub.s32 %s13, %s20
    %p184 = scmp.eq.s32.totalorder %s183, 0
    %s186 = sadd.s32 %s185, 1
    %s187 = scalar_select %p184, %s185, %s186
    %p190 = pneg %p184
    %p191 = scmp.eq.s32.totalorder %s13, 1
    %p192 = por %p190, %p191
    %p193 = scmp.ne.s32.totalorder %s185, %s188
    %p194 = scmp.eq.s32.totalorder %s13, 0
    %p195 = por %p193, %p194
    %p196 = scmp.ne.s32.totalorder %s185, %s188
    %p197 = scmp.eq.s32.totalorder %s18, 1
    %p198 = por %p196, %p197
    %p199 = scmp.ne.s32.totalorder %s188, %s189
    %p200 = scmp.eq.s32.totalorder %s18, 0
    %p201 = por %p199, %p200
    %p202 = scmp.ne.s32.totalorder %s188, %s189
    %p203 = scmp.eq.s32.totalorder %s19, 1
    %p204 = por %p202, %p203
    %p206 = scmp.ne.s32.totalorder %s189, %s205
    %p207 = scmp.eq.s32.totalorder %s19, 0
    %p208 = por %p206, %p207
    %p209 = scmp.le.s32.totalorder 1, %s13
    %p210 = scmp.lt.s32.totalorder %s13, 3
    %p211 = pnand %p209, %p210
    %p212 = pneg %p211
    // Predicated region
    $region9: #{elucidated_diffusion_forward.1} parent=5 // pred_check
      _
    $region10: #{elucidated_diffusion_forward.1} parent=5 // pred_check_branch
      %214 = sbr.rel (%p211) target = $region12
    $region11: #{elucidated_diffusion_forward.1} parent=5 // pred_region
      %s215 = ssub.s32 %s13, 1
      // Predicated region
      $region13: #{elucidated_diffusion_forward.1} parent=11 // pred_check
        %p216 = pneg %p112
      $region14: #{elucidated_diffusion_forward.1} parent=11 // pred_check_branch
        %218 = sbr.rel (%p216) target = $region16
      $region15: #{elucidated_diffusion_forward.1} parent=11 // pred_region
        _
      $region16: #{elucidated_diffusion_forward.1} parent=11 // pred_fallthru
        _
      // Predicated region
      $region17: #{elucidated_diffusion_forward.1} parent=11 // pred_check
        %p219 = pneg %p133
      $region18: #{elucidated_diffusion_forward.1} parent=11 // pred_check_branch
        %221 = sbr.rel (%p219) target = $region20
      $region19: #{elucidated_diffusion_forward.1} parent=11 // pred_region
        _
      $region20: #{elucidated_diffusion_forward.1} parent=11 // pred_fallthru
        _
      // Predicated region
      $region21: #{elucidated_diffusion_forward.1} parent=11 // pred_check
        %p222 = pneg %p154
      $region22: #{elucidated_diffusion_forward.1} parent=11 // pred_check_branch
        %224 = sbr.rel (%p222) target = $region24
      $region23: #{elucidated_diffusion_forward.1} parent=11 // pred_region
        _
      $region24: #{elucidated_diffusion_forward.1} parent=11 // pred_fallthru
        _
      // Predicated region
      $region25: #{elucidated_diffusion_forward.1} parent=11 // pred_check
        %p225 = pneg %p175
      $region26: #{elucidated_diffusion_forward.1} parent=11 // pred_check_branch
        %227 = sbr.rel (%p225) target = $region28
      $region27: #{elucidated_diffusion_forward.1} parent=11 // pred_region
        _
      $region28: #{elucidated_diffusion_forward.1} parent=11 // pred_fallthru
        _
    $region12: #{elucidated_diffusion_forward.1} parent=5 // pred_fallthru
      _
    %p228 = scmp.lt.s32.totalorder %s13, 2
    // Predicated region
    $region29: #{elucidated_diffusion_forward.1} parent=5 // pred_check
      %p229 = pneg %p228
    $region30: #{elucidated_diffusion_forward.1} parent=5 // pred_check_branch
      %231 = sbr.rel (%p229) target = $region32
    $region31: #{elucidated_diffusion_forward.1} parent=5 // pred_region
      // Predicated region
      $region33: #{elucidated_diffusion_forward.1} parent=31 // pred_check
        %p232 = pneg %p33
      $region34: #{elucidated_diffusion_forward.1} parent=31 // pred_check_branch
        %234 = sbr.rel (%p232) target = $region36
      $region35: #{elucidated_diffusion_forward.1} parent=31 // pred_region
        %s235 = smul.u32 16, %s13
        %p236 = scmp.lt.s32.totalorder %s235, 31
        %s237 = scalar_select %p236, %s235, 31
        %s238 = smul.addr %s237, 8
        %s239 = scalar_lea.vmem %s0, %s238
        %s240 = smul.u32 16, %s13
      $region36: #{elucidated_diffusion_forward.1} parent=31 // pred_fallthru
        _
      // Predicated region
      $region37: #{elucidated_diffusion_forward.1} parent=31 // pred_check
        %p241 = pneg %p59
      $region38: #{elucidated_diffusion_forward.1} parent=31 // pred_check_branch
        %243 = sbr.rel (%p241) target = $region40
      $region39: #{elucidated_diffusion_forward.1} parent=31 // pred_region
        %s244 = smul.u32 16, %s13
        %p245 = scmp.lt.s32.totalorder %s244, 31
        %s246 = scalar_select %p245, %s244, 31
        %s247 = smul.addr %s246, 8
        %s248 = scalar_lea.vmem %s1, %s247
        %s249 = smul.u32 16, %s13
      $region40: #{elucidated_diffusion_forward.1} parent=31 // pred_fallthru
        _
      // Predicated region
      $region41: #{elucidated_diffusion_forward.1} parent=31 // pred_check
        %p250 = pneg %p85
      $region42: #{elucidated_diffusion_forward.1} parent=31 // pred_check_branch
        %252 = sbr.rel (%p250) target = $region44
      $region43: #{elucidated_diffusion_forward.1} parent=31 // pred_region
        %s253 = smul.u32 16, %s13
        %p254 = scmp.lt.s32.totalorder %s253, 31
        %s255 = scalar_select %p254, %s253, 31
        %s256 = smul.addr %s255, 8
        %s257 = scalar_lea.vmem %s2, %s256
        %s258 = smul.u32 16, %s13
      $region44: #{elucidated_diffusion_forward.1} parent=31 // pred_fallthru
        _
    $region32: #{elucidated_diffusion_forward.1} parent=5 // pred_fallthru
      _
    %p259 = scmp.le.s32.totalorder 1, %s13
    %p260 = scmp.lt.s32.totalorder %s13, 3
    %p261 = pnand %p259, %p260
    %p262 = pneg %p261
    // Predicated region
    $region45: #{elucidated_diffusion_forward.1} parent=5 // pred_check
      _
    $region46: #{elucidated_diffusion_forward.1} parent=5 // pred_check_branch
      %264 = sbr.rel (%p261) target = $region48
    $region47: #{elucidated_diffusion_forward.1} parent=5 // pred_region
      %s265 = ssub.s32 %s13, 1
      %s266 = smul.u32 16, %s18
      %p267 = scmp.lt.s32.totalorder %s266, 31
      %s268 = scalar_select %p267, %s266, 31
      %s269 = smul.addr %s268, 8
      %s270 = scalar_lea.vmem %s0, %s269
      %p271 = pneg %p39
      %p272 = pneg %p36
      %s273 = smul.u32 16, %s18
      %p274 = scmp.lt.s32.totalorder %s273, 31
      %s275 = scalar_select %p274, %s273, 31
      %s276 = smul.addr %s275, 8
      %s277 = scalar_lea.vmem %s1, %s276
      %p278 = pneg %p65
      %p279 = pneg %p62
      %s280 = smul.u32 16, %s18
      %p281 = scmp.lt.s32.totalorder %s280, 31
      %s282 = scalar_select %p281, %s280, 31
      %s283 = smul.addr %s282, 8
      %s284 = scalar_lea.vmem %s2, %s283
      %p285 = pneg %p91
      %p286 = pneg %p88
      %p287 = pneg %p112
      %p288 = pneg %p109
      %p289 = pneg %p133
      %p290 = pneg %p130
      %p291 = pneg %p154
      %p292 = pneg %p151
      %p293 = pneg %p175
      %p294 = pneg %p172
      %p295 = pneg %p201
      %p296 = pneg %p198
      %p297 = scmp.lt.s32.totalorder %s18, 1
      %s298 = scalar_select %p297, %s18, 1
      %s299 = scalar_lea.vmem %s7, %s298
      %s300 = smul.u32 16, %s18
      %p301 = scmp.lt.s32.totalorder %s300, 31
      %s302 = scalar_select %p301, %s300, 31
      %s303 = smul.addr %s302, 8
      %s304 = scalar_lea.vmem %s0, %s303
      %s305 = smul.u32 16, %s18
      %s306 = smul.u32 16, %s18
      %p307 = scmp.lt.s32.totalorder %s306, 31
      %s308 = scalar_select %p307, %s306, 31
      %s309 = smul.addr %s308, 8
      %s310 = scalar_lea.vmem %s1, %s309
      %s311 = smul.u32 16, %s18
      %s312 = smul.u32 16, %s18
      %p313 = scmp.lt.s32.totalorder %s312, 31
      %s314 = scalar_select %p313, %s312, 31
      %s315 = smul.addr %s314, 8
      %s316 = scalar_lea.vmem %s2, %s315
      %s317 = smul.u32 16, %s18
      %p318 = scmp.lt.s32.totalorder %s18, 1
      %s319 = scalar_select %p318, %s18, 1
      %s320 = scalar_lea.vmem %s7, %s319
      %v322 = vld [vmem:[%s3] sm:$0x1]
      %v323 = vld [vmem:[%s3 + $0x1] sm:$0x1]
      %v324 = vld [vmem:[%s3 + $0x2] sm:$0x1]
      %v325 = vld [vmem:[%s3 + $0x3] sm:$0x1]
      %v326 = vld [vmem:[%s3 + $0x4] sm:$0x1]
      %v327 = vld [vmem:[%s304] sm:$0xff]
      %v328 = vld [vmem:[%s304 + $0x8] sm:$0xff]
      %v329 = vld [vmem:[%s304 + $0x10] sm:$0xff]
      %v330 = vld [vmem:[%s304 + $0x18] sm:$0xff]
      %v331 = vld [vmem:[%s304 + $0x20] sm:$0xff]
      %v332 = vld [vmem:[%s304 + $0x28] sm:$0xff]
      %v333 = vld [vmem:[%s304 + $0x30] sm:$0xff]
      %v334 = vld [vmem:[%s304 + $0x38] sm:$0xff]
      %v335 = vld [vmem:[%s304 + $0x40] sm:$0xff]
      %v336 = vld [vmem:[%s304 + $0x48] sm:$0xff]
      %v337 = vld [vmem:[%s304 + $0x50] sm:$0xff]
      %v338 = vld [vmem:[%s304 + $0x58] sm:$0xff]
      %v339 = vld [vmem:[%s304 + $0x60] sm:$0xff]
      %v340 = vld [vmem:[%s304 + $0x68] sm:$0xff]
      %v341 = vld [vmem:[%s304 + $0x70] sm:$0xff]
      %v342 = vld [vmem:[%s304 + $0x78] sm:$0xff]
      %v343 = vlaneseq
      %v344 = vshrl.u32 %v343, 7
      %v345 = vsub.s32 0, %v344
      %v346 = vrot.slane %v322, %v345
      %v347 = vsub.f32 %v327, %v346
      %v348 = vsub.f32 %v328, %v346
      %v349 = vsub.f32 %v329, %v346
      %v350 = vsub.f32 %v330, %v346
      %v351 = vsub.f32 %v331, %v346
      %v352 = vsub.f32 %v332, %v346
      %v353 = vsub.f32 %v333, %v346
      %v354 = vsub.f32 %v334, %v346
      %v355 = vsub.f32 %v335, %v346
      %v356 = vsub.f32 %v336, %v346
      %v357 = vsub.f32 %v337, %v346
      %v358 = vsub.f32 %v338, %v346
      %v359 = vsub.f32 %v339, %v346
      %v360 = vsub.f32 %v340, %v346
      %v361 = vsub.f32 %v341, %v346
      %v362 = vsub.f32 %v342, %v346
      %v363 = vlaneseq
      %v364 = vshrl.u32 %v363, 7
      %v365 = vsub.s32 0, %v364
      %v366 = vrot.slane %v323, %v365
      %v367 = vmul.f32 %v347, %v366
      %v368 = vmul.f32 %v348, %v366
      %v369 = vmul.f32 %v349, %v366
      %v370 = vmul.f32 %v350, %v366
      %v371 = vmul.f32 %v351, %v366
      %v372 = vmul.f32 %v352, %v366
      %v373 = vmul.f32 %v353, %v366
      %v374 = vmul.f32 %v354, %v366
      %v375 = vmul.f32 %v355, %v366
      %v376 = vmul.f32 %v356, %v366
      %v377 = vmul.f32 %v357, %v366
      %v378 = vmul.f32 %v358, %v366
      %v379 = vmul.f32 %v359, %v366
      %v380 = vmul.f32 %v360, %v366
      %v381 = vmul.f32 %v361, %v366
      %v382 = vmul.f32 %v362, %v366
      %v383 = vld [vmem:[%s310] sm:$0xff]
      %v384 = vld [vmem:[%s310 + $0x8] sm:$0xff]
      %v385 = vld [vmem:[%s310 + $0x10] sm:$0xff]
      %v386 = vld [vmem:[%s310 + $0x18] sm:$0xff]
      %v387 = vld [vmem:[%s310 + $0x20] sm:$0xff]
      %v388 = vld [vmem:[%s310 + $0x28] sm:$0xff]
      %v389 = vld [vmem:[%s310 + $0x30] sm:$0xff]
      %v390 = vld [vmem:[%s310 + $0x38] sm:$0xff]
      %v391 = vld [vmem:[%s310 + $0x40] sm:$0xff]
      %v392 = vld [vmem:[%s310 + $0x48] sm:$0xff]
      %v393 = vld [vmem:[%s310 + $0x50] sm:$0xff]
      %v394 = vld [vmem:[%s310 + $0x58] sm:$0xff]
      %v395 = vld [vmem:[%s310 + $0x60] sm:$0xff]
      %v396 = vld [vmem:[%s310 + $0x68] sm:$0xff]
      %v397 = vld [vmem:[%s310 + $0x70] sm:$0xff]
      %v398 = vld [vmem:[%s310 + $0x78] sm:$0xff]
      %v399 = vmul.f32 %v383, 1.2
      %v400 = vmul.f32 %v384, 1.2
      %v401 = vmul.f32 %v385, 1.2
      %v402 = vmul.f32 %v386, 1.2
      %v403 = vmul.f32 %v387, 1.2
      %v404 = vmul.f32 %v388, 1.2
      %v405 = vmul.f32 %v389, 1.2
      %v406 = vmul.f32 %v390, 1.2
      %v407 = vmul.f32 %v391, 1.2
      %v408 = vmul.f32 %v392, 1.2
      %v409 = vmul.f32 %v393, 1.2
      %v410 = vmul.f32 %v394, 1.2
      %v411 = vmul.f32 %v395, 1.2
      %v412 = vmul.f32 %v396, 1.2
      %v413 = vmul.f32 %v397, 1.2
      %v414 = vmul.f32 %v398, 1.2
      %v415 = vadd.f32 %v399, -1.2
      %v416 = vadd.f32 %v400, -1.2
      %v417 = vadd.f32 %v401, -1.2
      %v418 = vadd.f32 %v402, -1.2
      %v419 = vadd.f32 %v403, -1.2
      %v420 = vadd.f32 %v404, -1.2
      %v421 = vadd.f32 %v405, -1.2
      %v422 = vadd.f32 %v406, -1.2
      %v423 = vadd.f32 %v407, -1.2
      %v424 = vadd.f32 %v408, -1.2
      %v425 = vadd.f32 %v409, -1.2
      %v426 = vadd.f32 %v410, -1.2
      %v427 = vadd.f32 %v411, -1.2
      %v428 = vadd.f32 %v412, -1.2
      %v429 = vadd.f32 %v413, -1.2
      %v430 = vadd.f32 %v414, -1.2
      %v431 = vmul.f32 %v415, 1.442695
      %v432 = vpow.pop %v431
      %v433 = vmul.f32 %v416, 1.442695
      %v434 = vpow.pop %v433
      %v435 = vmul.f32 %v417, 1.442695
      %v436 = vpow.pop %v435
      %v437 = vmul.f32 %v418, 1.442695
      %v438 = vpow.pop %v437
      %v439 = vmul.f32 %v419, 1.442695
      %v440 = vpow.pop %v439
      %v441 = vmul.f32 %v420, 1.442695
      %v442 = vpow.pop %v441
      %v443 = vmul.f32 %v421, 1.442695
      %v444 = vpow.pop %v443
      %v445 = vmul.f32 %v422, 1.442695
      %v446 = vpow.pop %v445
      %v447 = vmul.f32 %v423, 1.442695
      %v448 = vpow.pop %v447
      %v449 = vmul.f32 %v424, 1.442695
      %v450 = vpow.pop %v449
      %v451 = vmul.f32 %v425, 1.442695
      %v452 = vpow.pop %v451
      %v453 = vmul.f32 %v426, 1.442695
      %v454 = vpow.pop %v453
      %v455 = vmul.f32 %v427, 1.442695
      %v456 = vpow.pop %v455
      %v457 = vmul.f32 %v428, 1.442695
      %v458 = vpow.pop %v457
      %v459 = vmul.f32 %v429, 1.442695
      %v460 = vpow.pop %v459
      %v461 = vmul.f32 %v430, 1.442695
      %v462 = vpow.pop %v461
      %v463 = vmul.f32 %v432, %v432
      %v464 = vmul.f32 %v434, %v434
      %v465 = vmul.f32 %v436, %v436
      %v466 = vmul.f32 %v438, %v438
      %v467 = vmul.f32 %v440, %v440
      %v468 = vmul.f32 %v442, %v442
      %v469 = vmul.f32 %v444, %v444
      %v470 = vmul.f32 %v446, %v446
      %v471 = vmul.f32 %v448, %v448
      %v472 = vmul.f32 %v450, %v450
      %v473 = vmul.f32 %v452, %v452
      %v474 = vmul.f32 %v454, %v454
      %v475 = vmul.f32 %v456, %v456
      %v476 = vmul.f32 %v458, %v458
      %v477 = vmul.f32 %v460, %v460
      %v478 = vmul.f32 %v462, %v462
      %v479 = vadd.f32 %v463, 1.0
      %v480 = vadd.f32 %v464, 1.0
      %v481 = vadd.f32 %v465, 1.0
      %v482 = vadd.f32 %v466, 1.0
      %v483 = vadd.f32 %v467, 1.0
      %v484 = vadd.f32 %v468, 1.0
      %v485 = vadd.f32 %v469, 1.0
      %v486 = vadd.f32 %v470, 1.0
      %v487 = vadd.f32 %v471, 1.0
      %v488 = vadd.f32 %v472, 1.0
      %v489 = vadd.f32 %v473, 1.0
      %v490 = vadd.f32 %v474, 1.0
      %v491 = vadd.f32 %v475, 1.0
      %v492 = vadd.f32 %v476, 1.0
      %v493 = vadd.f32 %v477, 1.0
      %v494 = vadd.f32 %v478, 1.0
      %v495 = vrsqrt.pop %v479
      %v496 = vrsqrt.pop %v480
      %v497 = vrsqrt.pop %v481
      %v498 = vrsqrt.pop %v482
      %v499 = vrsqrt.pop %v483
      %v500 = vrsqrt.pop %v484
      %v501 = vrsqrt.pop %v485
      %v502 = vrsqrt.pop %v486
      %v503 = vrsqrt.pop %v487
      %v504 = vrsqrt.pop %v488
      %v505 = vrsqrt.pop %v489
      %v506 = vrsqrt.pop %v490
      %v507 = vrsqrt.pop %v491
      %v508 = vrsqrt.pop %v492
      %v509 = vrsqrt.pop %v493
      %v510 = vrsqrt.pop %v494
      %v511 = vrcp.pop %v479
      %v512 = vmul.f32 1.0, %v511
      %v513 = vrcp.pop %v480
      %v514 = vmul.f32 1.0, %v513
      %v515 = vrcp.pop %v481
      %v516 = vmul.f32 1.0, %v515
      %v517 = vrcp.pop %v482
      %v518 = vmul.f32 1.0, %v517
      %v519 = vrcp.pop %v483
      %v520 = vmul.f32 1.0, %v519
      %v521 = vrcp.pop %v484
      %v522 = vmul.f32 1.0, %v521
      %v523 = vrcp.pop %v485
      %v524 = vmul.f32 1.0, %v523
      %v525 = vrcp.pop %v486
      %v526 = vmul.f32 1.0, %v525
      %v527 = vrcp.pop %v487
      %v528 = vmul.f32 1.0, %v527
      %v529 = vrcp.pop %v488
      %v530 = vmul.f32 1.0, %v529
      %v531 = vrcp.pop %v489
      %v532 = vmul.f32 1.0, %v531
      %v533 = vrcp.pop %v490
      %v534 = vmul.f32 1.0, %v533
      %v535 = vrcp.pop %v491
      %v536 = vmul.f32 1.0, %v535
      %v537 = vrcp.pop %v492
      %v538 = vmul.f32 1.0, %v537
      %v539 = vrcp.pop %v493
      %v540 = vmul.f32 1.0, %v539
      %v541 = vrcp.pop %v494
      %v542 = vmul.f32 1.0, %v541
      %v543 = vmul.f32 %v432, %v495
      %v544 = vmul.f32 %v434, %v496
      %v545 = vmul.f32 %v436, %v497
      %v546 = vmul.f32 %v438, %v498
      %v547 = vmul.f32 %v440, %v499
      %v548 = vmul.f32 %v442, %v500
      %v549 = vmul.f32 %v444, %v501
      %v550 = vmul.f32 %v446, %v502
      %v551 = vmul.f32 %v448, %v503
      %v552 = vmul.f32 %v450, %v504
      %v553 = vmul.f32 %v452, %v505
      %v554 = vmul.f32 %v454, %v506
      %v555 = vmul.f32 %v456, %v507
      %v556 = vmul.f32 %v458, %v508
      %v557 = vmul.f32 %v460, %v509
      %v558 = vmul.f32 %v462, %v510
      %v559 = vmul.f32 %v415, 0.25
      %v560 = vmul.f32 %v416, 0.25
      %v561 = vmul.f32 %v417, 0.25
      %v562 = vmul.f32 %v418, 0.25
      %v563 = vmul.f32 %v419, 0.25
      %v564 = vmul.f32 %v420, 0.25
      %v565 = vmul.f32 %v421, 0.25
      %v566 = vmul.f32 %v422, 0.25
      %v567 = vmul.f32 %v423, 0.25
      %v568 = vmul.f32 %v424, 0.25
      %v569 = vmul.f32 %v425, 0.25
      %v570 = vmul.f32 %v426, 0.25
      %v571 = vmul.f32 %v427, 0.25
      %v572 = vmul.f32 %v428, 0.25
      %v573 = vmul.f32 %v429, 0.25
      %v574 = vmul.f32 %v430, 0.25
      %v575 = vld [vmem:[%s316] sm:$0xff]
      %v576 = vld [vmem:[%s316 + $0x8] sm:$0xff]
      %v577 = vld [vmem:[%s316 + $0x10] sm:$0xff]
      %v578 = vld [vmem:[%s316 + $0x18] sm:$0xff]
      %v579 = vld [vmem:[%s316 + $0x20] sm:$0xff]
      %v580 = vld [vmem:[%s316 + $0x28] sm:$0xff]
      %v581 = vld [vmem:[%s316 + $0x30] sm:$0xff]
      %v582 = vld [vmem:[%s316 + $0x38] sm:$0xff]
      %v583 = vld [vmem:[%s316 + $0x40] sm:$0xff]
      %v584 = vld [vmem:[%s316 + $0x48] sm:$0xff]
      %v585 = vld [vmem:[%s316 + $0x50] sm:$0xff]
      %v586 = vld [vmem:[%s316 + $0x58] sm:$0xff]
      %v587 = vld [vmem:[%s316 + $0x60] sm:$0xff]
      %v588 = vld [vmem:[%s316 + $0x68] sm:$0xff]
      %v589 = vld [vmem:[%s316 + $0x70] sm:$0xff]
      %v590 = vld [vmem:[%s316 + $0x78] sm:$0xff]
      %592 = vset.pattern.permute.xlu0 0
      %593 = vperm.xlu0 %592, %v432
      %v594 = vpop.permute.xlu0 %593
      %597 = vset.pattern.permute.xlu0 0
      %598 = vperm.xlu0 %597, %v434
      %v599 = vpop.permute.xlu0 %598
      %602 = vset.pattern.permute.xlu0 0
      %603 = vperm.xlu0 %602, %v436
      %v604 = vpop.permute.xlu0 %603
      %607 = vset.pattern.permute.xlu0 0
      %608 = vperm.xlu0 %607, %v438
      %v609 = vpop.permute.xlu0 %608
      %612 = vset.pattern.permute.xlu0 0
      %613 = vperm.xlu0 %612, %v440
      %v614 = vpop.permute.xlu0 %613
      %617 = vset.pattern.permute.xlu0 0
      %618 = vperm.xlu0 %617, %v442
      %v619 = vpop.permute.xlu0 %618
      %622 = vset.pattern.permute.xlu0 0
      %623 = vperm.xlu0 %622, %v444
      %v624 = vpop.permute.xlu0 %623
      %627 = vset.pattern.permute.xlu0 0
      %628 = vperm.xlu0 %627, %v446
      %v629 = vpop.permute.xlu0 %628
      %632 = vset.pattern.permute.xlu0 0
      %633 = vperm.xlu0 %632, %v448
      %v634 = vpop.permute.xlu0 %633
      %637 = vset.pattern.permute.xlu0 0
      %638 = vperm.xlu0 %637, %v450
      %v639 = vpop.permute.xlu0 %638
      %642 = vset.pattern.permute.xlu0 0
      %643 = vperm.xlu0 %642, %v452
      %v644 = vpop.permute.xlu0 %643
      %647 = vset.pattern.permute.xlu0 0
      %648 = vperm.xlu0 %647, %v454
      %v649 = vpop.permute.xlu0 %648
      %652 = vset.pattern.permute.xlu0 0
      %653 = vperm.xlu0 %652, %v456
      %v654 = vpop.permute.xlu0 %653
      %657 = vset.pattern.permute.xlu0 0
      %658 = vperm.xlu0 %657, %v458
      %v659 = vpop.permute.xlu0 %658
      %662 = vset.pattern.permute.xlu0 0
      %663 = vperm.xlu0 %662, %v460
      %v664 = vpop.permute.xlu0 %663
      %667 = vset.pattern.permute.xlu0 0
      %668 = vperm.xlu0 %667, %v462
      %v669 = vpop.permute.xlu0 %668
      %v671 = vmul.f32 %v594, %v575
      %v672 = vmul.f32 %v599, %v576
      %v673 = vmul.f32 %v604, %v577
      %v674 = vmul.f32 %v609, %v578
      %v675 = vmul.f32 %v614, %v579
      %v676 = vmul.f32 %v619, %v580
      %v677 = vmul.f32 %v624, %v581
      %v678 = vmul.f32 %v629, %v582
      %v679 = vmul.f32 %v634, %v583
      %v680 = vmul.f32 %v639, %v584
      %v681 = vmul.f32 %v644, %v585
      %v682 = vmul.f32 %v649, %v586
      %v683 = vmul.f32 %v654, %v587
      %v684 = vmul.f32 %v659, %v588
      %v685 = vmul.f32 %v664, %v589
      %v686 = vmul.f32 %v669, %v590
      %v687 = vadd.f32 %v367, %v671
      %v688 = vadd.f32 %v368, %v672
      %v689 = vadd.f32 %v369, %v673
      %v690 = vadd.f32 %v370, %v674
      %v691 = vadd.f32 %v371, %v675
      %v692 = vadd.f32 %v372, %v676
      %v693 = vadd.f32 %v373, %v677
      %v694 = vadd.f32 %v374, %v678
      %v695 = vadd.f32 %v375, %v679
      %v696 = vadd.f32 %v376, %v680
      %v697 = vadd.f32 %v377, %v681
      %v698 = vadd.f32 %v378, %v682
      %v699 = vadd.f32 %v379, %v683
      %v700 = vadd.f32 %v380, %v684
      %v701 = vadd.f32 %v381, %v685
      %v702 = vadd.f32 %v382, %v686
      %704 = vset.pattern.permute.xlu0 0
      %705 = vperm.xlu0 %704, %v495
      %v706 = vpop.permute.xlu0 %705
      %709 = vset.pattern.permute.xlu0 0
      %710 = vperm.xlu0 %709, %v496
      %v711 = vpop.permute.xlu0 %710
      %714 = vset.pattern.permute.xlu0 0
      %715 = vperm.xlu0 %714, %v497
      %v716 = vpop.permute.xlu0 %715
      %719 = vset.pattern.permute.xlu0 0
      %720 = vperm.xlu0 %719, %v498
      %v721 = vpop.permute.xlu0 %720
      %724 = vset.pattern.permute.xlu0 0
      %725 = vperm.xlu0 %724, %v499
      %v726 = vpop.permute.xlu0 %725
      %729 = vset.pattern.permute.xlu0 0
      %730 = vperm.xlu0 %729, %v500
      %v731 = vpop.permute.xlu0 %730
      %734 = vset.pattern.permute.xlu0 0
      %735 = vperm.xlu0 %734, %v501
      %v736 = vpop.permute.xlu0 %735
      %739 = vset.pattern.permute.xlu0 0
      %740 = vperm.xlu0 %739, %v502
      %v741 = vpop.permute.xlu0 %740
      %744 = vset.pattern.permute.xlu0 0
      %745 = vperm.xlu0 %744, %v503
      %v746 = vpop.permute.xlu0 %745
      %749 = vset.pattern.permute.xlu0 0
      %750 = vperm.xlu0 %749, %v504
      %v751 = vpop.permute.xlu0 %750
      %754 = vset.pattern.permute.xlu0 0
      %755 = vperm.xlu0 %754, %v505
      %v756 = vpop.permute.xlu0 %755
      %759 = vset.pattern.permute.xlu0 0
      %760 = vperm.xlu0 %759, %v506
      %v761 = vpop.permute.xlu0 %760
      %764 = vset.pattern.permute.xlu0 0
      %765 = vperm.xlu0 %764, %v507
      %v766 = vpop.permute.xlu0 %765
      %769 = vset.pattern.permute.xlu0 0
      %770 = vperm.xlu0 %769, %v508
      %v771 = vpop.permute.xlu0 %770
      %774 = vset.pattern.permute.xlu0 0
      %775 = vperm.xlu0 %774, %v509
      %v776 = vpop.permute.xlu0 %775
      %779 = vset.pattern.permute.xlu0 0
      %780 = vperm.xlu0 %779, %v510
      %v781 = vpop.permute.xlu0 %780
      %v783 = vmul.f32 %v706, %v687
      %v784 = vmul.f32 %v711, %v688
      %v785 = vmul.f32 %v716, %v689
      %v786 = vmul.f32 %v721, %v690
      %v787 = vmul.f32 %v726, %v691
      %v788 = vmul.f32 %v731, %v692
      %v789 = vmul.f32 %v736, %v693
      %v790 = vmul.f32 %v741, %v694
      %v791 = vmul.f32 %v746, %v695
      %v792 = vmul.f32 %v751, %v696
      %v793 = vmul.f32 %v756, %v697
      %v794 = vmul.f32 %v761, %v698
      %v795 = vmul.f32 %v766, %v699
      %v796 = vmul.f32 %v771, %v700
      %v797 = vmul.f32 %v776, %v701
      %v798 = vmul.f32 %v781, %v702
      %v799 = vpack.c.bf16 %v784, %v783
      %v800 = vpack.c.bf16 %v786, %v785
      %v801 = vpack.c.bf16 %v788, %v787
      %v802 = vpack.c.bf16 %v790, %v789
      %v803 = vpack.c.bf16 %v792, %v791
      %v804 = vpack.c.bf16 %v794, %v793
      %v805 = vpack.c.bf16 %v796, %v795
      %v806 = vpack.c.bf16 %v798, %v797
      %v807 = vmul.f32 %v559, 6.2831855
      %v808 = vmul.f32 %v560, 6.2831855
      %v809 = vmul.f32 %v561, 6.2831855
      %v810 = vmul.f32 %v562, 6.2831855
      %v811 = vmul.f32 %v563, 6.2831855
      %v812 = vmul.f32 %v564, 6.2831855
      %v813 = vmul.f32 %v565, 6.2831855
      %v814 = vmul.f32 %v566, 6.2831855
      %v815 = vmul.f32 %v567, 6.2831855
      %v816 = vmul.f32 %v568, 6.2831855
      %v817 = vmul.f32 %v569, 6.2831855
      %v818 = vmul.f32 %v570, 6.2831855
      %v819 = vmul.f32 %v571, 6.2831855
      %v820 = vmul.f32 %v572, 6.2831855
      %v821 = vmul.f32 %v573, 6.2831855
      %v822 = vmul.f32 %v574, 6.2831855
      %824 = vset.pattern.permute.xlu0 0
      %825 = vperm.xlu0 %824, %v807
      %v826 = vpop.permute.xlu0 %825
      %829 = vset.pattern.permute.xlu0 0
      %830 = vperm.xlu0 %829, %v808
      %v831 = vpop.permute.xlu0 %830
      %834 = vset.pattern.permute.xlu0 0
      %835 = vperm.xlu0 %834, %v809
      %v836 = vpop.permute.xlu0 %835
      %839 = vset.pattern.permute.xlu0 0
      %840 = vperm.xlu0 %839, %v810
      %v841 = vpop.permute.xlu0 %840
      %844 = vset.pattern.permute.xlu0 0
      %845 = vperm.xlu0 %844, %v811
      %v846 = vpop.permute.xlu0 %845
      %849 = vset.pattern.permute.xlu0 0
      %850 = vperm.xlu0 %849, %v812
      %v851 = vpop.permute.xlu0 %850
      %854 = vset.pattern.permute.xlu0 0
      %855 = vperm.xlu0 %854, %v813
      %v856 = vpop.permute.xlu0 %855
      %859 = vset.pattern.permute.xlu0 0
      %860 = vperm.xlu0 %859, %v814
      %v861 = vpop.permute.xlu0 %860
      %864 = vset.pattern.permute.xlu0 0
      %865 = vperm.xlu0 %864, %v815
      %v866 = vpop.permute.xlu0 %865
      %869 = vset.pattern.permute.xlu0 0
      %870 = vperm.xlu0 %869, %v816
      %v871 = vpop.permute.xlu0 %870
      %874 = vset.pattern.permute.xlu0 0
      %875 = vperm.xlu0 %874, %v817
      %v876 = vpop.permute.xlu0 %875
      %879 = vset.pattern.permute.xlu0 0
      %880 = vperm.xlu0 %879, %v818
      %v881 = vpop.permute.xlu0 %880
      %884 = vset.pattern.permute.xlu0 0
      %885 = vperm.xlu0 %884, %v819
      %v886 = vpop.permute.xlu0 %885
      %889 = vset.pattern.permute.xlu0 0
      %890 = vperm.xlu0 %889, %v820
      %v891 = vpop.permute.xlu0 %890
      %894 = vset.pattern.permute.xlu0 0
      %895 = vperm.xlu0 %894, %v821
      %v896 = vpop.permute.xlu0 %895
      %899 = vset.pattern.permute.xlu0 0
      %900 = vperm.xlu0 %899, %v822
      %v901 = vpop.permute.xlu0 %900
      %v903 = vlaneseq
      %v904 = vshrl.u32 %v903, 7
      %v905 = vsub.s32 0, %v904
      %v906 = vrot.slane %v324, %v905
      %v907 = vmul.f32 %v826, %v906
      %v908 = vmul.f32 %v831, %v906
      %v909 = vmul.f32 %v836, %v906
      %v910 = vmul.f32 %v841, %v906
      %v911 = vmul.f32 %v846, %v906
      %v912 = vmul.f32 %v851, %v906
      %v913 = vmul.f32 %v856, %v906
      %v914 = vmul.f32 %v861, %v906
      %v915 = vmul.f32 %v866, %v906
      %v916 = vmul.f32 %v871, %v906
      %v917 = vmul.f32 %v876, %v906
      %v918 = vmul.f32 %v881, %v906
      %v919 = vmul.f32 %v886, %v906
      %v920 = vmul.f32 %v891, %v906
      %v921 = vmul.f32 %v896, %v906
      %v922 = vmul.f32 %v901, %v906
      %v923 = vlaneseq
      %v924 = vshrl.u32 %v923, 7
      %v925 = vsub.s32 0, %v924
      %v926 = vrot.slane %v325, %v925
      %v927 = vadd.f32 %v907, %v926
      %v928 = vadd.f32 %v908, %v926
      %v929 = vadd.f32 %v909, %v926
      %v930 = vadd.f32 %v910, %v926
      %v931 = vadd.f32 %v911, %v926
      %v932 = vadd.f32 %v912, %v926
      %v933 = vadd.f32 %v913, %v926
      %v934 = vadd.f32 %v914, %v926
      %v935 = vadd.f32 %v915, %v926
      %v936 = vadd.f32 %v916, %v926
      %v937 = vadd.f32 %v917, %v926
      %v938 = vadd.f32 %v918, %v926
      %v939 = vadd.f32 %v919, %v926
      %v940 = vadd.f32 %v920, %v926
      %v941 = vadd.f32 %v921, %v926
      %v942 = vadd.f32 %v922, %v926
      %v943 = vand.u32 2147483647, %v927
      %vm944 = vcmp.le.f32.partialorder %v943, 0.7853982
      %vm945 = vcmp.lt.s32.totalorder %v927, 0
      %v946 = vand.u32 %v927, 2139095040
      %v947 = vshrl.u32 %v946, 23
      %v948 = vsub.s32 %v947, 127
      %v949 = vand.u32 2147483647, %v927
      %v950 = vand.u32 %v949, 8388607
      %v951 = vor.u32 %v950, 8388608
      %v952 = vsub.s32 0, %v951
      %v953 = vadd.s32 %v948, 1
      %vm954 = vcmp.gt.s32.totalorder %v953, 0
      %v955 = vsel %vm954, %v953, 0
      %v956 = vshrl.u32 %v955, 5
      %v957 = vand.u32 %v955, 31
      %v958 = vsub.s32 32, %v957
      %v959 = vshrl.u32 683565275, %v958
      %v960 = vshll.u32 683565275, %v957
      %v961 = vshrl.u32 2475754826, %v958
      %v962 = vor.u32 %v960, %v961
      %v963 = vshll.u32 2475754826, %v957
      %v964 = vshrl.u32 2131351028, %v958
      %v965 = vor.u32 %v963, %v964
      %v966 = vshll.u32 2131351028, %v957
      %v967 = vshrl.u32 2102212464, %v958
      %v968 = vor.u32 %v966, %v967
      %v969 = vshll.u32 2102212464, %v957
      %v970 = vshrl.u32 920167782, %v958
      %v971 = vor.u32 %v969, %v970
      %v972 = vshll.u32 920167782, %v957
      %v973 = vshrl.u32 1326507024, %v958
      %v974 = vor.u32 %v972, %v973
      %vm975 = vcmp.lt.s32.totalorder %v956, 1
      %vm976 = vcmp.lt.s32.totalorder %v956, 2
      %vm977 = vcmp.lt.s32.totalorder %v956, 3
      %vm978 = vcmp.lt.s32.totalorder %v956, 4
      %v979 = vsel %vm975, %v959, %v962
      %v980 = vsel %vm978, %v968, 2102212464
      %v981 = vsel %vm977, %v965, %v980
      %v982 = vsel %vm976, %v979, %v981
      %v983 = vsel %vm975, %v962, %v965
      %v984 = vsel %vm978, %v971, 920167782
      %v985 = vsel %vm977, %v968, %v984
      %v986 = vsel %vm976, %v983, %v985
      %v987 = vsel %vm975, %v965, %v968
      %v988 = vsel %vm978, %v974, 1326507024
      %v989 = vsel %vm977, %v971, %v988
      %v990 = vsel %vm976, %v987, %v989
      %v991 = vshll.u32 %v951, 8
      %v992 = vmul.u32.u64.compose %v991, %v990
      %v993 = vextract.low.u32 %v992
      %v994 = vextract.high.u32 %v992
      %v995 = vmul.u32.u64.compose %v991, %v986
      %v996 = vextract.low.u32 %v995
      %v997 = vextract.high.u32 %v995
      %v998 = vmul.u32 %v991, %v982
      %v999 = vadd.s32 %v994, %v996
      %vm1000 = vc.u32 %v994, %v996
      %v1001 = vadd.s32 %v997, 1
      %v1002 = vsel %vm1000, %v1001, %v997
      %v1003 = vadd.s32 %v998, %v1002
      %v1004 = vadd.s32 %v1003, 536870912
      %v1005 = vshrl.u32 %v1004, 30
      %v1006 = vshll.u32 %v1005, 30
      %v1007 = vsub.s32 %v1003, %v1006
      %vm1008 = vcmp.lt.s32.totalorder %v1007, 0
      %v1009 = vsub.s32 0, %v1007
      %v1010 = vsel %vm1008, %v1009, %v1007
      %v1011 = vclz %v1010
      %v1012 = vsub.s32 %v1011, 2
      %vm1013 = vcmp.gt.s32.totalorder 0, %v1012
      %v1014 = vsel %vm1013, 0, %v1012
      %v1015 = vsub.s32 32, %v1014
      %v1016 = vshll.u32 %v1007, %v1014
      %v1017 = vshrl.u32 %v999, %v1015
      %v1018 = vor.u32 %v1016, %v1017
      %v1019 = vsub.s32 4294967266, %v1014
      %v1020 = vadd.s32 %v1019, 127
      %v1021 = vshll.u32 %v1020, 23
      %v1022 = vor.u32 4788187, %v1021
      %v1023 = vand.u32 2147483647, %v1022
      %v1025 = vcvt.s32.f32 %v1018
      %v1026 = vmul.f32 %v1025, %v1023
      %v1027 = vxor.u32 %v1026, 2147483648
      %v1028 = vsel %vm945, %v1027, %v1026
      %v1029 = vsub.s32 4, %v1005
      %v1030 = vsel %vm945, %v1029, %v1005
      %v1031 = vsel %vm944, %v927, %v1028
      %v1032 = vsel %vm944, 0, %v1030
      %v1033 = vcosq.f32.pop %v1031
      %v1034 = vsinq.f32.pop %v1031
      %vm1035 = vweird.f32 %v927
      %v1036 = vadd.s32 %v1032, 3
      %v1037 = vand.u32 %v1036, 3
      %vm1038 = vcmp.lt.s32.totalorder %v1037, 2
      %vm1039 = vcmp.eq.s32.totalorder %v1037, 0
      %v1040 = vxor.u32 %v1034, 2147483648
      %v1041 = vsel %vm1039, %v1033, %v1040
      %vm1042 = vcmp.eq.s32.totalorder %v1037, 2
      %v1043 = vxor.u32 %v1033, 2147483648
      %v1044 = vsel %vm1042, %v1043, %v1034
      %v1045 = vsel %vm1038, %v1041, %v1044
      %v1046 = vsel %vm1035, nan, %v1045
      %v1047 = vand.u32 2147483647, %v928
      %vm1048 = vcmp.le.f32.partialorder %v1047, 0.7853982
      %vm1049 = vcmp.lt.s32.totalorder %v928, 0
      %v1050 = vand.u32 %v928, 2139095040
      %v1051 = vshrl.u32 %v1050, 23
      %v1052 = vsub.s32 %v1051, 127
      %v1053 = vand.u32 2147483647, %v928
      %v1054 = vand.u32 %v1053, 8388607
      %v1055 = vor.u32 %v1054, 8388608
      %v1056 = vsub.s32 0, %v1055
      %v1057 = vadd.s32 %v1052, 1
      %vm1058 = vcmp.gt.s32.totalorder %v1057, 0
      %v1059 = vsel %vm1058, %v1057, 0
      %v1060 = vshrl.u32 %v1059, 5
      %v1061 = vand.u32 %v1059, 31
      %v1062 = vsub.s32 32, %v1061
      %v1063 = vshrl.u32 683565275, %v1062
      %v1064 = vshll.u32 683565275, %v1061
      %v1065 = vshrl.u32 2475754826, %v1062
      %v1066 = vor.u32 %v1064, %v1065
      %v1067 = vshll.u32 2475754826, %v1061
      %v1068 = vshrl.u32 2131351028, %v1062
      %v1069 = vor.u32 %v1067, %v1068
      %v1070 = vshll.u32 2131351028, %v1061
      %v1071 = vshrl.u32 2102212464, %v1062
      %v1072 = vor.u32 %v1070, %v1071
      %v1073 = vshll.u32 2102212464, %v1061
      %v1074 = vshrl.u32 920167782, %v1062
      %v1075 = vor.u32 %v1073, %v1074
      %v1076 = vshll.u32 920167782, %v1061
      %v1077 = vshrl.u32 1326507024, %v1062
      %v1078 = vor.u32 %v1076, %v1077
      %vm1079 = vcmp.lt.s32.totalorder %v1060, 1
      %vm1080 = vcmp.lt.s32.totalorder %v1060, 2
      %vm1081 = vcmp.lt.s32.totalorder %v1060, 3
      %vm1082 = vcmp.lt.s32.totalorder %v1060, 4
      %v1083 = vsel %vm1079, %v1063, %v1066
      %v1084 = vsel %vm1082, %v1072, 2102212464
      %v1085 = vsel %vm1081, %v1069, %v1084
      %v1086 = vsel %vm1080, %v1083, %v1085
      %v1087 = vsel %vm1079, %v1066, %v1069
      %v1088 = vsel %vm1082, %v1075, 920167782
      %v1089 = vsel %vm1081, %v1072, %v1088
      %v1090 = vsel %vm1080, %v1087, %v1089
      %v1091 = vsel %vm1079, %v1069, %v1072
      %v1092 = vsel %vm1082, %v1078, 1326507024
      %v1093 = vsel %vm1081, %v1075, %v1092
      %v1094 = vsel %vm1080, %v1091, %v1093
      %v1095 = vshll.u32 %v1055, 8
      %v1096 = vmul.u32.u64.compose %v1095, %v1094
      %v1097 = vextract.low.u32 %v1096
      %v1098 = vextract.high.u32 %v1096
      %v1099 = vmul.u32.u64.compose %v1095, %v1090
      %v1100 = vextract.low.u32 %v1099
      %v1101 = vextract.high.u32 %v1099
      %v1102 = vmul.u32 %v1095, %v1086
      %v1103 = vadd.s32 %v1098, %v1100
      %vm1104 = vc.u32 %v1098, %v1100
      %v1105 = vadd.s32 %v1101, 1
      %v1106 = vsel %vm1104, %v1105, %v1101
      %v1107 = vadd.s32 %v1102, %v1106
      %v1108 = vadd.s32 %v1107, 536870912
      %v1109 = vshrl.u32 %v1108, 30
      %v1110 = vshll.u32 %v1109, 30
      %v1111 = vsub.s32 %v1107, %v1110
      %vm1112 = vcmp.lt.s32.totalorder %v1111, 0
      %v1113 = vsub.s32 0, %v1111
      %v1114 = vsel %vm1112, %v1113, %v1111
      %v1115 = vclz %v1114
      %v1116 = vsub.s32 %v1115, 2
      %vm1117 = vcmp.gt.s32.totalorder 0, %v1116
      %v1118 = vsel %vm1117, 0, %v1116
      %v1119 = vsub.s32 32, %v1118
      %v1120 = vshll.u32 %v1111, %v1118
      %v1121 = vshrl.u32 %v1103, %v1119
      %v1122 = vor.u32 %v1120, %v1121
      %v1123 = vsub.s32 4294967266, %v1118
      %v1124 = vadd.s32 %v1123, 127
      %v1125 = vshll.u32 %v1124, 23
      %v1126 = vor.u32 4788187, %v1125
      %v1127 = vand.u32 2147483647, %v1126
      %v1129 = vcvt.s32.f32 %v1122
      %v1130 = vmul.f32 %v1129, %v1127
      %v1131 = vxor.u32 %v1130, 2147483648
      %v1132 = vsel %vm1049, %v1131, %v1130
      %v1133 = vsub.s32 4, %v1109
      %v1134 = vsel %vm1049, %v1133, %v1109
      %v1135 = vsel %vm1048, %v928, %v1132
      %v1136 = vsel %vm1048, 0, %v1134
      %v1137 = vcosq.f32.pop %v1135
      %v1138 = vsinq.f32.pop %v1135
      %vm1139 = vweird.f32 %v928
      %v1140 = vadd.s32 %v1136, 3
      %v1141 = vand.u32 %v1140, 3
      %vm1142 = vcmp.lt.s32.totalorder %v1141, 2
      %vm1143 = vcmp.eq.s32.totalorder %v1141, 0
      %v1144 = vxor.u32 %v1138, 2147483648
      %v1145 = vsel %vm1143, %v1137, %v1144
      %vm1146 = vcmp.eq.s32.totalorder %v1141, 2
      %v1147 = vxor.u32 %v1137, 2147483648
      %v1148 = vsel %vm1146, %v1147, %v1138
      %v1149 = vsel %vm1142, %v1145, %v1148
      %v1150 = vsel %vm1139, nan, %v1149
      %v1151 = vand.u32 2147483647, %v929
      %vm1152 = vcmp.le.f32.partialorder %v1151, 0.7853982
      %vm1153 = vcmp.lt.s32.totalorder %v929, 0
      %v1154 = vand.u32 %v929, 2139095040
      %v1155 = vshrl.u32 %v1154, 23
      %v1156 = vsub.s32 %v1155, 127
      %v1157 = vand.u32 2147483647, %v929
      %v1158 = vand.u32 %v1157, 8388607
      %v1159 = vor.u32 %v1158, 8388608
      %v1160 = vsub.s32 0, %v1159
      %v1161 = vadd.s32 %v1156, 1
      %vm1162 = vcmp.gt.s32.totalorder %v1161, 0
      %v1163 = vsel %vm1162, %v1161, 0
      %v1164 = vshrl.u32 %v1163, 5
      %v1165 = vand.u32 %v1163, 31
      %v1166 = vsub.s32 32, %v1165
      %v1167 = vshrl.u32 683565275, %v1166
      %v1168 = vshll.u32 683565275, %v1165
      %v1169 = vshrl.u32 2475754826, %v1166
      %v1170 = vor.u32 %v1168, %v1169
      %v1171 = vshll.u32 2475754826, %v1165
      %v1172 = vshrl.u32 2131351028, %v1166
      %v1173 = vor.u32 %v1171, %v1172
      %v1174 = vshll.u32 2131351028, %v1165
      %v1175 = vshrl.u32 2102212464, %v1166
      %v1176 = vor.u32 %v1174, %v1175
      %v1177 = vshll.u32 2102212464, %v1165
      %v1178 = vshrl.u32 920167782, %v1166
      %v1179 = vor.u32 %v1177, %v1178
      %v1180 = vshll.u32 920167782, %v1165
      %v1181 = vshrl.u32 1326507024, %v1166
      %v1182 = vor.u32 %v1180, %v1181
      %vm1183 = vcmp.lt.s32.totalorder %v1164, 1
      %vm1184 = vcmp.lt.s32.totalorder %v1164, 2
      %vm1185 = vcmp.lt.s32.totalorder %v1164, 3
      %vm1186 = vcmp.lt.s32.totalorder %v1164, 4
      %v1187 = vsel %vm1183, %v1167, %v1170
      %v1188 = vsel %vm1186, %v1176, 2102212464
      %v1189 = vsel %vm1185, %v1173, %v1188
      %v1190 = vsel %vm1184, %v1187, %v1189
      %v1191 = vsel %vm1183, %v1170, %v1173
      %v1192 = vsel %vm1186, %v1179, 920167782
      %v1193 = vsel %vm1185, %v1176, %v1192
      %v1194 = vsel %vm1184, %v1191, %v1193
      %v1195 = vsel %vm1183, %v1173, %v1176
      %v1196 = vsel %vm1186, %v1182, 1326507024
      %v1197 = vsel %vm1185, %v1179, %v1196
      %v1198 = vsel %vm1184, %v1195, %v1197
      %v1199 = vshll.u32 %v1159, 8
      %v1200 = vmul.u32.u64.compose %v1199, %v1198
      %v1201 = vextract.low.u32 %v1200
      %v1202 = vextract.high.u32 %v1200
      %v1203 = vmul.u32.u64.compose %v1199, %v1194
      %v1204 = vextract.low.u32 %v1203
      %v1205 = vextract.high.u32 %v1203
      %v1206 = vmul.u32 %v1199, %v1190
      %v1207 = vadd.s32 %v1202, %v1204
      %vm1208 = vc.u32 %v1202, %v1204
      %v1209 = vadd.s32 %v1205, 1
      %v1210 = vsel %vm1208, %v1209, %v1205
      %v1211 = vadd.s32 %v1206, %v1210
      %v1212 = vadd.s32 %v1211, 536870912
      %v1213 = vshrl.u32 %v1212, 30
      %v1214 = vshll.u32 %v1213, 30
      %v1215 = vsub.s32 %v1211, %v1214
      %vm1216 = vcmp.lt.s32.totalorder %v1215, 0
      %v1217 = vsub.s32 0, %v1215
      %v1218 = vsel %vm1216, %v1217, %v1215
      %v1219 = vclz %v1218
      %v1220 = vsub.s32 %v1219, 2
      %vm1221 = vcmp.gt.s32.totalorder 0, %v1220
      %v1222 = vsel %vm1221, 0, %v1220
      %v1223 = vsub.s32 32, %v1222
      %v1224 = vshll.u32 %v1215, %v1222
      %v1225 = vshrl.u32 %v1207, %v1223
      %v1226 = vor.u32 %v1224, %v1225
      %v1227 = vsub.s32 4294967266, %v1222
      %v1228 = vadd.s32 %v1227, 127
      %v1229 = vshll.u32 %v1228, 23
      %v1230 = vor.u32 4788187, %v1229
      %v1231 = vand.u32 2147483647, %v1230
      %v1233 = vcvt.s32.f32 %v1226
      %v1234 = vmul.f32 %v1233, %v1231
      %v1235 = vxor.u32 %v1234, 2147483648
      %v1236 = vsel %vm1153, %v1235, %v1234
      %v1237 = vsub.s32 4, %v1213
      %v1238 = vsel %vm1153, %v1237, %v1213
      %v1239 = vsel %vm1152, %v929, %v1236
      %v1240 = vsel %vm1152, 0, %v1238
      %v1241 = vcosq.f32.pop %v1239
      %v1242 = vsinq.f32.pop %v1239
      %vm1243 = vweird.f32 %v929
      %v1244 = vadd.s32 %v1240, 3
      %v1245 = vand.u32 %v1244, 3
      %vm1246 = vcmp.lt.s32.totalorder %v1245, 2
      %vm1247 = vcmp.eq.s32.totalorder %v1245, 0
      %v1248 = vxor.u32 %v1242, 2147483648
      %v1249 = vsel %vm1247, %v1241, %v1248
      %vm1250 = vcmp.eq.s32.totalorder %v1245, 2
      %v1251 = vxor.u32 %v1241, 2147483648
      %v1252 = vsel %vm1250, %v1251, %v1242
      %v1253 = vsel %vm1246, %v1249, %v1252
      %v1254 = vsel %vm1243, nan, %v1253
      %v1255 = vand.u32 2147483647, %v930
      %vm1256 = vcmp.le.f32.partialorder %v1255, 0.7853982
      %vm1257 = vcmp.lt.s32.totalorder %v930, 0
      %v1258 = vand.u32 %v930, 2139095040
      %v1259 = vshrl.u32 %v1258, 23
      %v1260 = vsub.s32 %v1259, 127
      %v1261 = vand.u32 2147483647, %v930
      %v1262 = vand.u32 %v1261, 8388607
      %v1263 = vor.u32 %v1262, 8388608
      %v1264 = vsub.s32 0, %v1263
      %v1265 = vadd.s32 %v1260, 1
      %vm1266 = vcmp.gt.s32.totalorder %v1265, 0
      %v1267 = vsel %vm1266, %v1265, 0
      %v1268 = vshrl.u32 %v1267, 5
      %v1269 = vand.u32 %v1267, 31
      %v1270 = vsub.s32 32, %v1269
      %v1271 = vshrl.u32 683565275, %v1270
      %v1272 = vshll.u32 683565275, %v1269
      %v1273 = vshrl.u32 2475754826, %v1270
      %v1274 = vor.u32 %v1272, %v1273
      %v1275 = vshll.u32 2475754826, %v1269
      %v1276 = vshrl.u32 2131351028, %v1270
      %v1277 = vor.u32 %v1275, %v1276
      %v1278 = vshll.u32 2131351028, %v1269
      %v1279 = vshrl.u32 2102212464, %v1270
      %v1280 = vor.u32 %v1278, %v1279
      %v1281 = vshll.u32 2102212464, %v1269
      %v1282 = vshrl.u32 920167782, %v1270
      %v1283 = vor.u32 %v1281, %v1282
      %v1284 = vshll.u32 920167782, %v1269
      %v1285 = vshrl.u32 1326507024, %v1270
      %v1286 = vor.u32 %v1284, %v1285
      %vm1287 = vcmp.lt.s32.totalorder %v1268, 1
      %vm1288 = vcmp.lt.s32.totalorder %v1268, 2
      %vm1289 = vcmp.lt.s32.totalorder %v1268, 3
      %vm1290 = vcmp.lt.s32.totalorder %v1268, 4
      %v1291 = vsel %vm1287, %v1271, %v1274
      %v1292 = vsel %vm1290, %v1280, 2102212464
      %v1293 = vsel %vm1289, %v1277, %v1292
      %v1294 = vsel %vm1288, %v1291, %v1293
      %v1295 = vsel %vm1287, %v1274, %v1277
      %v1296 = vsel %vm1290, %v1283, 920167782
      %v1297 = vsel %vm1289, %v1280, %v1296
      %v1298 = vsel %vm1288, %v1295, %v1297
      %v1299 = vsel %vm1287, %v1277, %v1280
      %v1300 = vsel %vm1290, %v1286, 1326507024
      %v1301 = vsel %vm1289, %v1283, %v1300
      %v1302 = vsel %vm1288, %v1299, %v1301
      %v1303 = vshll.u32 %v1263, 8
      %v1304 = vmul.u32.u64.compose %v1303, %v1302
      %v1305 = vextract.low.u32 %v1304
      %v1306 = vextract.high.u32 %v1304
      %v1307 = vmul.u32.u64.compose %v1303, %v1298
      %v1308 = vextract.low.u32 %v1307
      %v1309 = vextract.high.u32 %v1307
      %v1310 = vmul.u32 %v1303, %v1294
      %v1311 = vadd.s32 %v1306, %v1308
      %vm1312 = vc.u32 %v1306, %v1308
      %v1313 = vadd.s32 %v1309, 1
      %v1314 = vsel %vm1312, %v1313, %v1309
      %v1315 = vadd.s32 %v1310, %v1314
      %v1316 = vadd.s32 %v1315, 536870912
      %v1317 = vshrl.u32 %v1316, 30
      %v1318 = vshll.u32 %v1317, 30
      %v1319 = vsub.s32 %v1315, %v1318
      %vm1320 = vcmp.lt.s32.totalorder %v1319, 0
      %v1321 = vsub.s32 0, %v1319
      %v1322 = vsel %vm1320, %v1321, %v1319
      %v1323 = vclz %v1322
      %v1324 = vsub.s32 %v1323, 2
      %vm1325 = vcmp.gt.s32.totalorder 0, %v1324
      %v1326 = vsel %vm1325, 0, %v1324
      %v1327 = vsub.s32 32, %v1326
      %v1328 = vshll.u32 %v1319, %v1326
      %v1329 = vshrl.u32 %v1311, %v1327
      %v1330 = vor.u32 %v1328, %v1329
      %v1331 = vsub.s32 4294967266, %v1326
      %v1332 = vadd.s32 %v1331, 127
      %v1333 = vshll.u32 %v1332, 23
      %v1334 = vor.u32 4788187, %v1333
      %v1335 = vand.u32 2147483647, %v1334
      %v1337 = vcvt.s32.f32 %v1330
      %v1338 = vmul.f32 %v1337, %v1335
      %v1339 = vxor.u32 %v1338, 2147483648
      %v1340 = vsel %vm1257, %v1339, %v1338
      %v1341 = vsub.s32 4, %v1317
      %v1342 = vsel %vm1257, %v1341, %v1317
      %v1343 = vsel %vm1256, %v930, %v1340
      %v1344 = vsel %vm1256, 0, %v1342
      %v1345 = vcosq.f32.pop %v1343
      %v1346 = vsinq.f32.pop %v1343
      %vm1347 = vweird.f32 %v930
      %v1348 = vadd.s32 %v1344, 3
      %v1349 = vand.u32 %v1348, 3
      %vm1350 = vcmp.lt.s32.totalorder %v1349, 2
      %vm1351 = vcmp.eq.s32.totalorder %v1349, 0
      %v1352 = vxor.u32 %v1346, 2147483648
      %v1353 = vsel %vm1351, %v1345, %v1352
      %vm1354 = vcmp.eq.s32.totalorder %v1349, 2
      %v1355 = vxor.u32 %v1345, 2147483648
      %v1356 = vsel %vm1354, %v1355, %v1346
      %v1357 = vsel %vm1350, %v1353, %v1356
      %v1358 = vsel %vm1347, nan, %v1357
      %v1359 = vand.u32 2147483647, %v931
      %vm1360 = vcmp.le.f32.partialorder %v1359, 0.7853982
      %vm1361 = vcmp.lt.s32.totalorder %v931, 0
      %v1362 = vand.u32 %v931, 2139095040
      %v1363 = vshrl.u32 %v1362, 23
      %v1364 = vsub.s32 %v1363, 127
      %v1365 = vand.u32 2147483647, %v931
      %v1366 = vand.u32 %v1365, 8388607
      %v1367 = vor.u32 %v1366, 8388608
      %v1368 = vsub.s32 0, %v1367
      %v1369 = vadd.s32 %v1364, 1
      %vm1370 = vcmp.gt.s32.totalorder %v1369, 0
      %v1371 = vsel %vm1370, %v1369, 0
      %v1372 = vshrl.u32 %v1371, 5
      %v1373 = vand.u32 %v1371, 31
      %v1374 = vsub.s32 32, %v1373
      %v1375 = vshrl.u32 683565275, %v1374
      %v1376 = vshll.u32 683565275, %v1373
      %v1377 = vshrl.u32 2475754826, %v1374
      %v1378 = vor.u32 %v1376, %v1377
      %v1379 = vshll.u32 2475754826, %v1373
      %v1380 = vshrl.u32 2131351028, %v1374
      %v1381 = vor.u32 %v1379, %v1380
      %v1382 = vshll.u32 2131351028, %v1373
      %v1383 = vshrl.u32 2102212464, %v1374
      %v1384 = vor.u32 %v1382, %v1383
      %v1385 = vshll.u32 2102212464, %v1373
      %v1386 = vshrl.u32 920167782, %v1374
      %v1387 = vor.u32 %v1385, %v1386
      %v1388 = vshll.u32 920167782, %v1373
      %v1389 = vshrl.u32 1326507024, %v1374
      %v1390 = vor.u32 %v1388, %v1389
      %vm1391 = vcmp.lt.s32.totalorder %v1372, 1
      %vm1392 = vcmp.lt.s32.totalorder %v1372, 2
      %vm1393 = vcmp.lt.s32.totalorder %v1372, 3
      %vm1394 = vcmp.lt.s32.totalorder %v1372, 4
      %v1395 = vsel %vm1391, %v1375, %v1378
      %v1396 = vsel %vm1394, %v1384, 2102212464
      %v1397 = vsel %vm1393, %v1381, %v1396
      %v1398 = vsel %vm1392, %v1395, %v1397
      %v1399 = vsel %vm1391, %v1378, %v1381
      %v1400 = vsel %vm1394, %v1387, 920167782
      %v1401 = vsel %vm1393, %v1384, %v1400
      %v1402 = vsel %vm1392, %v1399, %v1401
      %v1403 = vsel %vm1391, %v1381, %v1384
      %v1404 = vsel %vm1394, %v1390, 1326507024
      %v1405 = vsel %vm1393, %v1387, %v1404
      %v1406 = vsel %vm1392, %v1403, %v1405
      %v1407 = vshll.u32 %v1367, 8
      %v1408 = vmul.u32.u64.compose %v1407, %v1406
      %v1409 = vextract.low.u32 %v1408
      %v1410 = vextract.high.u32 %v1408
      %v1411 = vmul.u32.u64.compose %v1407, %v1402
      %v1412 = vextract.low.u32 %v1411
      %v1413 = vextract.high.u32 %v1411
      %v1414 = vmul.u32 %v1407, %v1398
      %v1415 = vadd.s32 %v1410, %v1412
      %vm1416 = vc.u32 %v1410, %v1412
      %v1417 = vadd.s32 %v1413, 1
      %v1418 = vsel %vm1416, %v1417, %v1413
      %v1419 = vadd.s32 %v1414, %v1418
      %v1420 = vadd.s32 %v1419, 536870912
      %v1421 = vshrl.u32 %v1420, 30
      %v1422 = vshll.u32 %v1421, 30
      %v1423 = vsub.s32 %v1419, %v1422
      %vm1424 = vcmp.lt.s32.totalorder %v1423, 0
      %v1425 = vsub.s32 0, %v1423
      %v1426 = vsel %vm1424, %v1425, %v1423
      %v1427 = vclz %v1426
      %v1428 = vsub.s32 %v1427, 2
      %vm1429 = vcmp.gt.s32.totalorder 0, %v1428
      %v1430 = vsel %vm1429, 0, %v1428
      %v1431 = vsub.s32 32, %v1430
      %v1432 = vshll.u32 %v1423, %v1430
      %v1433 = vshrl.u32 %v1415, %v1431
      %v1434 = vor.u32 %v1432, %v1433
      %v1435 = vsub.s32 4294967266, %v1430
      %v1436 = vadd.s32 %v1435, 127
      %v1437 = vshll.u32 %v1436, 23
      %v1438 = vor.u32 4788187, %v1437
      %v1439 = vand.u32 2147483647, %v1438
      %v1441 = vcvt.s32.f32 %v1434
      %v1442 = vmul.f32 %v1441, %v1439
      %v1443 = vxor.u32 %v1442, 2147483648
      %v1444 = vsel %vm1361, %v1443, %v1442
      %v1445 = vsub.s32 4, %v1421
      %v1446 = vsel %vm1361, %v1445, %v1421
      %v1447 = vsel %vm1360, %v931, %v1444
      %v1448 = vsel %vm1360, 0, %v1446
      %v1449 = vcosq.f32.pop %v1447
      %v1450 = vsinq.f32.pop %v1447
      %vm1451 = vweird.f32 %v931
      %v1452 = vadd.s32 %v1448, 3
      %v1453 = vand.u32 %v1452, 3
      %vm1454 = vcmp.lt.s32.totalorder %v1453, 2
      %vm1455 = vcmp.eq.s32.totalorder %v1453, 0
      %v1456 = vxor.u32 %v1450, 2147483648
      %v1457 = vsel %vm1455, %v1449, %v1456
      %vm1458 = vcmp.eq.s32.totalorder %v1453, 2
      %v1459 = vxor.u32 %v1449, 2147483648
      %v1460 = vsel %vm1458, %v1459, %v1450
      %v1461 = vsel %vm1454, %v1457, %v1460
      %v1462 = vsel %vm1451, nan, %v1461
      %v1463 = vand.u32 2147483647, %v932
      %vm1464 = vcmp.le.f32.partialorder %v1463, 0.7853982
      %vm1465 = vcmp.lt.s32.totalorder %v932, 0
      %v1466 = vand.u32 %v932, 2139095040
      %v1467 = vshrl.u32 %v1466, 23
      %v1468 = vsub.s32 %v1467, 127
      %v1469 = vand.u32 2147483647, %v932
      %v1470 = vand.u32 %v1469, 8388607
      %v1471 = vor.u32 %v1470, 8388608
      %v1472 = vsub.s32 0, %v1471
      %v1473 = vadd.s32 %v1468, 1
      %vm1474 = vcmp.gt.s32.totalorder %v1473, 0
      %v1475 = vsel %vm1474, %v1473, 0
      %v1476 = vshrl.u32 %v1475, 5
      %v1477 = vand.u32 %v1475, 31
      %v1478 = vsub.s32 32, %v1477
      %v1479 = vshrl.u32 683565275, %v1478
      %v1480 = vshll.u32 683565275, %v1477
      %v1481 = vshrl.u32 2475754826, %v1478
      %v1482 = vor.u32 %v1480, %v1481
      %v1483 = vshll.u32 2475754826, %v1477
      %v1484 = vshrl.u32 2131351028, %v1478
      %v1485 = vor.u32 %v1483, %v1484
      %v1486 = vshll.u32 2131351028, %v1477
      %v1487 = vshrl.u32 2102212464, %v1478
      %v1488 = vor.u32 %v1486, %v1487
      %v1489 = vshll.u32 2102212464, %v1477
      %v1490 = vshrl.u32 920167782, %v1478
      %v1491 = vor.u32 %v1489, %v1490
      %v1492 = vshll.u32 920167782, %v1477
      %v1493 = vshrl.u32 1326507024, %v1478
      %v1494 = vor.u32 %v1492, %v1493
      %vm1495 = vcmp.lt.s32.totalorder %v1476, 1
      %vm1496 = vcmp.lt.s32.totalorder %v1476, 2
      %vm1497 = vcmp.lt.s32.totalorder %v1476, 3
      %vm1498 = vcmp.lt.s32.totalorder %v1476, 4
      %v1499 = vsel %vm1495, %v1479, %v1482
      %v1500 = vsel %vm1498, %v1488, 2102212464
      %v1501 = vsel %vm1497, %v1485, %v1500
      %v1502 = vsel %vm1496, %v1499, %v1501
      %v1503 = vsel %vm1495, %v1482, %v1485
      %v1504 = vsel %vm1498, %v1491, 920167782
      %v1505 = vsel %vm1497, %v1488, %v1504
      %v1506 = vsel %vm1496, %v1503, %v1505
      %v1507 = vsel %vm1495, %v1485, %v1488
      %v1508 = vsel %vm1498, %v1494, 1326507024
      %v1509 = vsel %vm1497, %v1491, %v1508
      %v1510 = vsel %vm1496, %v1507, %v1509
      %v1511 = vshll.u32 %v1471, 8
      %v1512 = vmul.u32.u64.compose %v1511, %v1510
      %v1513 = vextract.low.u32 %v1512
      %v1514 = vextract.high.u32 %v1512
      %v1515 = vmul.u32.u64.compose %v1511, %v1506
      %v1516 = vextract.low.u32 %v1515
      %v1517 = vextract.high.u32 %v1515
      %v1518 = vmul.u32 %v1511, %v1502
      %v1519 = vadd.s32 %v1514, %v1516
      %vm1520 = vc.u32 %v1514, %v1516
      %v1521 = vadd.s32 %v1517, 1
      %v1522 = vsel %vm1520, %v1521, %v1517
      %v1523 = vadd.s32 %v1518, %v1522
      %v1524 = vadd.s32 %v1523, 536870912
      %v1525 = vshrl.u32 %v1524, 30
      %v1526 = vshll.u32 %v1525, 30
      %v1527 = vsub.s32 %v1523, %v1526
      %vm1528 = vcmp.lt.s32.totalorder %v1527, 0
      %v1529 = vsub.s32 0, %v1527
      %v1530 = vsel %vm1528, %v1529, %v1527
      %v1531 = vclz %v1530
      %v1532 = vsub.s32 %v1531, 2
      %vm1533 = vcmp.gt.s32.totalorder 0, %v1532
      %v1534 = vsel %vm1533, 0, %v1532
      %v1535 = vsub.s32 32, %v1534
      %v1536 = vshll.u32 %v1527, %v1534
      %v1537 = vshrl.u32 %v1519, %v1535
      %v1538 = vor.u32 %v1536, %v1537
      %v1539 = vsub.s32 4294967266, %v1534
      %v1540 = vadd.s32 %v1539, 127
      %v1541 = vshll.u32 %v1540, 23
      %v1542 = vor.u32 4788187, %v1541
      %v1543 = vand.u32 2147483647, %v1542
      %v1545 = vcvt.s32.f32 %v1538
      %v1546 = vmul.f32 %v1545, %v1543
      %v1547 = vxor.u32 %v1546, 2147483648
      %v1548 = vsel %vm1465, %v1547, %v1546
      %v1549 = vsub.s32 4, %v1525
      %v1550 = vsel %vm1465, %v1549, %v1525
      %v1551 = vsel %vm1464, %v932, %v1548
      %v1552 = vsel %vm1464, 0, %v1550
      %v1553 = vcosq.f32.pop %v1551
      %v1554 = vsinq.f32.pop %v1551
      %vm1555 = vweird.f32 %v932
      %v1556 = vadd.s32 %v1552, 3
      %v1557 = vand.u32 %v1556, 3
      %vm1558 = vcmp.lt.s32.totalorder %v1557, 2
      %vm1559 = vcmp.eq.s32.totalorder %v1557, 0
      %v1560 = vxor.u32 %v1554, 2147483648
      %v1561 = vsel %vm1559, %v1553, %v1560
      %vm1562 = vcmp.eq.s32.totalorder %v1557, 2
      %v1563 = vxor.u32 %v1553, 2147483648
      %v1564 = vsel %vm1562, %v1563, %v1554
      %v1565 = vsel %vm1558, %v1561, %v1564
      %v1566 = vsel %vm1555, nan, %v1565
      %v1567 = vand.u32 2147483647, %v933
      %vm1568 = vcmp.le.f32.partialorder %v1567, 0.7853982
      %vm1569 = vcmp.lt.s32.totalorder %v933, 0
      %v1570 = vand.u32 %v933, 2139095040
      %v1571 = vshrl.u32 %v1570, 23
      %v1572 = vsub.s32 %v1571, 127
      %v1573 = vand.u32 2147483647, %v933
      %v1574 = vand.u32 %v1573, 8388607
      %v1575 = vor.u32 %v1574, 8388608
      %v1576 = vsub.s32 0, %v1575
      %v1577 = vadd.s32 %v1572, 1
      %vm1578 = vcmp.gt.s32.totalorder %v1577, 0
      %v1579 = vsel %vm1578, %v1577, 0
      %v1580 = vshrl.u32 %v1579, 5
      %v1581 = vand.u32 %v1579, 31
      %v1582 = vsub.s32 32, %v1581
      %v1583 = vshrl.u32 683565275, %v1582
      %v1584 = vshll.u32 683565275, %v1581
      %v1585 = vshrl.u32 2475754826, %v1582
      %v1586 = vor.u32 %v1584, %v1585
      %v1587 = vshll.u32 2475754826, %v1581
      %v1588 = vshrl.u32 2131351028, %v1582
      %v1589 = vor.u32 %v1587, %v1588
      %v1590 = vshll.u32 2131351028, %v1581
      %v1591 = vshrl.u32 2102212464, %v1582
      %v1592 = vor.u32 %v1590, %v1591
      %v1593 = vshll.u32 2102212464, %v1581
      %v1594 = vshrl.u32 920167782, %v1582
      %v1595 = vor.u32 %v1593, %v1594
      %v1596 = vshll.u32 920167782, %v1581
      %v1597 = vshrl.u32 1326507024, %v1582
      %v1598 = vor.u32 %v1596, %v1597
      %vm1599 = vcmp.lt.s32.totalorder %v1580, 1
      %vm1600 = vcmp.lt.s32.totalorder %v1580, 2
      %vm1601 = vcmp.lt.s32.totalorder %v1580, 3
      %vm1602 = vcmp.lt.s32.totalorder %v1580, 4
      %v1603 = vsel %vm1599, %v1583, %v1586
      %v1604 = vsel %vm1602, %v1592, 2102212464
      %v1605 = vsel %vm1601, %v1589, %v1604
      %v1606 = vsel %vm1600, %v1603, %v1605
      %v1607 = vsel %vm1599, %v1586, %v1589
      %v1608 = vsel %vm1602, %v1595, 920167782
      %v1609 = vsel %vm1601, %v1592, %v1608
      %v1610 = vsel %vm1600, %v1607, %v1609
      %v1611 = vsel %vm1599, %v1589, %v1592
      %v1612 = vsel %vm1602, %v1598, 1326507024
      %v1613 = vsel %vm1601, %v1595, %v1612
      %v1614 = vsel %vm1600, %v1611, %v1613
      %v1615 = vshll.u32 %v1575, 8
      %v1616 = vmul.u32.u64.compose %v1615, %v1614
      %v1617 = vextract.low.u32 %v1616
      %v1618 = vextract.high.u32 %v1616
      %v1619 = vmul.u32.u64.compose %v1615, %v1610
      %v1620 = vextract.low.u32 %v1619
      %v1621 = vextract.high.u32 %v1619
      %v1622 = vmul.u32 %v1615, %v1606
      %v1623 = vadd.s32 %v1618, %v1620
      %vm1624 = vc.u32 %v1618, %v1620
      %v1625 = vadd.s32 %v1621, 1
      %v1626 = vsel %vm1624, %v1625, %v1621
      %v1627 = vadd.s32 %v1622, %v1626
      %v1628 = vadd.s32 %v1627, 536870912
      %v1629 = vshrl.u32 %v1628, 30
      %v1630 = vshll.u32 %v1629, 30
      %v1631 = vsub.s32 %v1627, %v1630
      %vm1632 = vcmp.lt.s32.totalorder %v1631, 0
      %v1633 = vsub.s32 0, %v1631
      %v1634 = vsel %vm1632, %v1633, %v1631
      %v1635 = vclz %v1634
      %v1636 = vsub.s32 %v1635, 2
      %vm1637 = vcmp.gt.s32.totalorder 0, %v1636
      %v1638 = vsel %vm1637, 0, %v1636
      %v1639 = vsub.s32 32, %v1638
      %v1640 = vshll.u32 %v1631, %v1638
      %v1641 = vshrl.u32 %v1623, %v1639
      %v1642 = vor.u32 %v1640, %v1641
      %v1643 = vsub.s32 4294967266, %v1638
      %v1644 = vadd.s32 %v1643, 127
      %v1645 = vshll.u32 %v1644, 23
      %v1646 = vor.u32 4788187, %v1645
      %v1647 = vand.u32 2147483647, %v1646
      %v1649 = vcvt.s32.f32 %v1642
      %v1650 = vmul.f32 %v1649, %v1647
      %v1651 = vxor.u32 %v1650, 2147483648
      %v1652 = vsel %vm1569, %v1651, %v1650
      %v1653 = vsub.s32 4, %v1629
      %v1654 = vsel %vm1569, %v1653, %v1629
      %v1655 = vsel %vm1568, %v933, %v1652
      %v1656 = vsel %vm1568, 0, %v1654
      %v1657 = vcosq.f32.pop %v1655
      %v1658 = vsinq.f32.pop %v1655
      %vm1659 = vweird.f32 %v933
      %v1660 = vadd.s32 %v1656, 3
      %v1661 = vand.u32 %v1660, 3
      %vm1662 = vcmp.lt.s32.totalorder %v1661, 2
      %vm1663 = vcmp.eq.s32.totalorder %v1661, 0
      %v1664 = vxor.u32 %v1658, 2147483648
      %v1665 = vsel %vm1663, %v1657, %v1664
      %vm1666 = vcmp.eq.s32.totalorder %v1661, 2
      %v1667 = vxor.u32 %v1657, 2147483648
      %v1668 = vsel %vm1666, %v1667, %v1658
      %v1669 = vsel %vm1662, %v1665, %v1668
      %v1670 = vsel %vm1659, nan, %v1669
      %v1671 = vand.u32 2147483647, %v934
      %vm1672 = vcmp.le.f32.partialorder %v1671, 0.7853982
      %vm1673 = vcmp.lt.s32.totalorder %v934, 0
      %v1674 = vand.u32 %v934, 2139095040
      %v1675 = vshrl.u32 %v1674, 23
      %v1676 = vsub.s32 %v1675, 127
      %v1677 = vand.u32 2147483647, %v934
      %v1678 = vand.u32 %v1677, 8388607
      %v1679 = vor.u32 %v1678, 8388608
      %v1680 = vsub.s32 0, %v1679
      %v1681 = vadd.s32 %v1676, 1
      %vm1682 = vcmp.gt.s32.totalorder %v1681, 0
      %v1683 = vsel %vm1682, %v1681, 0
      %v1684 = vshrl.u32 %v1683, 5
      %v1685 = vand.u32 %v1683, 31
      %v1686 = vsub.s32 32, %v1685
      %v1687 = vshrl.u32 683565275, %v1686
      %v1688 = vshll.u32 683565275, %v1685
      %v1689 = vshrl.u32 2475754826, %v1686
      %v1690 = vor.u32 %v1688, %v1689
      %v1691 = vshll.u32 2475754826, %v1685
      %v1692 = vshrl.u32 2131351028, %v1686
      %v1693 = vor.u32 %v1691, %v1692
      %v1694 = vshll.u32 2131351028, %v1685
      %v1695 = vshrl.u32 2102212464, %v1686
      %v1696 = vor.u32 %v1694, %v1695
      %v1697 = vshll.u32 2102212464, %v1685
      %v1698 = vshrl.u32 920167782, %v1686
      %v1699 = vor.u32 %v1697, %v1698
      %v1700 = vshll.u32 920167782, %v1685
      %v1701 = vshrl.u32 1326507024, %v1686
      %v1702 = vor.u32 %v1700, %v1701
      %vm1703 = vcmp.lt.s32.totalorder %v1684, 1
      %vm1704 = vcmp.lt.s32.totalorder %v1684, 2
      %vm1705 = vcmp.lt.s32.totalorder %v1684, 3
      %vm1706 = vcmp.lt.s32.totalorder %v1684, 4
      %v1707 = vsel %vm1703, %v1687, %v1690
      %v1708 = vsel %vm1706, %v1696, 2102212464
      %v1709 = vsel %vm1705, %v1693, %v1708
      %v1710 = vsel %vm1704, %v1707, %v1709
      %v1711 = vsel %vm1703, %v1690, %v1693
      %v1712 = vsel %vm1706, %v1699, 920167782
      %v1713 = vsel %vm1705, %v1696, %v1712
      %v1714 = vsel %vm1704, %v1711, %v1713
      %v1715 = vsel %vm1703, %v1693, %v1696
      %v1716 = vsel %vm1706, %v1702, 1326507024
      %v1717 = vsel %vm1705, %v1699, %v1716
      %v1718 = vsel %vm1704, %v1715, %v1717
      %v1719 = vshll.u32 %v1679, 8
      %v1720 = vmul.u32.u64.compose %v1719, %v1718
      %v1721 = vextract.low.u32 %v1720
      %v1722 = vextract.high.u32 %v1720
      %v1723 = vmul.u32.u64.compose %v1719, %v1714
      %v1724 = vextract.low.u32 %v1723
      %v1725 = vextract.high.u32 %v1723
      %v1726 = vmul.u32 %v1719, %v1710
      %v1727 = vadd.s32 %v1722, %v1724
      %vm1728 = vc.u32 %v1722, %v1724
      %v1729 = vadd.s32 %v1725, 1
      %v1730 = vsel %vm1728, %v1729, %v1725
      %v1731 = vadd.s32 %v1726, %v1730
      %v1732 = vadd.s32 %v1731, 536870912
      %v1733 = vshrl.u32 %v1732, 30
      %v1734 = vshll.u32 %v1733, 30
      %v1735 = vsub.s32 %v1731, %v1734
      %vm1736 = vcmp.lt.s32.totalorder %v1735, 0
      %v1737 = vsub.s32 0, %v1735
      %v1738 = vsel %vm1736, %v1737, %v1735
      %v1739 = vclz %v1738
      %v1740 = vsub.s32 %v1739, 2
      %vm1741 = vcmp.gt.s32.totalorder 0, %v1740
      %v1742 = vsel %vm1741, 0, %v1740
      %v1743 = vsub.s32 32, %v1742
      %v1744 = vshll.u32 %v1735, %v1742
      %v1745 = vshrl.u32 %v1727, %v1743
      %v1746 = vor.u32 %v1744, %v1745
      %v1747 = vsub.s32 4294967266, %v1742
      %v1748 = vadd.s32 %v1747, 127
      %v1749 = vshll.u32 %v1748, 23
      %v1750 = vor.u32 4788187, %v1749
      %v1751 = vand.u32 2147483647, %v1750
      %v1753 = vcvt.s32.f32 %v1746
      %v1754 = vmul.f32 %v1753, %v1751
      %v1755 = vxor.u32 %v1754, 2147483648
      %v1756 = vsel %vm1673, %v1755, %v1754
      %v1757 = vsub.s32 4, %v1733
      %v1758 = vsel %vm1673, %v1757, %v1733
      %v1759 = vsel %vm1672, %v934, %v1756
      %v1760 = vsel %vm1672, 0, %v1758
      %v1761 = vcosq.f32.pop %v1759
      %v1762 = vsinq.f32.pop %v1759
      %vm1763 = vweird.f32 %v934
      %v1764 = vadd.s32 %v1760, 3
      %v1765 = vand.u32 %v1764, 3
      %vm1766 = vcmp.lt.s32.totalorder %v1765, 2
      %vm1767 = vcmp.eq.s32.totalorder %v1765, 0
      %v1768 = vxor.u32 %v1762, 2147483648
      %v1769 = vsel %vm1767, %v1761, %v1768
      %vm1770 = vcmp.eq.s32.totalorder %v1765, 2
      %v1771 = vxor.u32 %v1761, 2147483648
      %v1772 = vsel %vm1770, %v1771, %v1762
      %v1773 = vsel %vm1766, %v1769, %v1772
      %v1774 = vsel %vm1763, nan, %v1773
      %v1775 = vand.u32 2147483647, %v935
      %vm1776 = vcmp.le.f32.partialorder %v1775, 0.7853982
      %vm1777 = vcmp.lt.s32.totalorder %v935, 0
      %v1778 = vand.u32 %v935, 2139095040
      %v1779 = vshrl.u32 %v1778, 23
      %v1780 = vsub.s32 %v1779, 127
      %v1781 = vand.u32 2147483647, %v935
      %v1782 = vand.u32 %v1781, 8388607
      %v1783 = vor.u32 %v1782, 8388608
      %v1784 = vsub.s32 0, %v1783
      %v1785 = vadd.s32 %v1780, 1
      %vm1786 = vcmp.gt.s32.totalorder %v1785, 0
      %v1787 = vsel %vm1786, %v1785, 0
      %v1788 = vshrl.u32 %v1787, 5
      %v1789 = vand.u32 %v1787, 31
      %v1790 = vsub.s32 32, %v1789
      %v1791 = vshrl.u32 683565275, %v1790
      %v1792 = vshll.u32 683565275, %v1789
      %v1793 = vshrl.u32 2475754826, %v1790
      %v1794 = vor.u32 %v1792, %v1793
      %v1795 = vshll.u32 2475754826, %v1789
      %v1796 = vshrl.u32 2131351028, %v1790
      %v1797 = vor.u32 %v1795, %v1796
      %v1798 = vshll.u32 2131351028, %v1789
      %v1799 = vshrl.u32 2102212464, %v1790
      %v1800 = vor.u32 %v1798, %v1799
      %v1801 = vshll.u32 2102212464, %v1789
      %v1802 = vshrl.u32 920167782, %v1790
      %v1803 = vor.u32 %v1801, %v1802
      %v1804 = vshll.u32 920167782, %v1789
      %v1805 = vshrl.u32 1326507024, %v1790
      %v1806 = vor.u32 %v1804, %v1805
      %vm1807 = vcmp.lt.s32.totalorder %v1788, 1
      %vm1808 = vcmp.lt.s32.totalorder %v1788, 2
      %vm1809 = vcmp.lt.s32.totalorder %v1788, 3
      %vm1810 = vcmp.lt.s32.totalorder %v1788, 4
      %v1811 = vsel %vm1807, %v1791, %v1794
      %v1812 = vsel %vm1810, %v1800, 2102212464
      %v1813 = vsel %vm1809, %v1797, %v1812
      %v1814 = vsel %vm1808, %v1811, %v1813
      %v1815 = vsel %vm1807, %v1794, %v1797
      %v1816 = vsel %vm1810, %v1803, 920167782
      %v1817 = vsel %vm1809, %v1800, %v1816
      %v1818 = vsel %vm1808, %v1815, %v1817
      %v1819 = vsel %vm1807, %v1797, %v1800
      %v1820 = vsel %vm1810, %v1806, 1326507024
      %v1821 = vsel %vm1809, %v1803, %v1820
      %v1822 = vsel %vm1808, %v1819, %v1821
      %v1823 = vshll.u32 %v1783, 8
      %v1824 = vmul.u32.u64.compose %v1823, %v1822
      %v1825 = vextract.low.u32 %v1824
      %v1826 = vextract.high.u32 %v1824
      %v1827 = vmul.u32.u64.compose %v1823, %v1818
      %v1828 = vextract.low.u32 %v1827
      %v1829 = vextract.high.u32 %v1827
      %v1830 = vmul.u32 %v1823, %v1814
      %v1831 = vadd.s32 %v1826, %v1828
      %vm1832 = vc.u32 %v1826, %v1828
      %v1833 = vadd.s32 %v1829, 1
      %v1834 = vsel %vm1832, %v1833, %v1829
      %v1835 = vadd.s32 %v1830, %v1834
      %v1836 = vadd.s32 %v1835, 536870912
      %v1837 = vshrl.u32 %v1836, 30
      %v1838 = vshll.u32 %v1837, 30
      %v1839 = vsub.s32 %v1835, %v1838
      %vm1840 = vcmp.lt.s32.totalorder %v1839, 0
      %v1841 = vsub.s32 0, %v1839
      %v1842 = vsel %vm1840, %v1841, %v1839
      %v1843 = vclz %v1842
      %v1844 = vsub.s32 %v1843, 2
      %vm1845 = vcmp.gt.s32.totalorder 0, %v1844
      %v1846 = vsel %vm1845, 0, %v1844
      %v1847 = vsub.s32 32, %v1846
      %v1848 = vshll.u32 %v1839, %v1846
      %v1849 = vshrl.u32 %v1831, %v1847
      %v1850 = vor.u32 %v1848, %v1849
      %v1851 = vsub.s32 4294967266, %v1846
      %v1852 = vadd.s32 %v1851, 127
      %v1853 = vshll.u32 %v1852, 23
      %v1854 = vor.u32 4788187, %v1853
      %v1855 = vand.u32 2147483647, %v1854
      %v1857 = vcvt.s32.f32 %v1850
      %v1858 = vmul.f32 %v1857, %v1855
      %v1859 = vxor.u32 %v1858, 2147483648
      %v1860 = vsel %vm1777, %v1859, %v1858
      %v1861 = vsub.s32 4, %v1837
      %v1862 = vsel %vm1777, %v1861, %v1837
      %v1863 = vsel %vm1776, %v935, %v1860
      %v1864 = vsel %vm1776, 0, %v1862
      %v1865 = vcosq.f32.pop %v1863
      %v1866 = vsinq.f32.pop %v1863
      %vm1867 = vweird.f32 %v935
      %v1868 = vadd.s32 %v1864, 3
      %v1869 = vand.u32 %v1868, 3
      %vm1870 = vcmp.lt.s32.totalorder %v1869, 2
      %vm1871 = vcmp.eq.s32.totalorder %v1869, 0
      %v1872 = vxor.u32 %v1866, 2147483648
      %v1873 = vsel %vm1871, %v1865, %v1872
      %vm1874 = vcmp.eq.s32.totalorder %v1869, 2
      %v1875 = vxor.u32 %v1865, 2147483648
      %v1876 = vsel %vm1874, %v1875, %v1866
      %v1877 = vsel %vm1870, %v1873, %v1876
      %v1878 = vsel %vm1867, nan, %v1877
      %v1879 = vand.u32 2147483647, %v936
      %vm1880 = vcmp.le.f32.partialorder %v1879, 0.7853982
      %vm1881 = vcmp.lt.s32.totalorder %v936, 0
      %v1882 = vand.u32 %v936, 2139095040
      %v1883 = vshrl.u32 %v1882, 23
      %v1884 = vsub.s32 %v1883, 127
      %v1885 = vand.u32 2147483647, %v936
      %v1886 = vand.u32 %v1885, 8388607
      %v1887 = vor.u32 %v1886, 8388608
      %v1888 = vsub.s32 0, %v1887
      %v1889 = vadd.s32 %v1884, 1
      %vm1890 = vcmp.gt.s32.totalorder %v1889, 0
      %v1891 = vsel %vm1890, %v1889, 0
      %v1892 = vshrl.u32 %v1891, 5
      %v1893 = vand.u32 %v1891, 31
      %v1894 = vsub.s32 32, %v1893
      %v1895 = vshrl.u32 683565275, %v1894
      %v1896 = vshll.u32 683565275, %v1893
      %v1897 = vshrl.u32 2475754826, %v1894
      %v1898 = vor.u32 %v1896, %v1897
      %v1899 = vshll.u32 2475754826, %v1893
      %v1900 = vshrl.u32 2131351028, %v1894
      %v1901 = vor.u32 %v1899, %v1900
      %v1902 = vshll.u32 2131351028, %v1893
      %v1903 = vshrl.u32 2102212464, %v1894
      %v1904 = vor.u32 %v1902, %v1903
      %v1905 = vshll.u32 2102212464, %v1893
      %v1906 = vshrl.u32 920167782, %v1894
      %v1907 = vor.u32 %v1905, %v1906
      %v1908 = vshll.u32 920167782, %v1893
      %v1909 = vshrl.u32 1326507024, %v1894
      %v1910 = vor.u32 %v1908, %v1909
      %vm1911 = vcmp.lt.s32.totalorder %v1892, 1
      %vm1912 = vcmp.lt.s32.totalorder %v1892, 2
      %vm1913 = vcmp.lt.s32.totalorder %v1892, 3
      %vm1914 = vcmp.lt.s32.totalorder %v1892, 4
      %v1915 = vsel %vm1911, %v1895, %v1898
      %v1916 = vsel %vm1914, %v1904, 2102212464
      %v1917 = vsel %vm1913, %v1901, %v1916
      %v1918 = vsel %vm1912, %v1915, %v1917
      %v1919 = vsel %vm1911, %v1898, %v1901
      %v1920 = vsel %vm1914, %v1907, 920167782
      %v1921 = vsel %vm1913, %v1904, %v1920
      %v1922 = vsel %vm1912, %v1919, %v1921
      %v1923 = vsel %vm1911, %v1901, %v1904
      %v1924 = vsel %vm1914, %v1910, 1326507024
      %v1925 = vsel %vm1913, %v1907, %v1924
      %v1926 = vsel %vm1912, %v1923, %v1925
      %v1927 = vshll.u32 %v1887, 8
      %v1928 = vmul.u32.u64.compose %v1927, %v1926
      %v1929 = vextract.low.u32 %v1928
      %v1930 = vextract.high.u32 %v1928
      %v1931 = vmul.u32.u64.compose %v1927, %v1922
      %v1932 = vextract.low.u32 %v1931
      %v1933 = vextract.high.u32 %v1931
      %v1934 = vmul.u32 %v1927, %v1918
      %v1935 = vadd.s32 %v1930, %v1932
      %vm1936 = vc.u32 %v1930, %v1932
      %v1937 = vadd.s32 %v1933, 1
      %v1938 = vsel %vm1936, %v1937, %v1933
      %v1939 = vadd.s32 %v1934, %v1938
      %v1940 = vadd.s32 %v1939, 536870912
      %v1941 = vshrl.u32 %v1940, 30
      %v1942 = vshll.u32 %v1941, 30
      %v1943 = vsub.s32 %v1939, %v1942
      %vm1944 = vcmp.lt.s32.totalorder %v1943, 0
      %v1945 = vsub.s32 0, %v1943
      %v1946 = vsel %vm1944, %v1945, %v1943
      %v1947 = vclz %v1946
      %v1948 = vsub.s32 %v1947, 2
      %vm1949 = vcmp.gt.s32.totalorder 0, %v1948
      %v1950 = vsel %vm1949, 0, %v1948
      %v1951 = vsub.s32 32, %v1950
      %v1952 = vshll.u32 %v1943, %v1950
      %v1953 = vshrl.u32 %v1935, %v1951
      %v1954 = vor.u32 %v1952, %v1953
      %v1955 = vsub.s32 4294967266, %v1950
      %v1956 = vadd.s32 %v1955, 127
      %v1957 = vshll.u32 %v1956, 23
      %v1958 = vor.u32 4788187, %v1957
      %v1959 = vand.u32 2147483647, %v1958
      %v1961 = vcvt.s32.f32 %v1954
      %v1962 = vmul.f32 %v1961, %v1959
      %v1963 = vxor.u32 %v1962, 2147483648
      %v1964 = vsel %vm1881, %v1963, %v1962
      %v1965 = vsub.s32 4, %v1941
      %v1966 = vsel %vm1881, %v1965, %v1941
      %v1967 = vsel %vm1880, %v936, %v1964
      %v1968 = vsel %vm1880, 0, %v1966
      %v1969 = vcosq.f32.pop %v1967
      %v1970 = vsinq.f32.pop %v1967
      %vm1971 = vweird.f32 %v936
      %v1972 = vadd.s32 %v1968, 3
      %v1973 = vand.u32 %v1972, 3
      %vm1974 = vcmp.lt.s32.totalorder %v1973, 2
      %vm1975 = vcmp.eq.s32.totalorder %v1973, 0
      %v1976 = vxor.u32 %v1970, 2147483648
      %v1977 = vsel %vm1975, %v1969, %v1976
      %vm1978 = vcmp.eq.s32.totalorder %v1973, 2
      %v1979 = vxor.u32 %v1969, 2147483648
      %v1980 = vsel %vm1978, %v1979, %v1970
      %v1981 = vsel %vm1974, %v1977, %v1980
      %v1982 = vsel %vm1971, nan, %v1981
      %v1983 = vand.u32 2147483647, %v937
      %vm1984 = vcmp.le.f32.partialorder %v1983, 0.7853982
      %vm1985 = vcmp.lt.s32.totalorder %v937, 0
      %v1986 = vand.u32 %v937, 2139095040
      %v1987 = vshrl.u32 %v1986, 23
      %v1988 = vsub.s32 %v1987, 127
      %v1989 = vand.u32 2147483647, %v937
      %v1990 = vand.u32 %v1989, 8388607
      %v1991 = vor.u32 %v1990, 8388608
      %v1992 = vsub.s32 0, %v1991
      %v1993 = vadd.s32 %v1988, 1
      %vm1994 = vcmp.gt.s32.totalorder %v1993, 0
      %v1995 = vsel %vm1994, %v1993, 0
      %v1996 = vshrl.u32 %v1995, 5
      %v1997 = vand.u32 %v1995, 31
      %v1998 = vsub.s32 32, %v1997
      %v1999 = vshrl.u32 683565275, %v1998
      %v2000 = vshll.u32 683565275, %v1997
      %v2001 = vshrl.u32 2475754826, %v1998
      %v2002 = vor.u32 %v2000, %v2001
      %v2003 = vshll.u32 2475754826, %v1997
      %v2004 = vshrl.u32 2131351028, %v1998
      %v2005 = vor.u32 %v2003, %v2004
      %v2006 = vshll.u32 2131351028, %v1997
      %v2007 = vshrl.u32 2102212464, %v1998
      %v2008 = vor.u32 %v2006, %v2007
      %v2009 = vshll.u32 2102212464, %v1997
      %v2010 = vshrl.u32 920167782, %v1998
      %v2011 = vor.u32 %v2009, %v2010
      %v2012 = vshll.u32 920167782, %v1997
      %v2013 = vshrl.u32 1326507024, %v1998
      %v2014 = vor.u32 %v2012, %v2013
      %vm2015 = vcmp.lt.s32.totalorder %v1996, 1
      %vm2016 = vcmp.lt.s32.totalorder %v1996, 2
      %vm2017 = vcmp.lt.s32.totalorder %v1996, 3
      %vm2018 = vcmp.lt.s32.totalorder %v1996, 4
      %v2019 = vsel %vm2015, %v1999, %v2002
      %v2020 = vsel %vm2018, %v2008, 2102212464
      %v2021 = vsel %vm2017, %v2005, %v2020
      %v2022 = vsel %vm2016, %v2019, %v2021
      %v2023 = vsel %vm2015, %v2002, %v2005
      %v2024 = vsel %vm2018, %v2011, 920167782
      %v2025 = vsel %vm2017, %v2008, %v2024
      %v2026 = vsel %vm2016, %v2023, %v2025
      %v2027 = vsel %vm2015, %v2005, %v2008
      %v2028 = vsel %vm2018, %v2014, 1326507024
      %v2029 = vsel %vm2017, %v2011, %v2028
      %v2030 = vsel %vm2016, %v2027, %v2029
      %v2031 = vshll.u32 %v1991, 8
      %v2032 = vmul.u32.u64.compose %v2031, %v2030
      %v2033 = vextract.low.u32 %v2032
      %v2034 = vextract.high.u32 %v2032
      %v2035 = vmul.u32.u64.compose %v2031, %v2026
      %v2036 = vextract.low.u32 %v2035
      %v2037 = vextract.high.u32 %v2035
      %v2038 = vmul.u32 %v2031, %v2022
      %v2039 = vadd.s32 %v2034, %v2036
      %vm2040 = vc.u32 %v2034, %v2036
      %v2041 = vadd.s32 %v2037, 1
      %v2042 = vsel %vm2040, %v2041, %v2037
      %v2043 = vadd.s32 %v2038, %v2042
      %v2044 = vadd.s32 %v2043, 536870912
      %v2045 = vshrl.u32 %v2044, 30
      %v2046 = vshll.u32 %v2045, 30
      %v2047 = vsub.s32 %v2043, %v2046
      %vm2048 = vcmp.lt.s32.totalorder %v2047, 0
      %v2049 = vsub.s32 0, %v2047
      %v2050 = vsel %vm2048, %v2049, %v2047
      %v2051 = vclz %v2050
      %v2052 = vsub.s32 %v2051, 2
      %vm2053 = vcmp.gt.s32.totalorder 0, %v2052
      %v2054 = vsel %vm2053, 0, %v2052
      %v2055 = vsub.s32 32, %v2054
      %v2056 = vshll.u32 %v2047, %v2054
      %v2057 = vshrl.u32 %v2039, %v2055
      %v2058 = vor.u32 %v2056, %v2057
      %v2059 = vsub.s32 4294967266, %v2054
      %v2060 = vadd.s32 %v2059, 127
      %v2061 = vshll.u32 %v2060, 23
      %v2062 = vor.u32 4788187, %v2061
      %v2063 = vand.u32 2147483647, %v2062
      %v2065 = vcvt.s32.f32 %v2058
      %v2066 = vmul.f32 %v2065, %v2063
      %v2067 = vxor.u32 %v2066, 2147483648
      %v2068 = vsel %vm1985, %v2067, %v2066
      %v2069 = vsub.s32 4, %v2045
      %v2070 = vsel %vm1985, %v2069, %v2045
      %v2071 = vsel %vm1984, %v937, %v2068
      %v2072 = vsel %vm1984, 0, %v2070
      %v2073 = vcosq.f32.pop %v2071
      %v2074 = vsinq.f32.pop %v2071
      %vm2075 = vweird.f32 %v937
      %v2076 = vadd.s32 %v2072, 3
      %v2077 = vand.u32 %v2076, 3
      %vm2078 = vcmp.lt.s32.totalorder %v2077, 2
      %vm2079 = vcmp.eq.s32.totalorder %v2077, 0
      %v2080 = vxor.u32 %v2074, 2147483648
      %v2081 = vsel %vm2079, %v2073, %v2080
      %vm2082 = vcmp.eq.s32.totalorder %v2077, 2
      %v2083 = vxor.u32 %v2073, 2147483648
      %v2084 = vsel %vm2082, %v2083, %v2074
      %v2085 = vsel %vm2078, %v2081, %v2084
      %v2086 = vsel %vm2075, nan, %v2085
      %v2087 = vand.u32 2147483647, %v938
      %vm2088 = vcmp.le.f32.partialorder %v2087, 0.7853982
      %vm2089 = vcmp.lt.s32.totalorder %v938, 0
      %v2090 = vand.u32 %v938, 2139095040
      %v2091 = vshrl.u32 %v2090, 23
      %v2092 = vsub.s32 %v2091, 127
      %v2093 = vand.u32 2147483647, %v938
      %v2094 = vand.u32 %v2093, 8388607
      %v2095 = vor.u32 %v2094, 8388608
      %v2096 = vsub.s32 0, %v2095
      %v2097 = vadd.s32 %v2092, 1
      %vm2098 = vcmp.gt.s32.totalorder %v2097, 0
      %v2099 = vsel %vm2098, %v2097, 0
      %v2100 = vshrl.u32 %v2099, 5
      %v2101 = vand.u32 %v2099, 31
      %v2102 = vsub.s32 32, %v2101
      %v2103 = vshrl.u32 683565275, %v2102
      %v2104 = vshll.u32 683565275, %v2101
      %v2105 = vshrl.u32 2475754826, %v2102
      %v2106 = vor.u32 %v2104, %v2105
      %v2107 = vshll.u32 2475754826, %v2101
      %v2108 = vshrl.u32 2131351028, %v2102
      %v2109 = vor.u32 %v2107, %v2108
      %v2110 = vshll.u32 2131351028, %v2101
      %v2111 = vshrl.u32 2102212464, %v2102
      %v2112 = vor.u32 %v2110, %v2111
      %v2113 = vshll.u32 2102212464, %v2101
      %v2114 = vshrl.u32 920167782, %v2102
      %v2115 = vor.u32 %v2113, %v2114
      %v2116 = vshll.u32 920167782, %v2101
      %v2117 = vshrl.u32 1326507024, %v2102
      %v2118 = vor.u32 %v2116, %v2117
      %vm2119 = vcmp.lt.s32.totalorder %v2100, 1
      %vm2120 = vcmp.lt.s32.totalorder %v2100, 2
      %vm2121 = vcmp.lt.s32.totalorder %v2100, 3
      %vm2122 = vcmp.lt.s32.totalorder %v2100, 4
      %v2123 = vsel %vm2119, %v2103, %v2106
      %v2124 = vsel %vm2122, %v2112, 2102212464
      %v2125 = vsel %vm2121, %v2109, %v2124
      %v2126 = vsel %vm2120, %v2123, %v2125
      %v2127 = vsel %vm2119, %v2106, %v2109
      %v2128 = vsel %vm2122, %v2115, 920167782
      %v2129 = vsel %vm2121, %v2112, %v2128
      %v2130 = vsel %vm2120, %v2127, %v2129
      %v2131 = vsel %vm2119, %v2109, %v2112
      %v2132 = vsel %vm2122, %v2118, 1326507024
      %v2133 = vsel %vm2121, %v2115, %v2132
      %v2134 = vsel %vm2120, %v2131, %v2133
      %v2135 = vshll.u32 %v2095, 8
      %v2136 = vmul.u32.u64.compose %v2135, %v2134
      %v2137 = vextract.low.u32 %v2136
      %v2138 = vextract.high.u32 %v2136
      %v2139 = vmul.u32.u64.compose %v2135, %v2130
      %v2140 = vextract.low.u32 %v2139
      %v2141 = vextract.high.u32 %v2139
      %v2142 = vmul.u32 %v2135, %v2126
      %v2143 = vadd.s32 %v2138, %v2140
      %vm2144 = vc.u32 %v2138, %v2140
      %v2145 = vadd.s32 %v2141, 1
      %v2146 = vsel %vm2144, %v2145, %v2141
      %v2147 = vadd.s32 %v2142, %v2146
      %v2148 = vadd.s32 %v2147, 536870912
      %v2149 = vshrl.u32 %v2148, 30
      %v2150 = vshll.u32 %v2149, 30
      %v2151 = vsub.s32 %v2147, %v2150
      %vm2152 = vcmp.lt.s32.totalorder %v2151, 0
      %v2153 = vsub.s32 0, %v2151
      %v2154 = vsel %vm2152, %v2153, %v2151
      %v2155 = vclz %v2154
      %v2156 = vsub.s32 %v2155, 2
      %vm2157 = vcmp.gt.s32.totalorder 0, %v2156
      %v2158 = vsel %vm2157, 0, %v2156
      %v2159 = vsub.s32 32, %v2158
      %v2160 = vshll.u32 %v2151, %v2158
      %v2161 = vshrl.u32 %v2143, %v2159
      %v2162 = vor.u32 %v2160, %v2161
      %v2163 = vsub.s32 4294967266, %v2158
      %v2164 = vadd.s32 %v2163, 127
      %v2165 = vshll.u32 %v2164, 23
      %v2166 = vor.u32 4788187, %v2165
      %v2167 = vand.u32 2147483647, %v2166
      %v2169 = vcvt.s32.f32 %v2162
      %v2170 = vmul.f32 %v2169, %v2167
      %v2171 = vxor.u32 %v2170, 2147483648
      %v2172 = vsel %vm2089, %v2171, %v2170
      %v2173 = vsub.s32 4, %v2149
      %v2174 = vsel %vm2089, %v2173, %v2149
      %v2175 = vsel %vm2088, %v938, %v2172
      %v2176 = vsel %vm2088, 0, %v2174
      %v2177 = vcosq.f32.pop %v2175
      %v2178 = vsinq.f32.pop %v2175
      %vm2179 = vweird.f32 %v938
      %v2180 = vadd.s32 %v2176, 3
      %v2181 = vand.u32 %v2180, 3
      %vm2182 = vcmp.lt.s32.totalorder %v2181, 2
      %vm2183 = vcmp.eq.s32.totalorder %v2181, 0
      %v2184 = vxor.u32 %v2178, 2147483648
      %v2185 = vsel %vm2183, %v2177, %v2184
      %vm2186 = vcmp.eq.s32.totalorder %v2181, 2
      %v2187 = vxor.u32 %v2177, 2147483648
      %v2188 = vsel %vm2186, %v2187, %v2178
      %v2189 = vsel %vm2182, %v2185, %v2188
      %v2190 = vsel %vm2179, nan, %v2189
      %v2191 = vand.u32 2147483647, %v939
      %vm2192 = vcmp.le.f32.partialorder %v2191, 0.7853982
      %vm2193 = vcmp.lt.s32.totalorder %v939, 0
      %v2194 = vand.u32 %v939, 2139095040
      %v2195 = vshrl.u32 %v2194, 23
      %v2196 = vsub.s32 %v2195, 127
      %v2197 = vand.u32 2147483647, %v939
      %v2198 = vand.u32 %v2197, 8388607
      %v2199 = vor.u32 %v2198, 8388608
      %v2200 = vsub.s32 0, %v2199
      %v2201 = vadd.s32 %v2196, 1
      %vm2202 = vcmp.gt.s32.totalorder %v2201, 0
      %v2203 = vsel %vm2202, %v2201, 0
      %v2204 = vshrl.u32 %v2203, 5
      %v2205 = vand.u32 %v2203, 31
      %v2206 = vsub.s32 32, %v2205
      %v2207 = vshrl.u32 683565275, %v2206
      %v2208 = vshll.u32 683565275, %v2205
      %v2209 = vshrl.u32 2475754826, %v2206
      %v2210 = vor.u32 %v2208, %v2209
      %v2211 = vshll.u32 2475754826, %v2205
      %v2212 = vshrl.u32 2131351028, %v2206
      %v2213 = vor.u32 %v2211, %v2212
      %v2214 = vshll.u32 2131351028, %v2205
      %v2215 = vshrl.u32 2102212464, %v2206
      %v2216 = vor.u32 %v2214, %v2215
      %v2217 = vshll.u32 2102212464, %v2205
      %v2218 = vshrl.u32 920167782, %v2206
      %v2219 = vor.u32 %v2217, %v2218
      %v2220 = vshll.u32 920167782, %v2205
      %v2221 = vshrl.u32 1326507024, %v2206
      %v2222 = vor.u32 %v2220, %v2221
      %vm2223 = vcmp.lt.s32.totalorder %v2204, 1
      %vm2224 = vcmp.lt.s32.totalorder %v2204, 2
      %vm2225 = vcmp.lt.s32.totalorder %v2204, 3
      %vm2226 = vcmp.lt.s32.totalorder %v2204, 4
      %v2227 = vsel %vm2223, %v2207, %v2210
      %v2228 = vsel %vm2226, %v2216, 2102212464
      %v2229 = vsel %vm2225, %v2213, %v2228
      %v2230 = vsel %vm2224, %v2227, %v2229
      %v2231 = vsel %vm2223, %v2210, %v2213
      %v2232 = vsel %vm2226, %v2219, 920167782
      %v2233 = vsel %vm2225, %v2216, %v2232
      %v2234 = vsel %vm2224, %v2231, %v2233
      %v2235 = vsel %vm2223, %v2213, %v2216
      %v2236 = vsel %vm2226, %v2222, 1326507024
      %v2237 = vsel %vm2225, %v2219, %v2236
      %v2238 = vsel %vm2224, %v2235, %v2237
      %v2239 = vshll.u32 %v2199, 8
      %v2240 = vmul.u32.u64.compose %v2239, %v2238
      %v2241 = vextract.low.u32 %v2240
      %v2242 = vextract.high.u32 %v2240
      %v2243 = vmul.u32.u64.compose %v2239, %v2234
      %v2244 = vextract.low.u32 %v2243
      %v2245 = vextract.high.u32 %v2243
      %v2246 = vmul.u32 %v2239, %v2230
      %v2247 = vadd.s32 %v2242, %v2244
      %vm2248 = vc.u32 %v2242, %v2244
      %v2249 = vadd.s32 %v2245, 1
      %v2250 = vsel %vm2248, %v2249, %v2245
      %v2251 = vadd.s32 %v2246, %v2250
      %v2252 = vadd.s32 %v2251, 536870912
      %v2253 = vshrl.u32 %v2252, 30
      %v2254 = vshll.u32 %v2253, 30
      %v2255 = vsub.s32 %v2251, %v2254
      %vm2256 = vcmp.lt.s32.totalorder %v2255, 0
      %v2257 = vsub.s32 0, %v2255
      %v2258 = vsel %vm2256, %v2257, %v2255
      %v2259 = vclz %v2258
      %v2260 = vsub.s32 %v2259, 2
      %vm2261 = vcmp.gt.s32.totalorder 0, %v2260
      %v2262 = vsel %vm2261, 0, %v2260
      %v2263 = vsub.s32 32, %v2262
      %v2264 = vshll.u32 %v2255, %v2262
      %v2265 = vshrl.u32 %v2247, %v2263
      %v2266 = vor.u32 %v2264, %v2265
      %v2267 = vsub.s32 4294967266, %v2262
      %v2268 = vadd.s32 %v2267, 127
      %v2269 = vshll.u32 %v2268, 23
      %v2270 = vor.u32 4788187, %v2269
      %v2271 = vand.u32 2147483647, %v2270
      %v2273 = vcvt.s32.f32 %v2266
      %v2274 = vmul.f32 %v2273, %v2271
      %v2275 = vxor.u32 %v2274, 2147483648
      %v2276 = vsel %vm2193, %v2275, %v2274
      %v2277 = vsub.s32 4, %v2253
      %v2278 = vsel %vm2193, %v2277, %v2253
      %v2279 = vsel %vm2192, %v939, %v2276
      %v2280 = vsel %vm2192, 0, %v2278
      %v2281 = vcosq.f32.pop %v2279
      %v2282 = vsinq.f32.pop %v2279
      %vm2283 = vweird.f32 %v939
      %v2284 = vadd.s32 %v2280, 3
      %v2285 = vand.u32 %v2284, 3
      %vm2286 = vcmp.lt.s32.totalorder %v2285, 2
      %vm2287 = vcmp.eq.s32.totalorder %v2285, 0
      %v2288 = vxor.u32 %v2282, 2147483648
      %v2289 = vsel %vm2287, %v2281, %v2288
      %vm2290 = vcmp.eq.s32.totalorder %v2285, 2
      %v2291 = vxor.u32 %v2281, 2147483648
      %v2292 = vsel %vm2290, %v2291, %v2282
      %v2293 = vsel %vm2286, %v2289, %v2292
      %v2294 = vsel %vm2283, nan, %v2293
      %v2295 = vand.u32 2147483647, %v940
      %vm2296 = vcmp.le.f32.partialorder %v2295, 0.7853982
      %vm2297 = vcmp.lt.s32.totalorder %v940, 0
      %v2298 = vand.u32 %v940, 2139095040
      %v2299 = vshrl.u32 %v2298, 23
      %v2300 = vsub.s32 %v2299, 127
      %v2301 = vand.u32 2147483647, %v940
      %v2302 = vand.u32 %v2301, 8388607
      %v2303 = vor.u32 %v2302, 8388608
      %v2304 = vsub.s32 0, %v2303
      %v2305 = vadd.s32 %v2300, 1
      %vm2306 = vcmp.gt.s32.totalorder %v2305, 0
      %v2307 = vsel %vm2306, %v2305, 0
      %v2308 = vshrl.u32 %v2307, 5
      %v2309 = vand.u32 %v2307, 31
      %v2310 = vsub.s32 32, %v2309
      %v2311 = vshrl.u32 683565275, %v2310
      %v2312 = vshll.u32 683565275, %v2309
      %v2313 = vshrl.u32 2475754826, %v2310
      %v2314 = vor.u32 %v2312, %v2313
      %v2315 = vshll.u32 2475754826, %v2309
      %v2316 = vshrl.u32 2131351028, %v2310
      %v2317 = vor.u32 %v2315, %v2316
      %v2318 = vshll.u32 2131351028, %v2309
      %v2319 = vshrl.u32 2102212464, %v2310
      %v2320 = vor.u32 %v2318, %v2319
      %v2321 = vshll.u32 2102212464, %v2309
      %v2322 = vshrl.u32 920167782, %v2310
      %v2323 = vor.u32 %v2321, %v2322
      %v2324 = vshll.u32 920167782, %v2309
      %v2325 = vshrl.u32 1326507024, %v2310
      %v2326 = vor.u32 %v2324, %v2325
      %vm2327 = vcmp.lt.s32.totalorder %v2308, 1
      %vm2328 = vcmp.lt.s32.totalorder %v2308, 2
      %vm2329 = vcmp.lt.s32.totalorder %v2308, 3
      %vm2330 = vcmp.lt.s32.totalorder %v2308, 4
      %v2331 = vsel %vm2327, %v2311, %v2314
      %v2332 = vsel %vm2330, %v2320, 2102212464
      %v2333 = vsel %vm2329, %v2317, %v2332
      %v2334 = vsel %vm2328, %v2331, %v2333
      %v2335 = vsel %vm2327, %v2314, %v2317
      %v2336 = vsel %vm2330, %v2323, 920167782
      %v2337 = vsel %vm2329, %v2320, %v2336
      %v2338 = vsel %vm2328, %v2335, %v2337
      %v2339 = vsel %vm2327, %v2317, %v2320
      %v2340 = vsel %vm2330, %v2326, 1326507024
      %v2341 = vsel %vm2329, %v2323, %v2340
      %v2342 = vsel %vm2328, %v2339, %v2341
      %v2343 = vshll.u32 %v2303, 8
      %v2344 = vmul.u32.u64.compose %v2343, %v2342
      %v2345 = vextract.low.u32 %v2344
      %v2346 = vextract.high.u32 %v2344
      %v2347 = vmul.u32.u64.compose %v2343, %v2338
      %v2348 = vextract.low.u32 %v2347
      %v2349 = vextract.high.u32 %v2347
      %v2350 = vmul.u32 %v2343, %v2334
      %v2351 = vadd.s32 %v2346, %v2348
      %vm2352 = vc.u32 %v2346, %v2348
      %v2353 = vadd.s32 %v2349, 1
      %v2354 = vsel %vm2352, %v2353, %v2349
      %v2355 = vadd.s32 %v2350, %v2354
      %v2356 = vadd.s32 %v2355, 536870912
      %v2357 = vshrl.u32 %v2356, 30
      %v2358 = vshll.u32 %v2357, 30
      %v2359 = vsub.s32 %v2355, %v2358
      %vm2360 = vcmp.lt.s32.totalorder %v2359, 0
      %v2361 = vsub.s32 0, %v2359
      %v2362 = vsel %vm2360, %v2361, %v2359
      %v2363 = vclz %v2362
      %v2364 = vsub.s32 %v2363, 2
      %vm2365 = vcmp.gt.s32.totalorder 0, %v2364
      %v2366 = vsel %vm2365, 0, %v2364
      %v2367 = vsub.s32 32, %v2366
      %v2368 = vshll.u32 %v2359, %v2366
      %v2369 = vshrl.u32 %v2351, %v2367
      %v2370 = vor.u32 %v2368, %v2369
      %v2371 = vsub.s32 4294967266, %v2366
      %v2372 = vadd.s32 %v2371, 127
      %v2373 = vshll.u32 %v2372, 23
      %v2374 = vor.u32 4788187, %v2373
      %v2375 = vand.u32 2147483647, %v2374
      %v2377 = vcvt.s32.f32 %v2370
      %v2378 = vmul.f32 %v2377, %v2375
      %v2379 = vxor.u32 %v2378, 2147483648
      %v2380 = vsel %vm2297, %v2379, %v2378
      %v2381 = vsub.s32 4, %v2357
      %v2382 = vsel %vm2297, %v2381, %v2357
      %v2383 = vsel %vm2296, %v940, %v2380
      %v2384 = vsel %vm2296, 0, %v2382
      %v2385 = vcosq.f32.pop %v2383
      %v2386 = vsinq.f32.pop %v2383
      %vm2387 = vweird.f32 %v940
      %v2388 = vadd.s32 %v2384, 3
      %v2389 = vand.u32 %v2388, 3
      %vm2390 = vcmp.lt.s32.totalorder %v2389, 2
      %vm2391 = vcmp.eq.s32.totalorder %v2389, 0
      %v2392 = vxor.u32 %v2386, 2147483648
      %v2393 = vsel %vm2391, %v2385, %v2392
      %vm2394 = vcmp.eq.s32.totalorder %v2389, 2
      %v2395 = vxor.u32 %v2385, 2147483648
      %v2396 = vsel %vm2394, %v2395, %v2386
      %v2397 = vsel %vm2390, %v2393, %v2396
      %v2398 = vsel %vm2387, nan, %v2397
      %v2399 = vand.u32 2147483647, %v941
      %vm2400 = vcmp.le.f32.partialorder %v2399, 0.7853982
      %vm2401 = vcmp.lt.s32.totalorder %v941, 0
      %v2402 = vand.u32 %v941, 2139095040
      %v2403 = vshrl.u32 %v2402, 23
      %v2404 = vsub.s32 %v2403, 127
      %v2405 = vand.u32 2147483647, %v941
      %v2406 = vand.u32 %v2405, 8388607
      %v2407 = vor.u32 %v2406, 8388608
      %v2408 = vsub.s32 0, %v2407
      %v2409 = vadd.s32 %v2404, 1
      %vm2410 = vcmp.gt.s32.totalorder %v2409, 0
      %v2411 = vsel %vm2410, %v2409, 0
      %v2412 = vshrl.u32 %v2411, 5
      %v2413 = vand.u32 %v2411, 31
      %v2414 = vsub.s32 32, %v2413
      %v2415 = vshrl.u32 683565275, %v2414
      %v2416 = vshll.u32 683565275, %v2413
      %v2417 = vshrl.u32 2475754826, %v2414
      %v2418 = vor.u32 %v2416, %v2417
      %v2419 = vshll.u32 2475754826, %v2413
      %v2420 = vshrl.u32 2131351028, %v2414
      %v2421 = vor.u32 %v2419, %v2420
      %v2422 = vshll.u32 2131351028, %v2413
      %v2423 = vshrl.u32 2102212464, %v2414
      %v2424 = vor.u32 %v2422, %v2423
      %v2425 = vshll.u32 2102212464, %v2413
      %v2426 = vshrl.u32 920167782, %v2414
      %v2427 = vor.u32 %v2425, %v2426
      %v2428 = vshll.u32 920167782, %v2413
      %v2429 = vshrl.u32 1326507024, %v2414
      %v2430 = vor.u32 %v2428, %v2429
      %vm2431 = vcmp.lt.s32.totalorder %v2412, 1
      %vm2432 = vcmp.lt.s32.totalorder %v2412, 2
      %vm2433 = vcmp.lt.s32.totalorder %v2412, 3
      %vm2434 = vcmp.lt.s32.totalorder %v2412, 4
      %v2435 = vsel %vm2431, %v2415, %v2418
      %v2436 = vsel %vm2434, %v2424, 2102212464
      %v2437 = vsel %vm2433, %v2421, %v2436
      %v2438 = vsel %vm2432, %v2435, %v2437
      %v2439 = vsel %vm2431, %v2418, %v2421
      %v2440 = vsel %vm2434, %v2427, 920167782
      %v2441 = vsel %vm2433, %v2424, %v2440
      %v2442 = vsel %vm2432, %v2439, %v2441
      %v2443 = vsel %vm2431, %v2421, %v2424
      %v2444 = vsel %vm2434, %v2430, 1326507024
      %v2445 = vsel %vm2433, %v2427, %v2444
      %v2446 = vsel %vm2432, %v2443, %v2445
      %v2447 = vshll.u32 %v2407, 8
      %v2448 = vmul.u32.u64.compose %v2447, %v2446
      %v2449 = vextract.low.u32 %v2448
      %v2450 = vextract.high.u32 %v2448
      %v2451 = vmul.u32.u64.compose %v2447, %v2442
      %v2452 = vextract.low.u32 %v2451
      %v2453 = vextract.high.u32 %v2451
      %v2454 = vmul.u32 %v2447, %v2438
      %v2455 = vadd.s32 %v2450, %v2452
      %vm2456 = vc.u32 %v2450, %v2452
      %v2457 = vadd.s32 %v2453, 1
      %v2458 = vsel %vm2456, %v2457, %v2453
      %v2459 = vadd.s32 %v2454, %v2458
      %v2460 = vadd.s32 %v2459, 536870912
      %v2461 = vshrl.u32 %v2460, 30
      %v2462 = vshll.u32 %v2461, 30
      %v2463 = vsub.s32 %v2459, %v2462
      %vm2464 = vcmp.lt.s32.totalorder %v2463, 0
      %v2465 = vsub.s32 0, %v2463
      %v2466 = vsel %vm2464, %v2465, %v2463
      %v2467 = vclz %v2466
      %v2468 = vsub.s32 %v2467, 2
      %vm2469 = vcmp.gt.s32.totalorder 0, %v2468
      %v2470 = vsel %vm2469, 0, %v2468
      %v2471 = vsub.s32 32, %v2470
      %v2472 = vshll.u32 %v2463, %v2470
      %v2473 = vshrl.u32 %v2455, %v2471
      %v2474 = vor.u32 %v2472, %v2473
      %v2475 = vsub.s32 4294967266, %v2470
      %v2476 = vadd.s32 %v2475, 127
      %v2477 = vshll.u32 %v2476, 23
      %v2478 = vor.u32 4788187, %v2477
      %v2479 = vand.u32 2147483647, %v2478
      %v2481 = vcvt.s32.f32 %v2474
      %v2482 = vmul.f32 %v2481, %v2479
      %v2483 = vxor.u32 %v2482, 2147483648
      %v2484 = vsel %vm2401, %v2483, %v2482
      %v2485 = vsub.s32 4, %v2461
      %v2486 = vsel %vm2401, %v2485, %v2461
      %v2487 = vsel %vm2400, %v941, %v2484
      %v2488 = vsel %vm2400, 0, %v2486
      %v2489 = vcosq.f32.pop %v2487
      %v2490 = vsinq.f32.pop %v2487
      %vm2491 = vweird.f32 %v941
      %v2492 = vadd.s32 %v2488, 3
      %v2493 = vand.u32 %v2492, 3
      %vm2494 = vcmp.lt.s32.totalorder %v2493, 2
      %vm2495 = vcmp.eq.s32.totalorder %v2493, 0
      %v2496 = vxor.u32 %v2490, 2147483648
      %v2497 = vsel %vm2495, %v2489, %v2496
      %vm2498 = vcmp.eq.s32.totalorder %v2493, 2
      %v2499 = vxor.u32 %v2489, 2147483648
      %v2500 = vsel %vm2498, %v2499, %v2490
      %v2501 = vsel %vm2494, %v2497, %v2500
      %v2502 = vsel %vm2491, nan, %v2501
      %v2503 = vand.u32 2147483647, %v942
      %vm2504 = vcmp.le.f32.partialorder %v2503, 0.7853982
      %vm2505 = vcmp.lt.s32.totalorder %v942, 0
      %v2506 = vand.u32 %v942, 2139095040
      %v2507 = vshrl.u32 %v2506, 23
      %v2508 = vsub.s32 %v2507, 127
      %v2509 = vand.u32 2147483647, %v942
      %v2510 = vand.u32 %v2509, 8388607
      %v2511 = vor.u32 %v2510, 8388608
      %v2512 = vsub.s32 0, %v2511
      %v2513 = vadd.s32 %v2508, 1
      %vm2514 = vcmp.gt.s32.totalorder %v2513, 0
      %v2515 = vsel %vm2514, %v2513, 0
      %v2516 = vshrl.u32 %v2515, 5
      %v2517 = vand.u32 %v2515, 31
      %v2518 = vsub.s32 32, %v2517
      %v2519 = vshrl.u32 683565275, %v2518
      %v2520 = vshll.u32 683565275, %v2517
      %v2521 = vshrl.u32 2475754826, %v2518
      %v2522 = vor.u32 %v2520, %v2521
      %v2523 = vshll.u32 2475754826, %v2517
      %v2524 = vshrl.u32 2131351028, %v2518
      %v2525 = vor.u32 %v2523, %v2524
      %v2526 = vshll.u32 2131351028, %v2517
      %v2527 = vshrl.u32 2102212464, %v2518
      %v2528 = vor.u32 %v2526, %v2527
      %v2529 = vshll.u32 2102212464, %v2517
      %v2530 = vshrl.u32 920167782, %v2518
      %v2531 = vor.u32 %v2529, %v2530
      %v2532 = vshll.u32 920167782, %v2517
      %v2533 = vshrl.u32 1326507024, %v2518
      %v2534 = vor.u32 %v2532, %v2533
      %vm2535 = vcmp.lt.s32.totalorder %v2516, 1
      %vm2536 = vcmp.lt.s32.totalorder %v2516, 2
      %vm2537 = vcmp.lt.s32.totalorder %v2516, 3
      %vm2538 = vcmp.lt.s32.totalorder %v2516, 4
      %v2539 = vsel %vm2535, %v2519, %v2522
      %v2540 = vsel %vm2538, %v2528, 2102212464
      %v2541 = vsel %vm2537, %v2525, %v2540
      %v2542 = vsel %vm2536, %v2539, %v2541
      %v2543 = vsel %vm2535, %v2522, %v2525
      %v2544 = vsel %vm2538, %v2531, 920167782
      %v2545 = vsel %vm2537, %v2528, %v2544
      %v2546 = vsel %vm2536, %v2543, %v2545
      %v2547 = vsel %vm2535, %v2525, %v2528
      %v2548 = vsel %vm2538, %v2534, 1326507024
      %v2549 = vsel %vm2537, %v2531, %v2548
      %v2550 = vsel %vm2536, %v2547, %v2549
      %v2551 = vshll.u32 %v2511, 8
      %v2552 = vmul.u32.u64.compose %v2551, %v2550
      %v2553 = vextract.low.u32 %v2552
      %v2554 = vextract.high.u32 %v2552
      %v2555 = vmul.u32.u64.compose %v2551, %v2546
      %v2556 = vextract.low.u32 %v2555
      %v2557 = vextract.high.u32 %v2555
      %v2558 = vmul.u32 %v2551, %v2542
      %v2559 = vadd.s32 %v2554, %v2556
      %vm2560 = vc.u32 %v2554, %v2556
      %v2561 = vadd.s32 %v2557, 1
      %v2562 = vsel %vm2560, %v2561, %v2557
      %v2563 = vadd.s32 %v2558, %v2562
      %v2564 = vadd.s32 %v2563, 536870912
      %v2565 = vshrl.u32 %v2564, 30
      %v2566 = vshll.u32 %v2565, 30
      %v2567 = vsub.s32 %v2563, %v2566
      %vm2568 = vcmp.lt.s32.totalorder %v2567, 0
      %v2569 = vsub.s32 0, %v2567
      %v2570 = vsel %vm2568, %v2569, %v2567
      %v2571 = vclz %v2570
      %v2572 = vsub.s32 %v2571, 2
      %vm2573 = vcmp.gt.s32.totalorder 0, %v2572
      %v2574 = vsel %vm2573, 0, %v2572
      %v2575 = vsub.s32 32, %v2574
      %v2576 = vshll.u32 %v2567, %v2574
      %v2577 = vshrl.u32 %v2559, %v2575
      %v2578 = vor.u32 %v2576, %v2577
      %v2579 = vsub.s32 4294967266, %v2574
      %v2580 = vadd.s32 %v2579, 127
      %v2581 = vshll.u32 %v2580, 23
      %v2582 = vor.u32 4788187, %v2581
      %v2583 = vand.u32 2147483647, %v2582
      %v2585 = vcvt.s32.f32 %v2578
      %v2586 = vmul.f32 %v2585, %v2583
      %v2587 = vxor.u32 %v2586, 2147483648
      %v2588 = vsel %vm2505, %v2587, %v2586
      %v2589 = vsub.s32 4, %v2565
      %v2590 = vsel %vm2505, %v2589, %v2565
      %v2591 = vsel %vm2504, %v942, %v2588
      %v2592 = vsel %vm2504, 0, %v2590
      %v2593 = vcosq.f32.pop %v2591
      %v2594 = vsinq.f32.pop %v2591
      %vm2595 = vweird.f32 %v942
      %v2596 = vadd.s32 %v2592, 3
      %v2597 = vand.u32 %v2596, 3
      %vm2598 = vcmp.lt.s32.totalorder %v2597, 2
      %vm2599 = vcmp.eq.s32.totalorder %v2597, 0
      %v2600 = vxor.u32 %v2594, 2147483648
      %v2601 = vsel %vm2599, %v2593, %v2600
      %vm2602 = vcmp.eq.s32.totalorder %v2597, 2
      %v2603 = vxor.u32 %v2593, 2147483648
      %v2604 = vsel %vm2602, %v2603, %v2594
      %v2605 = vsel %vm2598, %v2601, %v2604
      %v2606 = vsel %vm2595, nan, %v2605
      %v2607 = vpack.c.bf16 %v1150, %v1046
      %v2608 = vpack.c.bf16 %v1358, %v1254
      %v2609 = vpack.c.bf16 %v1566, %v1462
      %v2610 = vpack.c.bf16 %v1774, %v1670
      %v2611 = vpack.c.bf16 %v1982, %v1878
      %v2612 = vpack.c.bf16 %v2190, %v2086
      %v2613 = vpack.c.bf16 %v2398, %v2294
      %v2614 = vpack.c.bf16 %v2606, %v2502
      %v2615 = vld [vmem:[%s4] sm:$0xf]
      %v2616 = vld [vmem:[%s4 + $0x4] sm:$0xf]
      %v2617 = vld [vmem:[%s4 + $0x8] sm:$0xf]
      %v2618 = vld [vmem:[%s4 + $0xc] sm:$0xf]
      %v2619 = vld [vmem:[%s4 + $0x10] sm:$0xf]
      %v2620 = vld [vmem:[%s4 + $0x14] sm:$0xf]
      %v2621 = vld [vmem:[%s4 + $0x18] sm:$0xf]
      %v2622 = vld [vmem:[%s4 + $0x1c] sm:$0xf]
      %v2627 = vunpack.c.l.b16 %v2619
      %v2628 = vunpack.c.l.b16 %v2620
      %v2629 = vunpack.c.l.b16 %v2621
      %v2630 = vunpack.c.l.b16 %v2622
      %v2631 = vpack.c.b16 %v2628, %v2627
      %v2632 = vpack.c.b16 %v2630, %v2629
      %vm2635 = vcmask 261120
      %v2637 = vsel %vm2635, %v2607, 0
      %v2640 = vsel %vm2635, %v2608, 0
      %v2643 = vsel %vm2635, %v2609, 0
      %v2646 = vsel %vm2635, %v2610, 0
      %v2649 = vsel %vm2635, %v2611, 0
      %v2652 = vsel %vm2635, %v2612, 0
      %v2655 = vsel %vm2635, %v2613, 0
      %v2658 = vsel %vm2635, %v2614, 0
      %2660 = vmatprep.subr.bf16.mxu0 0
      %2661 = vmatpush1.bf16.msra.mxu0 %v2631
      %2662 = vmatprep.subr.bf16.mxu0 0
      %2663 = vmatpush1.bf16.msra.mxu0 %v2632
      %2664 = vmatprep.subr.bf16.mxu0 0
      %2665 = vmatpush1.bf16.msra.mxu0 0
      %2666 = vmatprep.subr.bf16.mxu0 0
      %2667 = vmatpush1.bf16.msra.mxu0 0
      %2668 = vmatprep.subr.bf16.mxu0 0
      %2669 = vmatpush1.bf16.msra.mxu0 0
      %2670 = vmatprep.subr.bf16.mxu0 0
      %2671 = vmatpush1.bf16.msra.mxu0 0
      %2672 = vmatprep.subr.bf16.mxu0 0
      %2673 = vmatpush1.bf16.msra.mxu0 0
      %2674 = vmatprep.subr.bf16.mxu0 0
      %2675 = vmatpush1.bf16.msra.mxu0 0
      %2676 = vmatprep.subr.bf16.mxu0 0
      %2677 = vmatpush1.bf16.msra.mxu0 0
      %2678 = vmatprep.subr.bf16.mxu0 0
      %2679 = vmatpush1.bf16.msra.mxu0 0
      %2680 = vmatprep.subr.bf16.mxu0 0
      %2681 = vmatpush1.bf16.msra.mxu0 0
      %2682 = vmatprep.subr.bf16.mxu0 0
      %2683 = vmatpush1.bf16.msra.mxu0 0
      %2684 = vmatprep.subr.bf16.mxu0 0
      %2685 = vmatpush1.bf16.msra.mxu0 0
      %2686 = vmatprep.subr.bf16.mxu0 0
      %2687 = vmatpush1.bf16.msra.mxu0 0
      %2688 = vmatprep.subr.bf16.mxu0 0
      %2689 = vmatpush1.bf16.msra.mxu0 0
      %2690 = vmatprep.subr.bf16.mxu0 0
      %2691 = vmatpush1.bf16.msra.mxu0 0
      %2692 = vmatprep.mubr.bf16.mxu0 0
      %2693 = vmatmul.mubr.bf16.gmra.mrb[0].mxu0 %v2637
      %v2694 = vpop.f32.mrb[0].mxu0
      %v2695 = vadd.f32 0.0, %v2694
      %v2696 = vpop.f32.mrb[0].mxu0
      %v2697 = vpop.f32.mrb[0].mxu0
      %v2698 = vadd.f32 0.0, %v2697
      %v2699 = vpop.f32.mrb[0].mxu0
      %2700 = vmatprep.mubr.bf16.mxu0 0
      %2701 = vmatmul.mubr.bf16.gmra.mrb[0].mxu0 %v2640
      %v2702 = vpop.f32.mrb[0].mxu0
      %v2703 = vadd.f32 0.0, %v2702
      %v2704 = vpop.f32.mrb[0].mxu0
      %v2705 = vpop.f32.mrb[0].mxu0
      %v2706 = vadd.f32 0.0, %v2705
      %v2707 = vpop.f32.mrb[0].mxu0
      %2708 = vmatprep.mubr.bf16.mxu0 0
      %2709 = vmatmul.mubr.bf16.gmra.mrb[0].mxu0 %v2643
      %v2710 = vpop.f32.mrb[0].mxu0
      %v2711 = vadd.f32 0.0, %v2710
      %v2712 = vpop.f32.mrb[0].mxu0
      %v2713 = vpop.f32.mrb[0].mxu0
      %v2714 = vadd.f32 0.0, %v2713
      %v2715 = vpop.f32.mrb[0].mxu0
      %2716 = vmatprep.mubr.bf16.mxu0 0
      %2717 = vmatmul.mubr.bf16.gmra.mrb[0].mxu0 %v2646
      %v2718 = vpop.f32.mrb[0].mxu0
      %v2719 = vadd.f32 0.0, %v2718
      %v2720 = vpop.f32.mrb[0].mxu0
      %v2721 = vpop.f32.mrb[0].mxu0
      %v2722 = vadd.f32 0.0, %v2721
      %v2723 = vpop.f32.mrb[0].mxu0
      %2724 = vmatprep.mubr.bf16.mxu0 0
      %2725 = vmatmul.mubr.bf16.gmra.mrb[0].mxu0 %v2649
      %v2726 = vpop.f32.mrb[0].mxu0
      %v2727 = vadd.f32 0.0, %v2726
      %v2728 = vpop.f32.mrb[0].mxu0
      %v2729 = vpop.f32.mrb[0].mxu0
      %v2730 = vadd.f32 0.0, %v2729
      %v2731 = vpop.f32.mrb[0].mxu0
      %2732 = vmatprep.mubr.bf16.mxu0 0
      %2733 = vmatmul.mubr.bf16.gmra.mrb[0].mxu0 %v2652
      %v2734 = vpop.f32.mrb[0].mxu0
      %v2735 = vadd.f32 0.0, %v2734
      %v2736 = vpop.f32.mrb[0].mxu0
      %v2737 = vpop.f32.mrb[0].mxu0
      %v2738 = vadd.f32 0.0, %v2737
      %v2739 = vpop.f32.mrb[0].mxu0
      %2740 = vmatprep.mubr.bf16.mxu0 0
      %2741 = vmatmul.mubr.bf16.gmra.mrb[0].mxu0 %v2655
      %v2742 = vpop.f32.mrb[0].mxu0
      %v2743 = vadd.f32 0.0, %v2742
      %v2744 = vpop.f32.mrb[0].mxu0
      %v2745 = vpop.f32.mrb[0].mxu0
      %v2746 = vadd.f32 0.0, %v2745
      %v2747 = vpop.f32.mrb[0].mxu0
      %2748 = vmatprep.mubr.bf16.mxu0 0
      %2749 = vmatmul.mubr.bf16.gmra.mrb[0].mxu0 %v2658
      %v2750 = vpop.f32.mrb[0].mxu0
      %v2751 = vadd.f32 0.0, %v2750
      %v2752 = vpop.f32.mrb[0].mxu0
      %v2753 = vpop.f32.mrb[0].mxu0
      %v2754 = vadd.f32 0.0, %v2753
      %v2755 = vpop.f32.mrb[0].mxu0
      %2756 = vdwg.mxu0
      %v2761 = vunpack.c.l.b16 %v2615
      %v2762 = vunpack.c.l.b16 %v2616
      %v2763 = vunpack.c.l.b16 %v2617
      %v2764 = vunpack.c.l.b16 %v2618
      %v2765 = vpack.c.b16 %v2762, %v2761
      %v2766 = vpack.c.b16 %v2764, %v2763
      %v2770 = vsel %vm2635, %v799, 0
      %v2773 = vsel %vm2635, %v800, 0
      %v2776 = vsel %vm2635, %v801, 0
      %v2779 = vsel %vm2635, %v802, 0
      %v2782 = vsel %vm2635, %v803, 0
      %v2785 = vsel %vm2635, %v804, 0
      %v2788 = vsel %vm2635, %v805, 0
      %v2791 = vsel %vm2635, %v806, 0
      %2793 = vmatprep.subr.bf16.mxu0 0
      %2794 = vmatpush1.bf16.msra.mxu0 %v2765
      %2795 = vmatprep.subr.bf16.mxu0 0
      %2796 = vmatpush1.bf16.msra.mxu0 %v2766
      %2797 = vmatprep.subr.bf16.mxu0 0
      %2798 = vmatpush1.bf16.msra.mxu0 0
      %2799 = vmatprep.subr.bf16.mxu0 0
      %2800 = vmatpush1.bf16.msra.mxu0 0
      %2801 = vmatprep.subr.bf16.mxu0 0
      %2802 = vmatpush1.bf16.msra.mxu0 0
      %2803 = vmatprep.subr.bf16.mxu0 0
      %2804 = vmatpush1.bf16.msra.mxu0 0
      %2805 = vmatprep.subr.bf16.mxu0 0
      %2806 = vmatpush1.bf16.msra.mxu0 0
      %2807 = vmatprep.subr.bf16.mxu0 0
      %2808 = vmatpush1.bf16.msra.mxu0 0
      %2809 = vmatprep.subr.bf16.mxu0 0
      %2810 = vmatpush1.bf16.msra.mxu0 0
      %2811 = vmatprep.subr.bf16.mxu0 0
      %2812 = vmatpush1.bf16.msra.mxu0 0
      %2813 = vmatprep.subr.bf16.mxu0 0
      %2814 = vmatpush1.bf16.msra.mxu0 0
      %2815 = vmatprep.subr.bf16.mxu0 0
      %2816 = vmatpush1.bf16.msra.mxu0 0
      %2817 = vmatprep.subr.bf16.mxu0 0
      %2818 = vmatpush1.bf16.msra.mxu0 0
      %2819 = vmatprep.subr.bf16.mxu0 0
      %2820 = vmatpush1.bf16.msra.mxu0 0
      %2821 = vmatprep.subr.bf16.mxu0 0
      %2822 = vmatpush1.bf16.msra.mxu0 0
      %2823 = vmatprep.subr.bf16.mxu0 0
      %2824 = vmatpush1.bf16.msra.mxu0 0
      %2825 = vmatprep.mubr.bf16.mxu0 0
      %2826 = vmatmul.mubr.bf16.gmra.mrb[0].mxu0 %v2770
      %v2827 = vpop.f32.mrb[0].mxu0
      %v2828 = vadd.f32 %v2695, %v2827
      %v2829 = vpop.f32.mrb[0].mxu0
      %v2830 = vpop.f32.mrb[0].mxu0
      %v2831 = vadd.f32 %v2698, %v2830
      %v2832 = vpop.f32.mrb[0].mxu0
      %2833 = vmatprep.mubr.bf16.mxu0 0
      %2834 = vmatmul.mubr.bf16.gmra.mrb[0].mxu0 %v2773
      %v2835 = vpop.f32.mrb[0].mxu0
      %v2836 = vadd.f32 %v2703, %v2835
      %v2837 = vpop.f32.mrb[0].mxu0
      %v2838 = vpop.f32.mrb[0].mxu0
      %v2839 = vadd.f32 %v2706, %v2838
      %v2840 = vpop.f32.mrb[0].mxu0
      %2841 = vmatprep.mubr.bf16.mxu0 0
      %2842 = vmatmul.mubr.bf16.gmra.mrb[0].mxu0 %v2776
      %v2843 = vpop.f32.mrb[0].mxu0
      %v2844 = vadd.f32 %v2711, %v2843
      %v2845 = vpop.f32.mrb[0].mxu0
      %v2846 = vpop.f32.mrb[0].mxu0
      %v2847 = vadd.f32 %v2714, %v2846
      %v2848 = vpop.f32.mrb[0].mxu0
      %2849 = vmatprep.mubr.bf16.mxu0 0
      %2850 = vmatmul.mubr.bf16.gmra.mrb[0].mxu0 %v2779
      %v2851 = vpop.f32.mrb[0].mxu0
      %v2852 = vadd.f32 %v2719, %v2851
      %v2853 = vpop.f32.mrb[0].mxu0
      %v2854 = vpop.f32.mrb[0].mxu0
      %v2855 = vadd.f32 %v2722, %v2854
      %v2856 = vpop.f32.mrb[0].mxu0
      %2857 = vmatprep.mubr.bf16.mxu0 0
      %2858 = vmatmul.mubr.bf16.gmra.mrb[0].mxu0 %v2782
      %v2859 = vpop.f32.mrb[0].mxu0
      %v2860 = vadd.f32 %v2727, %v2859
      %v2861 = vpop.f32.mrb[0].mxu0
      %v2862 = vpop.f32.mrb[0].mxu0
      %v2863 = vadd.f32 %v2730, %v2862
      %v2864 = vpop.f32.mrb[0].mxu0
      %2865 = vmatprep.mubr.bf16.mxu0 0
      %2866 = vmatmul.mubr.bf16.gmra.mrb[0].mxu0 %v2785
      %v2867 = vpop.f32.mrb[0].mxu0
      %v2868 = vadd.f32 %v2735, %v2867
      %v2869 = vpop.f32.mrb[0].mxu0
      %v2870 = vpop.f32.mrb[0].mxu0
      %v2871 = vadd.f32 %v2738, %v2870
      %v2872 = vpop.f32.mrb[0].mxu0
      %2873 = vmatprep.mubr.bf16.mxu0 0
      %2874 = vmatmul.mubr.bf16.gmra.mrb[0].mxu0 %v2788
      %v2875 = vpop.f32.mrb[0].mxu0
      %v2876 = vadd.f32 %v2743, %v2875
      %v2877 = vpop.f32.mrb[0].mxu0
      %v2878 = vpop.f32.mrb[0].mxu0
      %v2879 = vadd.f32 %v2746, %v2878
      %v2880 = vpop.f32.mrb[0].mxu0
      %2881 = vmatprep.mubr.bf16.mxu0 0
      %2882 = vmatmul.mubr.bf16.gmra.mrb[0].mxu0 %v2791
      %v2883 = vpop.f32.mrb[0].mxu0
      %v2884 = vadd.f32 %v2751, %v2883
      %v2885 = vpop.f32.mrb[0].mxu0
      %v2886 = vpop.f32.mrb[0].mxu0
      %v2887 = vadd.f32 %v2754, %v2886
      %v2888 = vpop.f32.mrb[0].mxu0
      %2889 = vdwg.mxu0
      %v2890 = vld [vmem:[%s5] sm:$0x1]
      %v2892 = vlaneseq
      %v2893 = vshrl.u32 %v2892, 7
      %v2894 = vsub.s32 0, %v2893
      %v2895 = vrot.slane %v2890, %v2894
      %v2897 = vadd.f32 %v2828, %v2895
      %v2898 = vadd.f32 %v2831, %v2895
      %v2899 = vadd.f32 %v2836, %v2895
      %v2900 = vadd.f32 %v2839, %v2895
      %v2901 = vadd.f32 %v2844, %v2895
      %v2902 = vadd.f32 %v2847, %v2895
      %v2903 = vadd.f32 %v2852, %v2895
      %v2904 = vadd.f32 %v2855, %v2895
      %v2905 = vadd.f32 %v2860, %v2895
      %v2906 = vadd.f32 %v2863, %v2895
      %v2907 = vadd.f32 %v2868, %v2895
      %v2908 = vadd.f32 %v2871, %v2895
      %v2909 = vadd.f32 %v2876, %v2895
      %v2910 = vadd.f32 %v2879, %v2895
      %v2911 = vadd.f32 %v2884, %v2895
      %v2912 = vadd.f32 %v2887, %v2895
      %v2913 = vxor.u32 %v2897, 2147483648
      %v2914 = vxor.u32 %v2898, 2147483648
      %v2915 = vxor.u32 %v2899, 2147483648
      %v2916 = vxor.u32 %v2900, 2147483648
      %v2917 = vxor.u32 %v2901, 2147483648
      %v2918 = vxor.u32 %v2902, 2147483648
      %v2919 = vxor.u32 %v2903, 2147483648
      %v2920 = vxor.u32 %v2904, 2147483648
      %v2921 = vxor.u32 %v2905, 2147483648
      %v2922 = vxor.u32 %v2906, 2147483648
      %v2923 = vxor.u32 %v2907, 2147483648
      %v2924 = vxor.u32 %v2908, 2147483648
      %v2925 = vxor.u32 %v2909, 2147483648
      %v2926 = vxor.u32 %v2910, 2147483648
      %v2927 = vxor.u32 %v2911, 2147483648
      %v2928 = vxor.u32 %v2912, 2147483648
      %v2929 = vmul.f32 %v2913, 1.442695
      %v2930 = vpow.pop %v2929
      %v2931 = vmul.f32 %v2914, 1.442695
      %v2932 = vpow.pop %v2931
      %v2933 = vmul.f32 %v2915, 1.442695
      %v2934 = vpow.pop %v2933
      %v2935 = vmul.f32 %v2916, 1.442695
      %v2936 = vpow.pop %v2935
      %v2937 = vmul.f32 %v2917, 1.442695
      %v2938 = vpow.pop %v2937
      %v2939 = vmul.f32 %v2918, 1.442695
      %v2940 = vpow.pop %v2939
      %v2941 = vmul.f32 %v2919, 1.442695
      %v2942 = vpow.pop %v2941
      %v2943 = vmul.f32 %v2920, 1.442695
      %v2944 = vpow.pop %v2943
      %v2945 = vmul.f32 %v2921, 1.442695
      %v2946 = vpow.pop %v2945
      %v2947 = vmul.f32 %v2922, 1.442695
      %v2948 = vpow.pop %v2947
      %v2949 = vmul.f32 %v2923, 1.442695
      %v2950 = vpow.pop %v2949
      %v2951 = vmul.f32 %v2924, 1.442695
      %v2952 = vpow.pop %v2951
      %v2953 = vmul.f32 %v2925, 1.442695
      %v2954 = vpow.pop %v2953
      %v2955 = vmul.f32 %v2926, 1.442695
      %v2956 = vpow.pop %v2955
      %v2957 = vmul.f32 %v2927, 1.442695
      %v2958 = vpow.pop %v2957
      %v2959 = vmul.f32 %v2928, 1.442695
      %v2960 = vpow.pop %v2959
      %v2961 = vadd.f32 %v2930, 1.0
      %v2962 = vadd.f32 %v2932, 1.0
      %v2963 = vadd.f32 %v2934, 1.0
      %v2964 = vadd.f32 %v2936, 1.0
      %v2965 = vadd.f32 %v2938, 1.0
      %v2966 = vadd.f32 %v2940, 1.0
      %v2967 = vadd.f32 %v2942, 1.0
      %v2968 = vadd.f32 %v2944, 1.0
      %v2969 = vadd.f32 %v2946, 1.0
      %v2970 = vadd.f32 %v2948, 1.0
      %v2971 = vadd.f32 %v2950, 1.0
      %v2972 = vadd.f32 %v2952, 1.0
      %v2973 = vadd.f32 %v2954, 1.0
      %v2974 = vadd.f32 %v2956, 1.0
      %v2975 = vadd.f32 %v2958, 1.0
      %v2976 = vadd.f32 %v2960, 1.0
      %v2977 = vrcp.pop %v2961
      %v2978 = vmul.f32 1.0, %v2977
      %v2979 = vrcp.pop %v2962
      %v2980 = vmul.f32 1.0, %v2979
      %v2981 = vrcp.pop %v2963
      %v2982 = vmul.f32 1.0, %v2981
      %v2983 = vrcp.pop %v2964
      %v2984 = vmul.f32 1.0, %v2983
      %v2985 = vrcp.pop %v2965
      %v2986 = vmul.f32 1.0, %v2985
      %v2987 = vrcp.pop %v2966
      %v2988 = vmul.f32 1.0, %v2987
      %v2989 = vrcp.pop %v2967
      %v2990 = vmul.f32 1.0, %v2989
      %v2991 = vrcp.pop %v2968
      %v2992 = vmul.f32 1.0, %v2991
      %v2993 = vrcp.pop %v2969
      %v2994 = vmul.f32 1.0, %v2993
      %v2995 = vrcp.pop %v2970
      %v2996 = vmul.f32 1.0, %v2995
      %v2997 = vrcp.pop %v2971
      %v2998 = vmul.f32 1.0, %v2997
      %v2999 = vrcp.pop %v2972
      %v3000 = vmul.f32 1.0, %v2999
      %v3001 = vrcp.pop %v2973
      %v3002 = vmul.f32 1.0, %v3001
      %v3003 = vrcp.pop %v2974
      %v3004 = vmul.f32 1.0, %v3003
      %v3005 = vrcp.pop %v2975
      %v3006 = vmul.f32 1.0, %v3005
      %v3007 = vrcp.pop %v2976
      %v3008 = vmul.f32 1.0, %v3007
      %v3009 = vmul.f32 %v2897, %v2978
      %v3010 = vmul.f32 %v2898, %v2980
      %v3011 = vmul.f32 %v2899, %v2982
      %v3012 = vmul.f32 %v2900, %v2984
      %v3013 = vmul.f32 %v2901, %v2986
      %v3014 = vmul.f32 %v2902, %v2988
      %v3015 = vmul.f32 %v2903, %v2990
      %v3016 = vmul.f32 %v2904, %v2992
      %v3017 = vmul.f32 %v2905, %v2994
      %v3018 = vmul.f32 %v2906, %v2996
      %v3019 = vmul.f32 %v2907, %v2998
      %v3020 = vmul.f32 %v2908, %v3000
      %v3021 = vmul.f32 %v2909, %v3002
      %v3022 = vmul.f32 %v2910, %v3004
      %v3023 = vmul.f32 %v2911, %v3006
      %v3024 = vmul.f32 %v2912, %v3008
      %v3025 = vpack.c.bf16 %v3010, %v3009
      %v3026 = vpack.c.bf16 %v3012, %v3011
      %v3027 = vpack.c.bf16 %v3014, %v3013
      %v3028 = vpack.c.bf16 %v3016, %v3015
      %v3029 = vpack.c.bf16 %v3018, %v3017
      %v3030 = vpack.c.bf16 %v3020, %v3019
      %v3031 = vpack.c.bf16 %v3022, %v3021
      %v3032 = vpack.c.bf16 %v3024, %v3023
      %v3033 = vld [vmem:[%s6] sm:$0xf]
      %v3034 = vld [vmem:[%s6 + $0x4] sm:$0xf]
      %v3035 = vld [vmem:[%s6 + $0x8] sm:$0xf]
      %v3036 = vld [vmem:[%s6 + $0xc] sm:$0xf]
      %v3037 = vld [vmem:[%s6 + $0x10] sm:$0xf]
      %v3038 = vld [vmem:[%s6 + $0x14] sm:$0xf]
      %v3039 = vld [vmem:[%s6 + $0x18] sm:$0xf]
      %v3040 = vld [vmem:[%s6 + $0x1c] sm:$0xf]
      %v3041 = vld [vmem:[%s6 + $0x20] sm:$0xf]
      %v3042 = vld [vmem:[%s6 + $0x24] sm:$0xf]
      %v3043 = vld [vmem:[%s6 + $0x28] sm:$0xf]
      %v3044 = vld [vmem:[%s6 + $0x2c] sm:$0xf]
      %v3045 = vld [vmem:[%s6 + $0x30] sm:$0xf]
      %v3046 = vld [vmem:[%s6 + $0x34] sm:$0xf]
      %v3047 = vld [vmem:[%s6 + $0x38] sm:$0xf]
      %v3048 = vld [vmem:[%s6 + $0x3c] sm:$0xf]
      %v3049 = vlaneseq
      %v3050 = vshrl.u32 %v3049, 7
      %v3051 = vsub.s32 0, %v3050
      %v3052 = vrot.slane %v326, %v3051
      %v3069 = vunpack.c.l.b16 %v3033
      %v3070 = vunpack.c.l.b16 %v3034
      %v3071 = vunpack.c.l.b16 %v3035
      %v3072 = vunpack.c.l.b16 %v3036
      %v3073 = vunpack.c.l.b16 %v3037
      %v3074 = vunpack.c.l.b16 %v3038
      %v3075 = vunpack.c.l.b16 %v3039
      %v3076 = vunpack.c.l.b16 %v3040
      %v3077 = vunpack.c.l.b16 %v3041
      %v3078 = vunpack.c.l.b16 %v3042
      %v3079 = vunpack.c.l.b16 %v3043
      %v3080 = vunpack.c.l.b16 %v3044
      %v3081 = vunpack.c.l.b16 %v3045
      %v3082 = vunpack.c.l.b16 %v3046
      %v3083 = vunpack.c.l.b16 %v3047
      %v3084 = vunpack.c.l.b16 %v3048
      %v3085 = vpack.c.b16 %v3070, %v3069
      %v3086 = vpack.c.b16 %v3072, %v3071
      %v3087 = vpack.c.b16 %v3074, %v3073
      %v3088 = vpack.c.b16 %v3076, %v3075
      %v3089 = vpack.c.b16 %v3078, %v3077
      %v3090 = vpack.c.b16 %v3080, %v3079
      %v3091 = vpack.c.b16 %v3082, %v3081
      %v3092 = vpack.c.b16 %v3084, %v3083
      %3101 = vmatprep.subr.bf16.mxu0 0
      %3102 = vmatpush1.bf16.msra.mxu0 %v3085
      %3103 = vmatprep.subr.bf16.mxu0 0
      %3104 = vmatpush1.bf16.msra.mxu0 %v3086
      %3105 = vmatprep.subr.bf16.mxu0 0
      %3106 = vmatpush1.bf16.msra.mxu0 %v3087
      %3107 = vmatprep.subr.bf16.mxu0 0
      %3108 = vmatpush1.bf16.msra.mxu0 %v3088
      %3109 = vmatprep.subr.bf16.mxu0 0
      %3110 = vmatpush1.bf16.msra.mxu0 %v3089
      %3111 = vmatprep.subr.bf16.mxu0 0
      %3112 = vmatpush1.bf16.msra.mxu0 %v3090
      %3113 = vmatprep.subr.bf16.mxu0 0
      %3114 = vmatpush1.bf16.msra.mxu0 %v3091
      %3115 = vmatprep.subr.bf16.mxu0 0
      %3116 = vmatpush1.bf16.msra.mxu0 %v3092
      %3117 = vmatprep.subr.bf16.mxu0 0
      %3118 = vmatpush1.bf16.msra.mxu0 0
      %3119 = vmatprep.subr.bf16.mxu0 0
      %3120 = vmatpush1.bf16.msra.mxu0 0
      %3121 = vmatprep.subr.bf16.mxu0 0
      %3122 = vmatpush1.bf16.msra.mxu0 0
      %3123 = vmatprep.subr.bf16.mxu0 0
      %3124 = vmatpush1.bf16.msra.mxu0 0
      %3125 = vmatprep.subr.bf16.mxu0 0
      %3126 = vmatpush1.bf16.msra.mxu0 0
      %3127 = vmatprep.subr.bf16.mxu0 0
      %3128 = vmatpush1.bf16.msra.mxu0 0
      %3129 = vmatprep.subr.bf16.mxu0 0
      %3130 = vmatpush1.bf16.msra.mxu0 0
      %3131 = vmatprep.subr.bf16.mxu0 0
      %3132 = vmatpush1.bf16.msra.mxu0 0
      %3133 = vmatprep.mubr.bf16.mxu0 0
      %3134 = vmatmul.mubr.bf16.gmra.mrb[0].mxu0 %v3025
      %v3135 = vpop.f32.mrb[0].mxu0
      %v3136 = vadd.f32 %v3052, %v3135
      %v3137 = vpop.f32.mrb[0].mxu0
      %v3138 = vpop.f32.mrb[0].mxu0
      %v3139 = vadd.f32 %v3052, %v3138
      %v3140 = vpop.f32.mrb[0].mxu0
      %3141 = vmatprep.mubr.bf16.mxu0 0
      %3142 = vmatmul.mubr.bf16.gmra.mrb[0].mxu0 %v3026
      %v3143 = vpop.f32.mrb[0].mxu0
      %v3144 = vadd.f32 %v3052, %v3143
      %v3145 = vpop.f32.mrb[0].mxu0
      %v3146 = vpop.f32.mrb[0].mxu0
      %v3147 = vadd.f32 %v3052, %v3146
      %v3148 = vpop.f32.mrb[0].mxu0
      %3149 = vmatprep.mubr.bf16.mxu0 0
      %3150 = vmatmul.mubr.bf16.gmra.mrb[0].mxu0 %v3027
      %v3151 = vpop.f32.mrb[0].mxu0
      %v3152 = vadd.f32 %v3052, %v3151
      %v3153 = vpop.f32.mrb[0].mxu0
      %v3154 = vpop.f32.mrb[0].mxu0
      %v3155 = vadd.f32 %v3052, %v3154
      %v3156 = vpop.f32.mrb[0].mxu0
      %3157 = vmatprep.mubr.bf16.mxu0 0
      %3158 = vmatmul.mubr.bf16.gmra.mrb[0].mxu0 %v3028
      %v3159 = vpop.f32.mrb[0].mxu0
      %v3160 = vadd.f32 %v3052, %v3159
      %v3161 = vpop.f32.mrb[0].mxu0
      %v3162 = vpop.f32.mrb[0].mxu0
      %v3163 = vadd.f32 %v3052, %v3162
      %v3164 = vpop.f32.mrb[0].mxu0
      %3165 = vmatprep.mubr.bf16.mxu0 0
      %3166 = vmatmul.mubr.bf16.gmra.mrb[0].mxu0 %v3029
      %v3167 = vpop.f32.mrb[0].mxu0
      %v3168 = vadd.f32 %v3052, %v3167
      %v3169 = vpop.f32.mrb[0].mxu0
      %v3170 = vpop.f32.mrb[0].mxu0
      %v3171 = vadd.f32 %v3052, %v3170
      %v3172 = vpop.f32.mrb[0].mxu0
      %3173 = vmatprep.mubr.bf16.mxu0 0
      %3174 = vmatmul.mubr.bf16.gmra.mrb[0].mxu0 %v3030
      %v3175 = vpop.f32.mrb[0].mxu0
      %v3176 = vadd.f32 %v3052, %v3175
      %v3177 = vpop.f32.mrb[0].mxu0
      %v3178 = vpop.f32.mrb[0].mxu0
      %v3179 = vadd.f32 %v3052, %v3178
      %v3180 = vpop.f32.mrb[0].mxu0
      %3181 = vmatprep.mubr.bf16.mxu0 0
      %3182 = vmatmul.mubr.bf16.gmra.mrb[0].mxu0 %v3031
      %v3183 = vpop.f32.mrb[0].mxu0
      %v3184 = vadd.f32 %v3052, %v3183
      %v3185 = vpop.f32.mrb[0].mxu0
      %v3186 = vpop.f32.mrb[0].mxu0
      %v3187 = vadd.f32 %v3052, %v3186
      %v3188 = vpop.f32.mrb[0].mxu0
      %3189 = vmatprep.mubr.bf16.mxu0 0
      %3190 = vmatmul.mubr.bf16.gmra.mrb[0].mxu0 %v3032
      %v3191 = vpop.f32.mrb[0].mxu0
      %v3192 = vadd.f32 %v3052, %v3191
      %v3193 = vpop.f32.mrb[0].mxu0
      %v3194 = vpop.f32.mrb[0].mxu0
      %v3195 = vadd.f32 %v3052, %v3194
      %v3196 = vpop.f32.mrb[0].mxu0
      %3197 = vdwg.mxu0
      %3199 = vset.pattern.permute.xlu0 0
      %3200 = vperm.xlu0 %3199, %v512
      %v3201 = vpop.permute.xlu0 %3200
      %3204 = vset.pattern.permute.xlu0 0
      %3205 = vperm.xlu0 %3204, %v514
      %v3206 = vpop.permute.xlu0 %3205
      %3209 = vset.pattern.permute.xlu0 0
      %3210 = vperm.xlu0 %3209, %v516
      %v3211 = vpop.permute.xlu0 %3210
      %3214 = vset.pattern.permute.xlu0 0
      %3215 = vperm.xlu0 %3214, %v518
      %v3216 = vpop.permute.xlu0 %3215
      %3219 = vset.pattern.permute.xlu0 0
      %3220 = vperm.xlu0 %3219, %v520
      %v3221 = vpop.permute.xlu0 %3220
      %3224 = vset.pattern.permute.xlu0 0
      %3225 = vperm.xlu0 %3224, %v522
      %v3226 = vpop.permute.xlu0 %3225
      %3229 = vset.pattern.permute.xlu0 0
      %3230 = vperm.xlu0 %3229, %v524
      %v3231 = vpop.permute.xlu0 %3230
      %3234 = vset.pattern.permute.xlu0 0
      %3235 = vperm.xlu0 %3234, %v526
      %v3236 = vpop.permute.xlu0 %3235
      %3239 = vset.pattern.permute.xlu0 0
      %3240 = vperm.xlu0 %3239, %v528
      %v3241 = vpop.permute.xlu0 %3240
      %3244 = vset.pattern.permute.xlu0 0
      %3245 = vperm.xlu0 %3244, %v530
      %v3246 = vpop.permute.xlu0 %3245
      %3249 = vset.pattern.permute.xlu0 0
      %3250 = vperm.xlu0 %3249, %v532
      %v3251 = vpop.permute.xlu0 %3250
      %3254 = vset.pattern.permute.xlu0 0
      %3255 = vperm.xlu0 %3254, %v534
      %v3256 = vpop.permute.xlu0 %3255
      %3259 = vset.pattern.permute.xlu0 0
      %3260 = vperm.xlu0 %3259, %v536
      %v3261 = vpop.permute.xlu0 %3260
      %3264 = vset.pattern.permute.xlu0 0
      %3265 = vperm.xlu0 %3264, %v538
      %v3266 = vpop.permute.xlu0 %3265
      %3269 = vset.pattern.permute.xlu0 0
      %3270 = vperm.xlu0 %3269, %v540
      %v3271 = vpop.permute.xlu0 %3270
      %3274 = vset.pattern.permute.xlu0 0
      %3275 = vperm.xlu0 %3274, %v542
      %v3276 = vpop.permute.xlu0 %3275
      %v3278 = vmul.f32 %v3201, %v687
      %v3279 = vmul.f32 %v3206, %v688
      %v3280 = vmul.f32 %v3211, %v689
      %v3281 = vmul.f32 %v3216, %v690
      %v3282 = vmul.f32 %v3221, %v691
      %v3283 = vmul.f32 %v3226, %v692
      %v3284 = vmul.f32 %v3231, %v693
      %v3285 = vmul.f32 %v3236, %v694
      %v3286 = vmul.f32 %v3241, %v695
      %v3287 = vmul.f32 %v3246, %v696
      %v3288 = vmul.f32 %v3251, %v697
      %v3289 = vmul.f32 %v3256, %v698
      %v3290 = vmul.f32 %v3261, %v699
      %v3291 = vmul.f32 %v3266, %v700
      %v3292 = vmul.f32 %v3271, %v701
      %v3293 = vmul.f32 %v3276, %v702
      %3295 = vset.pattern.permute.xlu0 0
      %3296 = vperm.xlu0 %3295, %v543
      %v3297 = vpop.permute.xlu0 %3296
      %3300 = vset.pattern.permute.xlu0 0
      %3301 = vperm.xlu0 %3300, %v544
      %v3302 = vpop.permute.xlu0 %3301
      %3305 = vset.pattern.permute.xlu0 0
      %3306 = vperm.xlu0 %3305, %v545
      %v3307 = vpop.permute.xlu0 %3306
      %3310 = vset.pattern.permute.xlu0 0
      %3311 = vperm.xlu0 %3310, %v546
      %v3312 = vpop.permute.xlu0 %3311
      %3315 = vset.pattern.permute.xlu0 0
      %3316 = vperm.xlu0 %3315, %v547
      %v3317 = vpop.permute.xlu0 %3316
      %3320 = vset.pattern.permute.xlu0 0
      %3321 = vperm.xlu0 %3320, %v548
      %v3322 = vpop.permute.xlu0 %3321
      %3325 = vset.pattern.permute.xlu0 0
      %3326 = vperm.xlu0 %3325, %v549
      %v3327 = vpop.permute.xlu0 %3326
      %3330 = vset.pattern.permute.xlu0 0
      %3331 = vperm.xlu0 %3330, %v550
      %v3332 = vpop.permute.xlu0 %3331
      %3335 = vset.pattern.permute.xlu0 0
      %3336 = vperm.xlu0 %3335, %v551
      %v3337 = vpop.permute.xlu0 %3336
      %3340 = vset.pattern.permute.xlu0 0
      %3341 = vperm.xlu0 %3340, %v552
      %v3342 = vpop.permute.xlu0 %3341
      %3345 = vset.pattern.permute.xlu0 0
      %3346 = vperm.xlu0 %3345, %v553
      %v3347 = vpop.permute.xlu0 %3346
      %3350 = vset.pattern.permute.xlu0 0
      %3351 = vperm.xlu0 %3350, %v554
      %v3352 = vpop.permute.xlu0 %3351
      %3355 = vset.pattern.permute.xlu0 0
      %3356 = vperm.xlu0 %3355, %v555
      %v3357 = vpop.permute.xlu0 %3356
      %3360 = vset.pattern.permute.xlu0 0
      %3361 = vperm.xlu0 %3360, %v556
      %v3362 = vpop.permute.xlu0 %3361
      %3365 = vset.pattern.permute.xlu0 0
      %3366 = vperm.xlu0 %3365, %v557
      %v3367 = vpop.permute.xlu0 %3366
      %3370 = vset.pattern.permute.xlu0 0
      %3371 = vperm.xlu0 %3370, %v558
      %v3372 = vpop.permute.xlu0 %3371
      %v3374 = vmul.f32 %v3297, %v3136
      %v3375 = vmul.f32 %v3302, %v3139
      %v3376 = vmul.f32 %v3307, %v3144
      %v3377 = vmul.f32 %v3312, %v3147
      %v3378 = vmul.f32 %v3317, %v3152
      %v3379 = vmul.f32 %v3322, %v3155
      %v3380 = vmul.f32 %v3327, %v3160
      %v3381 = vmul.f32 %v3332, %v3163
      %v3382 = vmul.f32 %v3337, %v3168
      %v3383 = vmul.f32 %v3342, %v3171
      %v3384 = vmul.f32 %v3347, %v3176
      %v3385 = vmul.f32 %v3352, %v3179
      %v3386 = vmul.f32 %v3357, %v3184
      %v3387 = vmul.f32 %v3362, %v3187
      %v3388 = vmul.f32 %v3367, %v3192
      %v3389 = vmul.f32 %v3372, %v3195
      %v3390 = vadd.f32 %v3278, %v3374
      %v3391 = vadd.f32 %v3279, %v3375
      %v3392 = vadd.f32 %v3280, %v3376
      %v3393 = vadd.f32 %v3281, %v3377
      %v3394 = vadd.f32 %v3282, %v3378
      %v3395 = vadd.f32 %v3283, %v3379
      %v3396 = vadd.f32 %v3284, %v3380
      %v3397 = vadd.f32 %v3285, %v3381
      %v3398 = vadd.f32 %v3286, %v3382
      %v3399 = vadd.f32 %v3287, %v3383
      %v3400 = vadd.f32 %v3288, %v3384
      %v3401 = vadd.f32 %v3289, %v3385
      %v3402 = vadd.f32 %v3290, %v3386
      %v3403 = vadd.f32 %v3291, %v3387
      %v3404 = vadd.f32 %v3292, %v3388
      %v3405 = vadd.f32 %v3293, %v3389
      %v3406 = vsub.f32 %v3390, %v367
      %v3407 = vsub.f32 %v3391, %v368
      %v3408 = vsub.f32 %v3392, %v369
      %v3409 = vsub.f32 %v3393, %v370
      %v3410 = vsub.f32 %v3394, %v371
      %v3411 = vsub.f32 %v3395, %v372
      %v3412 = vsub.f32 %v3396, %v373
      %v3413 = vsub.f32 %v3397, %v374
      %v3414 = vsub.f32 %v3398, %v375
      %v3415 = vsub.f32 %v3399, %v376
      %v3416 = vsub.f32 %v3400, %v377
      %v3417 = vsub.f32 %v3401, %v378
      %v3418 = vsub.f32 %v3402, %v379
      %v3419 = vsub.f32 %v3403, %v380
      %v3420 = vsub.f32 %v3404, %v381
      %v3421 = vsub.f32 %v3405, %v382
      %v3422 = vmul.f32 %v3406, %v3406
      %v3423 = vmul.f32 %v3407, %v3407
      %v3424 = vmul.f32 %v3408, %v3408
      %v3425 = vmul.f32 %v3409, %v3409
      %v3426 = vmul.f32 %v3410, %v3410
      %v3427 = vmul.f32 %v3411, %v3411
      %v3428 = vmul.f32 %v3412, %v3412
      %v3429 = vmul.f32 %v3413, %v3413
      %v3430 = vmul.f32 %v3414, %v3414
      %v3431 = vmul.f32 %v3415, %v3415
      %v3432 = vmul.f32 %v3416, %v3416
      %v3433 = vmul.f32 %v3417, %v3417
      %v3434 = vmul.f32 %v3418, %v3418
      %v3435 = vmul.f32 %v3419, %v3419
      %v3436 = vmul.f32 %v3420, %v3420
      %v3437 = vmul.f32 %v3421, %v3421
      %v3438 = vsel %vm2635, %v3422, 0.0
      %3439 = vadd.xlane.f32.xlu0 %v3438
      %v3440 = vpop.xlane.xlu0 %3439
      %v3441 = vsel %vm2635, %v3423, 0.0
      %3442 = vadd.xlane.f32.xlu0 %v3441
      %v3443 = vpop.xlane.xlu0 %3442
      %v3444 = vsel %vm2635, %v3424, 0.0
      %3445 = vadd.xlane.f32.xlu0 %v3444
      %v3446 = vpop.xlane.xlu0 %3445
      %v3447 = vsel %vm2635, %v3425, 0.0
      %3448 = vadd.xlane.f32.xlu0 %v3447
      %v3449 = vpop.xlane.xlu0 %3448
      %v3450 = vsel %vm2635, %v3426, 0.0
      %3451 = vadd.xlane.f32.xlu0 %v3450
      %v3452 = vpop.xlane.xlu0 %3451
      %v3453 = vsel %vm2635, %v3427, 0.0
      %3454 = vadd.xlane.f32.xlu0 %v3453
      %v3455 = vpop.xlane.xlu0 %3454
      %v3456 = vsel %vm2635, %v3428, 0.0
      %3457 = vadd.xlane.f32.xlu0 %v3456
      %v3458 = vpop.xlane.xlu0 %3457
      %v3459 = vsel %vm2635, %v3429, 0.0
      %3460 = vadd.xlane.f32.xlu0 %v3459
      %v3461 = vpop.xlane.xlu0 %3460
      %v3462 = vsel %vm2635, %v3430, 0.0
      %3463 = vadd.xlane.f32.xlu0 %v3462
      %v3464 = vpop.xlane.xlu0 %3463
      %v3465 = vsel %vm2635, %v3431, 0.0
      %3466 = vadd.xlane.f32.xlu0 %v3465
      %v3467 = vpop.xlane.xlu0 %3466
      %v3468 = vsel %vm2635, %v3432, 0.0
      %3469 = vadd.xlane.f32.xlu0 %v3468
      %v3470 = vpop.xlane.xlu0 %3469
      %v3471 = vsel %vm2635, %v3433, 0.0
      %3472 = vadd.xlane.f32.xlu0 %v3471
      %v3473 = vpop.xlane.xlu0 %3472
      %v3474 = vsel %vm2635, %v3434, 0.0
      %3475 = vadd.xlane.f32.xlu0 %v3474
      %v3476 = vpop.xlane.xlu0 %3475
      %v3477 = vsel %vm2635, %v3435, 0.0
      %3478 = vadd.xlane.f32.xlu0 %v3477
      %v3479 = vpop.xlane.xlu0 %3478
      %v3480 = vsel %vm2635, %v3436, 0.0
      %3481 = vadd.xlane.f32.xlu0 %v3480
      %v3482 = vpop.xlane.xlu0 %3481
      %v3483 = vsel %vm2635, %v3437, 0.0
      %3484 = vadd.xlane.f32.xlu0 %v3483
      %v3485 = vpop.xlane.xlu0 %3484
      %v3486 = vmul.f32 %v3440, 0.03125
      %v3487 = vmul.f32 %v3443, 0.03125
      %v3488 = vmul.f32 %v3446, 0.03125
      %v3489 = vmul.f32 %v3449, 0.03125
      %v3490 = vmul.f32 %v3452, 0.03125
      %v3491 = vmul.f32 %v3455, 0.03125
      %v3492 = vmul.f32 %v3458, 0.03125
      %v3493 = vmul.f32 %v3461, 0.03125
      %v3494 = vmul.f32 %v3464, 0.03125
      %v3495 = vmul.f32 %v3467, 0.03125
      %v3496 = vmul.f32 %v3470, 0.03125
      %v3497 = vmul.f32 %v3473, 0.03125
      %v3498 = vmul.f32 %v3476, 0.03125
      %v3499 = vmul.f32 %v3479, 0.03125
      %v3500 = vmul.f32 %v3482, 0.03125
      %v3501 = vmul.f32 %v3485, 0.03125
      %v3502 = vmul.f32 %v415, -2.0
      %v3503 = vmul.f32 %v416, -2.0
      %v3504 = vmul.f32 %v417, -2.0
      %v3505 = vmul.f32 %v418, -2.0
      %v3506 = vmul.f32 %v419, -2.0
      %v3507 = vmul.f32 %v420, -2.0
      %v3508 = vmul.f32 %v421, -2.0
      %v3509 = vmul.f32 %v422, -2.0
      %v3510 = vmul.f32 %v423, -2.0
      %v3511 = vmul.f32 %v424, -2.0
      %v3512 = vmul.f32 %v425, -2.0
      %v3513 = vmul.f32 %v426, -2.0
      %v3514 = vmul.f32 %v427, -2.0
      %v3515 = vmul.f32 %v428, -2.0
      %v3516 = vmul.f32 %v429, -2.0
      %v3517 = vmul.f32 %v430, -2.0
      %v3518 = vmul.f32 %v3502, 1.442695
      %v3519 = vpow.pop %v3518
      %v3520 = vmul.f32 %v3503, 1.442695
      %v3521 = vpow.pop %v3520
      %v3522 = vmul.f32 %v3504, 1.442695
      %v3523 = vpow.pop %v3522
      %v3524 = vmul.f32 %v3505, 1.442695
      %v3525 = vpow.pop %v3524
      %v3526 = vmul.f32 %v3506, 1.442695
      %v3527 = vpow.pop %v3526
      %v3528 = vmul.f32 %v3507, 1.442695
      %v3529 = vpow.pop %v3528
      %v3530 = vmul.f32 %v3508, 1.442695
      %v3531 = vpow.pop %v3530
      %v3532 = vmul.f32 %v3509, 1.442695
      %v3533 = vpow.pop %v3532
      %v3534 = vmul.f32 %v3510, 1.442695
      %v3535 = vpow.pop %v3534
      %v3536 = vmul.f32 %v3511, 1.442695
      %v3537 = vpow.pop %v3536
      %v3538 = vmul.f32 %v3512, 1.442695
      %v3539 = vpow.pop %v3538
      %v3540 = vmul.f32 %v3513, 1.442695
      %v3541 = vpow.pop %v3540
      %v3542 = vmul.f32 %v3514, 1.442695
      %v3543 = vpow.pop %v3542
      %v3544 = vmul.f32 %v3515, 1.442695
      %v3545 = vpow.pop %v3544
      %v3546 = vmul.f32 %v3516, 1.442695
      %v3547 = vpow.pop %v3546
      %v3548 = vmul.f32 %v3517, 1.442695
      %v3549 = vpow.pop %v3548
      %v3550 = vadd.f32 %v3519, 1.0
      %v3551 = vadd.f32 %v3521, 1.0
      %v3552 = vadd.f32 %v3523, 1.0
      %v3553 = vadd.f32 %v3525, 1.0
      %v3554 = vadd.f32 %v3527, 1.0
      %v3555 = vadd.f32 %v3529, 1.0
      %v3556 = vadd.f32 %v3531, 1.0
      %v3557 = vadd.f32 %v3533, 1.0
      %v3558 = vadd.f32 %v3535, 1.0
      %v3559 = vadd.f32 %v3537, 1.0
      %v3560 = vadd.f32 %v3539, 1.0
      %v3561 = vadd.f32 %v3541, 1.0
      %v3562 = vadd.f32 %v3543, 1.0
      %v3563 = vadd.f32 %v3545, 1.0
      %v3564 = vadd.f32 %v3547, 1.0
      %v3565 = vadd.f32 %v3549, 1.0
      %v3566 = vmul.f32 %v3486, %v3550
      %v3567 = vmul.f32 %v3487, %v3551
      %v3568 = vmul.f32 %v3488, %v3552
      %v3569 = vmul.f32 %v3489, %v3553
      %v3570 = vmul.f32 %v3490, %v3554
      %v3571 = vmul.f32 %v3491, %v3555
      %v3572 = vmul.f32 %v3492, %v3556
      %v3573 = vmul.f32 %v3493, %v3557
      %v3574 = vmul.f32 %v3494, %v3558
      %v3575 = vmul.f32 %v3495, %v3559
      %v3576 = vmul.f32 %v3496, %v3560
      %v3577 = vmul.f32 %v3497, %v3561
      %v3578 = vmul.f32 %v3498, %v3562
      %v3579 = vmul.f32 %v3499, %v3563
      %v3580 = vmul.f32 %v3500, %v3564
      %v3581 = vmul.f32 %v3501, %v3565
      %vm3582 = vcmask 7168
      %v3583 = vsel %vm3582, %v3566, 0.0
      %v3584 = vsel %vm3582, %v3567, 0.0
      %v3585 = vadd.f32 %v3583, %v3584
      %v3586 = vsel %vm3582, %v3568, 0.0
      %v3587 = vadd.f32 %v3585, %v3586
      %v3588 = vsel %vm3582, %v3569, 0.0
      %v3589 = vadd.f32 %v3587, %v3588
      %v3590 = vsel %vm3582, %v3570, 0.0
      %v3591 = vadd.f32 %v3589, %v3590
      %v3592 = vsel %vm3582, %v3571, 0.0
      %v3593 = vadd.f32 %v3591, %v3592
      %v3594 = vsel %vm3582, %v3572, 0.0
      %v3595 = vadd.f32 %v3593, %v3594
      %v3596 = vsel %vm3582, %v3573, 0.0
      %v3597 = vadd.f32 %v3595, %v3596
      %v3598 = vsel %vm3582, %v3574, 0.0
      %v3599 = vadd.f32 %v3597, %v3598
      %v3600 = vsel %vm3582, %v3575, 0.0
      %v3601 = vadd.f32 %v3599, %v3600
      %v3602 = vsel %vm3582, %v3576, 0.0
      %v3603 = vadd.f32 %v3601, %v3602
      %v3604 = vsel %vm3582, %v3577, 0.0
      %v3605 = vadd.f32 %v3603, %v3604
      %v3606 = vsel %vm3582, %v3578, 0.0
      %v3607 = vadd.f32 %v3605, %v3606
      %v3608 = vsel %vm3582, %v3579, 0.0
      %v3609 = vadd.f32 %v3607, %v3608
      %v3610 = vsel %vm3582, %v3580, 0.0
      %v3611 = vadd.f32 %v3609, %v3610
      %v3612 = vsel %vm3582, %v3581, 0.0
      %v3613 = vadd.f32 %v3611, %v3612
      %v3614 = vrot.slane %v3613, 4
      %v3615 = vadd.f32 %v3613, %v3614
      %v3616 = vrot.slane %v3615, 2
      %v3617 = vadd.f32 %v3615, %v3616
      %v3618 = vrot.slane %v3617, 1
      %v3619 = vadd.f32 %v3617, %v3618
      %3621 = vset.pattern.permute.xlu0 0
      %3622 = vperm.xlu0 %3621, %v3619
      %v3623 = vpop.permute.xlu0 %3622
      %3625 = vst [vmem:[%s320] sm:$0x1] %v3623
      %p3626 = scmp.lt.s32.totalorder %s18, 1
      %s3627 = scalar_select %p3626, %s18, 1
      %s3628 = scalar_lea.vmem %s7, %s3627
      // Predicated region
      $region49: #{elucidated_diffusion_forward.1} parent=47 // pred_check
        %p3629 = pneg %p198
      $region50: #{elucidated_diffusion_forward.1} parent=47 // pred_check_branch
        %3631 = sbr.rel (%p3629) target = $region52
      $region51: #{elucidated_diffusion_forward.1} parent=47 // pred_region
        _
      $region52: #{elucidated_diffusion_forward.1} parent=47 // pred_fallthru
        _
    $region48: #{elucidated_diffusion_forward.1} parent=5 // pred_fallthru
      _
    %p3632 = scmp.le.s32.totalorder 2, %s13
    // Predicated region
    $region53: #{elucidated_diffusion_forward.1} parent=5 // pred_check
      %p3633 = pneg %p3632
    $region54: #{elucidated_diffusion_forward.1} parent=5 // pred_check_branch
      %3635 = sbr.rel (%p3633) target = $region56
    $region55: #{elucidated_diffusion_forward.1} parent=5 // pred_region
      %s3636 = ssub.s32 %s13, 2
      // Predicated region
      $region57: #{elucidated_diffusion_forward.1} parent=55 // pred_check
        %p3637 = pneg %p204
      $region58: #{elucidated_diffusion_forward.1} parent=55 // pred_check_branch
        %3639 = sbr.rel (%p3637) target = $region60
      $region59: #{elucidated_diffusion_forward.1} parent=55 // pred_region
        %p3640 = scmp.lt.s32.totalorder %s19, 1
        %s3641 = scalar_select %p3640, %s19, 1
        %s3642 = scalar_lea.vmem %s7, %s3641
      $region60: #{elucidated_diffusion_forward.1} parent=55 // pred_fallthru
        _
    $region56: #{elucidated_diffusion_forward.1} parent=5 // pred_fallthru
      _
  $region6: #{elucidated_diffusion_forward.1} parent=0 // loop_footer
    %s17 = sadd.s32 1, %s13
  $region7: #{elucidated_diffusion_forward.1} parent=0 // loop_footer_branch
    %12 = sbr.rel target = $region3
  $region8: #{elucidated_diffusion_forward.1} parent=0 // loop_exit
    _

</llo_original>
